<compile_context>
chip_gen: v6e
topology: v6e:2x2x1
jax: 0.10.0
libtpu: 0.0.40
codegen_flags: <defaults>
</compile_context>

<pallas_src>
import jax
import jax.numpy as jnp
from jax.experimental import pallas as pl
from jax.experimental.pallas import tpu as pltpu

C1, C2 = 32, 64       # conv1 / conv2 output channels
KH = KW = 3           # 3x3 kernels
EPS = 1e-5            # BatchNorm eps


def _white_kernel(x_ref, w1_ref, b1_ref, w2_ref, b2_ref,
                  o_ref, xpad_ref, mid_ref):
    # x_ref   : (B, H, W)            white plane block (channel chosen by BlockSpec)
    # w1_ref  : (9, C1)              conv1 taps (BN1 scale folded in), row t = ky*3+kx
    # b1_ref  : (1, C1)              folded BN1 bias (conv bias folded in)
    # w2_ref  : (9*C1, C2)           conv2 im2col weights (BN2 scale folded in)
    # b2_ref  : (1, C2)              folded BN2 bias
    # o_ref   : (B, H*W, C2)         flat output slab
    # xpad_ref: VMEM (B, H+2, W+2)        padded white plane (persistent)
    # mid_ref : VMEM (B, H+2, W+2, C1)    padded conv1 output (persistent)
    B, H, W = x_ref.shape
    HW = H * W
    Hp, Wp = H + 2, W + 2

    # --- re-zero only the 1-element halos of the persistent scratch buffers.
    # Done every step (a few KB of stores, cheap) instead of under
    # program_id()==0, so it stays correct if the "parallel" grid axis is
    # split across cores (each core's scratch starts uninitialized).
    zxr = jnp.zeros((B, 1, Wp), jnp.float32)
    zxc = jnp.zeros((B, Hp, 1), jnp.float32)
    xpad_ref[:, 0:1, :] = zxr
    xpad_ref[:, H + 1:Hp, :] = zxr
    xpad_ref[:, :, 0:1] = zxc
    xpad_ref[:, :, W + 1:Wp] = zxc

    zmr = jnp.zeros((B, 1, Wp, C1), jnp.float32)
    zmc = jnp.zeros((B, Hp, 1, C1), jnp.float32)
    mid_ref[:, 0:1, :, :] = zmr
    mid_ref[:, H + 1:Hp, :, :] = zmr
    mid_ref[:, :, 0:1, :] = zmc
    mid_ref[:, :, W + 1:Wp, :] = zmc

    # --- in-kernel zero padding of the white plane (interior only; halo stays 0).
    xpad_ref[:, 1:H + 1, 1:W + 1] = x_ref[...].astype(jnp.float32)

    xv = xpad_ref[...]                                     # (B, Hp, Wp)
    w1 = w1_ref[...]                                       # (9, C1), scale folded

    # --- conv1 (cin=1 -> C1): 9 shifted broadcast-MACs on the VPU.
    # TODO(synk): conv1 only uses 32/128 VPU lanes; moving it to the MXU via
    # im2col needs a minor-dim relayout that costs roughly what it saves at
    # cin=1, so it stays on the VPU (its work is ~30x smaller than conv2's).
    acc1 = jnp.zeros((B, H, W, C1), jnp.float32)
    for t in range(KH * KW):
        ky, kx = divmod(t, KW)
        patch = xv[:, ky:ky + H, kx:kx + W]                # (B, H, W)
        acc1 = acc1 + patch[:, :, :, None] * w1[t]
    h1 = jnp.maximum(acc1 + b1_ref[0], 0.0)                # (B, H, W, C1)

    # pad conv1 output into the scratch interior (halo is already zero).
    mid_ref[:, 1:H + 1, 1:W + 1, :] = h1

    # --- conv2 (C1 -> C2): single fused im2col matmul on the MXU, K = 288.
    parts = []
    for t in range(KH * KW):
        ky, kx = divmod(t, KW)
        parts.append(mid_ref[:, ky:ky + H, kx:kx + W, :].reshape(B * HW, C1))
    lhs = jnp.concatenate(parts, axis=-1)                  # (B*HW, 9*C1)
    acc2 = jnp.dot(lhs, w2_ref[...],
                   preferred_element_type=jnp.float32)     # (B*HW, C2)
    # TODO(synk): bf16 lhs/rhs would halve MXU passes but strains the 1e-3 check.

    h2 = jnp.maximum(acc2 + b2_ref[0], 0.0)                # (B*HW, C2)
    o_ref[...] = h2.reshape(B, HW, C2)                     # major-dim split, free


def white_feature_extractor(x_nchw, params):
    """Pallas forward. x_nchw: (N, C>=2, H, W); returns (N, 64, H, W) float32."""
    N, C, H, W = x_nchw.shape
    HW = H * W

    # Batch block: amortize per-step overhead but keep >=2 grid blocks so the
    # "parallel" axis can shard across v7x's 2 TensorCores.  B<=8 keeps the
    # per-step VMEM footprint well under the default scoped limit on all chips.
    B = max(1, min(8, N // 2))
    G = pl.cdiv(N, B)
    Npad = G * B
    x_in = x_nchw if Npad == N else jnp.pad(
        x_nchw, ((0, Npad - N), (0, 0), (0, 0), (0, 0)))

    # Fold conv bias + BatchNorm (running-stats / eval mode) into scale & bias,
    # then fold the per-channel scale into the (tiny, constant) conv weights so
    # the kernel epilogue is just bias + ReLU.  These folds touch weights only,
    # never per-call activations.
    # TODO(synk): PyTorch's training-mode BatchNorm would use per-batch
    # statistics (a cross-batch reduction); we use the module's initial running
    # stats (mean=0, var=1), i.e. inference semantics.
    def fold(gamma, beta, mean, var, conv_b):
        s = gamma / jnp.sqrt(var + EPS)
        b = beta + s * (conv_b - mean)
        return s.astype(jnp.float32), b.reshape(1, -1).astype(jnp.float32)

    s1, b1 = fold(params["bn1_gamma"], params["bn1_beta"],
                  params["bn1_mean"], params["bn1_var"], params["conv1_b"])
    s2, b2 = fold(params["bn2_gamma"], params["bn2_beta"],
                  params["bn2_mean"], params["bn2_var"], params["conv2_b"])

    # conv1: (C1, 1, 3, 3) -> (9, C1), row t = ky*3 + kx; BN1 scale folded in.
    w1 = jnp.transpose(params["conv1_w"][:, 0].reshape(C1, KH * KW), (1, 0))
    w1 = (w1 * s1[None, :]).astype(jnp.float32)
    # conv2: (C2, C1, 3, 3) -> (ky, kx, cin, cout) -> (9*C1, C2),
    # row = t*C1 + cin; BN2 scale folded into the cout columns.
    w2 = jnp.transpose(params["conv2_w"], (2, 3, 1, 0)) \
            .reshape(KH * KW * C1, C2)
    w2 = (w2 * s2[None, :]).astype(jnp.float32)

    flops = 2 * Npad * HW * (KH * KW * C1) * (1 + C2)
    bytes_acc = 4 * (Npad * HW                      # white plane read
                     + Npad * HW * C2               # output write
                     + KH * KW * C1 + C1            # w1, b1
                     + KH * KW * C1 * C2 + C2)      # w2, b2

    out_flat = pl.pallas_call(
        _white_kernel,
        out_shape=jax.ShapeDtypeStruct((Npad, HW, C2), jnp.float32),
        grid_spec=pltpu.PrefetchScalarGridSpec(
            num_scalar_prefetch=0,
            grid=(G,),
            in_specs=[
                # Pick the white channel (index 1) straight out of NCHW.
                pl.BlockSpec((B, None, H, W), lambda n: (n, 1, 0, 0)),
                pl.BlockSpec((KH * KW, C1), lambda n: (0, 0)),
                pl.BlockSpec((1, C1), lambda n: (0, 0)),
                pl.BlockSpec((KH * KW * C1, C2), lambda n: (0, 0)),
                pl.BlockSpec((1, C2), lambda n: (0, 0)),
            ],
            out_specs=pl.BlockSpec((B, HW, C2), lambda n: (n, 0, 0)),
            scratch_shapes=[
                pltpu.VMEM((B, H + 2, W + 2), jnp.float32),
                pltpu.VMEM((B, H + 2, W + 2, C1), jnp.float32),
            ],
        ),
        compiler_params=pltpu.CompilerParams(dimension_semantics=("parallel",)),
        cost_estimate=pl.CostEstimate(flops=flops, transcendentals=0,
                                      bytes_accessed=bytes_acc),
    )(x_in, w1, b1, w2, b2)

    # NHWC-flat -> NCHW only to preserve the PyTorch module's output layout.
    out = out_flat[:N].reshape(N, H, W, C2)
    return jnp.transpose(out, (0, 3, 1, 2))


def _reference(x_nchw, params):
    """Pure-JAX reference (lax conv) with the same eval-mode BN semantics."""
    def bn(y, gamma, beta, mean, var):
        s = gamma / jnp.sqrt(var + EPS)
        return (y - mean[None, :, None, None]) * s[None, :, None, None] \
               + beta[None, :, None, None]

    white = x_nchw[:, 1:2].astype(jnp.float32)
    y = jax.lax.conv_general_dilated(white, params["conv1_w"], (1, 1), "SAME",
                                     dimension_numbers=("NCHW", "OIHW", "NCHW"))
    y = y + params["conv1_b"][None, :, None, None]
    y = jnp.maximum(bn(y, params["bn1_gamma"], params["bn1_beta"],
                       params["bn1_mean"], params["bn1_var"]), 0.0)
    y = jax.lax.conv_general_dilated(y, params["conv2_w"], (1, 1), "SAME",
                                     dimension_numbers=("NCHW", "OIHW", "NCHW"))
    y = y + params["conv2_b"][None, :, None, None]
    y = jnp.maximum(bn(y, params["bn2_gamma"], params["bn2_beta"],
                       params["bn2_mean"], params["bn2_var"]), 0.0)
    return y


def _init_params(key):
    ks = jax.random.split(key, 4)

    def uni(k, shape, fan_in):
        bound = 1.0 / (fan_in ** 0.5)       # PyTorch default conv init bound
        return jax.random.uniform(k, shape, jnp.float32, -bound, bound)

    return dict(
        conv1_w=uni(ks[0], (C1, 1, KH, KW), 1 * KH * KW),
        conv1_b=uni(ks[1], (C1,), 1 * KH * KW),
        bn1_gamma=jnp.ones((C1,), jnp.float32),
        bn1_beta=jnp.zeros((C1,), jnp.float32),
        bn1_mean=jnp.zeros((C1,), jnp.float32),
        bn1_var=jnp.ones((C1,), jnp.float32),
        conv2_w=uni(ks[2], (C2, C1, KH, KW), C1 * KH * KW),
        conv2_b=uni(ks[3], (C2,), C1 * KH * KW),
        bn2_gamma=jnp.ones((C2,), jnp.float32),
        bn2_beta=jnp.zeros((C2,), jnp.float32),
        bn2_mean=jnp.zeros((C2,), jnp.float32),
        bn2_var=jnp.ones((C2,), jnp.float32),
    )


if __name__ == "__main__":
    key = jax.random.PRNGKey(0)
    k_params, k_x = jax.random.split(key)
    params = _init_params(k_params)

    # small NCHW input consistent with the module (channel 1 is the white plane)
    x = jax.random.normal(k_x, (2, 4, 16, 16), jnp.float32)

    out = jax.jit(white_feature_extractor)(x, params)
    out = jax.block_until_ready(out)

    ref = _reference(x, params)
    assert out.shape == (2, C2, 16, 16), out.shape
    assert jnp.allclose(out, ref, atol=1e-3, rtol=1e-3), \
        float(jnp.max(jnp.abs(out - ref)))

    print("KERNEL_OK")
</pallas_src>

<mosaic_0001>
module attributes {stable_mosaic.version = 11 : i64} {
  func.func @_white_kernel(%arg0: i32, %arg1: memref<1x1x16x16xf32, #tpu.memory_space<vmem>>, %arg2: memref<9x32xf32, #tpu.memory_space<vmem>>, %arg3: memref<1x32xf32, #tpu.memory_space<vmem>>, %arg4: memref<288x64xf32, #tpu.memory_space<vmem>>, %arg5: memref<1x64xf32, #tpu.memory_space<vmem>>, %arg6: memref<1x256x64xf32, #tpu.memory_space<vmem>>, %arg7: memref<1x18x18xf32, #tpu.memory_space<vmem>>, %arg8: memref<1x18x18x32xf32, #tpu.memory_space<vmem>>) attributes {dimension_semantics = [#tpu.dimension_semantics<parallel>], iteration_bounds = array<i64: 2>, scalar_prefetch = 0 : i64, scratch_operands = 2 : i64, tpu.core_type = #tpu.core_type<tc>, window_params = [{transform_indices = @transform_0, window_bounds = array<i64: 1, 1, 16, 16>}, {pipeline_mode = #tpu.pipeline_mode<synchronous>, transform_indices = @transform_1, window_bounds = array<i64: 9, 32>}, {pipeline_mode = #tpu.pipeline_mode<synchronous>, transform_indices = @transform_2, window_bounds = array<i64: 1, 32>}, {pipeline_mode = #tpu.pipeline_mode<synchronous>, transform_indices = @transform_3, window_bounds = array<i64: 288, 64>}, {pipeline_mode = #tpu.pipeline_mode<synchronous>, transform_indices = @transform_4, window_bounds = array<i64: 1, 64>}, {transform_indices = @transform_5, window_bounds = array<i64: 1, 256, 64>}]} {
    %cst = arith.constant 0.000000e+00 : f32
    %0 = vector.broadcast %cst : f32 to vector<1x1x18xf32>
    %cst_0 = arith.constant 0.000000e+00 : f32
    %1 = vector.broadcast %cst_0 : f32 to vector<1x18x1xf32>
    %c0 = arith.constant 0 : index
    %c0_1 = arith.constant 0 : index
    %c0_2 = arith.constant 0 : index
    %2 = vector.load %arg7[%c0, %c0_1, %c0_2] : memref<1x18x18xf32, #tpu.memory_space<vmem>>, vector<1x1x18xf32>
    tpu.vector_store %arg7[%c0, %c0_1, %c0_2], %0 {strides = array<i32>} : memref<1x18x18xf32, #tpu.memory_space<vmem>>, vector<1x1x18xf32>,
    %c0_3 = arith.constant 0 : index
    %c17 = arith.constant 17 : index
    %c0_4 = arith.constant 0 : index
    %3 = vector.load %arg7[%c0_3, %c17, %c0_4] : memref<1x18x18xf32, #tpu.memory_space<vmem>>, vector<1x1x18xf32>
    tpu.vector_store %arg7[%c0_3, %c17, %c0_4], %0 {strides = array<i32>} : memref<1x18x18xf32, #tpu.memory_space<vmem>>, vector<1x1x18xf32>,
    %c0_5 = arith.constant 0 : index
    %c0_6 = arith.constant 0 : index
    %c0_7 = arith.constant 0 : index
    %4 = vector.load %arg7[%c0_5, %c0_6, %c0_7] : memref<1x18x18xf32, #tpu.memory_space<vmem>>, vector<1x18x1xf32>
    tpu.vector_store %arg7[%c0_5, %c0_6, %c0_7], %1 {strides = array<i32>} : memref<1x18x18xf32, #tpu.memory_space<vmem>>, vector<1x18x1xf32>,
    %c0_8 = arith.constant 0 : index
    %c0_9 = arith.constant 0 : index
    %c17_10 = arith.constant 17 : index
    %5 = vector.load %arg7[%c0_8, %c0_9, %c17_10] : memref<1x18x18xf32, #tpu.memory_space<vmem>>, vector<1x18x1xf32>
    tpu.vector_store %arg7[%c0_8, %c0_9, %c17_10], %1 {strides = array<i32>} : memref<1x18x18xf32, #tpu.memory_space<vmem>>, vector<1x18x1xf32>,
    %cst_11 = arith.constant 0.000000e+00 : f32
    %6 = vector.broadcast %cst_11 : f32 to vector<1x1x18x32xf32>
    %cst_12 = arith.constant 0.000000e+00 : f32
    %7 = vector.broadcast %cst_12 : f32 to vector<1x18x1x32xf32>
    %c0_13 = arith.constant 0 : index
    %c0_14 = arith.constant 0 : index
    %c0_15 = arith.constant 0 : index
    %c0_16 = arith.constant 0 : index
    %8 = vector.load %arg8[%c0_13, %c0_14, %c0_15, %c0_16] : memref<1x18x18x32xf32, #tpu.memory_space<vmem>>, vector<1x1x18x32xf32>
    tpu.vector_store %arg8[%c0_13, %c0_14, %c0_15, %c0_16], %6 {strides = array<i32>} : memref<1x18x18x32xf32, #tpu.memory_space<vmem>>, vector<1x1x18x32xf32>,
    %c0_17 = arith.constant 0 : index
    %c17_18 = arith.constant 17 : index
    %c0_19 = arith.constant 0 : index
    %c0_20 = arith.constant 0 : index
    %9 = vector.load %arg8[%c0_17, %c17_18, %c0_19, %c0_20] : memref<1x18x18x32xf32, #tpu.memory_space<vmem>>, vector<1x1x18x32xf32>
    tpu.vector_store %arg8[%c0_17, %c17_18, %c0_19, %c0_20], %6 {strides = array<i32>} : memref<1x18x18x32xf32, #tpu.memory_space<vmem>>, vector<1x1x18x32xf32>,
    %c0_21 = arith.constant 0 : index
    %c0_22 = arith.constant 0 : index
    %c0_23 = arith.constant 0 : index
    %c0_24 = arith.constant 0 : index
    %10 = vector.load %arg8[%c0_21, %c0_22, %c0_23, %c0_24] : memref<1x18x18x32xf32, #tpu.memory_space<vmem>>, vector<1x18x1x32xf32>
    tpu.vector_store %arg8[%c0_21, %c0_22, %c0_23, %c0_24], %7 {strides = array<i32>} : memref<1x18x18x32xf32, #tpu.memory_space<vmem>>, vector<1x18x1x32xf32>,
    %c0_25 = arith.constant 0 : index
    %c0_26 = arith.constant 0 : index
    %c17_27 = arith.constant 17 : index
    %c0_28 = arith.constant 0 : index
    %11 = vector.load %arg8[%c0_25, %c0_26, %c17_27, %c0_28] : memref<1x18x18x32xf32, #tpu.memory_space<vmem>>, vector<1x18x1x32xf32>
    tpu.vector_store %arg8[%c0_25, %c0_26, %c17_27, %c0_28], %7 {strides = array<i32>} : memref<1x18x18x32xf32, #tpu.memory_space<vmem>>, vector<1x18x1x32xf32>,
    %c0_29 = arith.constant 0 : index
    %c0_30 = arith.constant 0 : index
    %c0_31 = arith.constant 0 : index
    %c0_32 = arith.constant 0 : index
    %12 = vector.load %arg1[%c0_29, %c0_30, %c0_31, %c0_32] : memref<1x1x16x16xf32, #tpu.memory_space<vmem>>, vector<1x1x16x16xf32>
    %13 = vector.shape_cast %12 : vector<1x1x16x16xf32> to vector<1x16x16xf32>
    %c0_33 = arith.constant 0 : index
    %c1 = arith.constant 1 : index
    %c1_34 = arith.constant 1 : index
    %14 = vector.load %arg7[%c0_33, %c1, %c1_34] : memref<1x18x18xf32, #tpu.memory_space<vmem>>, vector<1x16x16xf32>
    tpu.vector_store %arg7[%c0_33, %c1, %c1_34], %13 {strides = array<i32>} : memref<1x18x18xf32, #tpu.memory_space<vmem>>, vector<1x16x16xf32>,
    %c0_35 = arith.constant 0 : index
    %c0_36 = arith.constant 0 : index
    %c0_37 = arith.constant 0 : index
    %15 = vector.load %arg7[%c0_35, %c0_36, %c0_37] : memref<1x18x18xf32, #tpu.memory_space<vmem>>, vector<1x18x18xf32>
    %c0_38 = arith.constant 0 : index
    %c0_39 = arith.constant 0 : index
    %16 = vector.load %arg2[%c0_38, %c0_39] : memref<9x32xf32, #tpu.memory_space<vmem>>, vector<9x32xf32>
    %cst_40 = arith.constant 0.000000e+00 : f32
    %17 = vector.broadcast %cst_40 : f32 to vector<1x16x16x32xf32>
    %18 = vector.extract_strided_slice %15 {offsets = [0, 0, 0], sizes = [1, 16, 16], strides = [1, 1, 1]} : vector<1x18x18xf32> to vector<1x16x16xf32>
    %19 = vector.shape_cast %18 : vector<1x16x16xf32> to vector<1x16x16x1xf32>
    %20 = vector.extract_strided_slice %16 {offsets = [0, 0], sizes = [1, 32], strides = [1, 1]} : vector<9x32xf32> to vector<1x32xf32>
    %21 = vector.shape_cast %20 : vector<1x32xf32> to vector<32xf32>
    %22 = vector.shape_cast %21 : vector<32xf32> to vector<1x1x1x32xf32>
    %23 = vector.broadcast %19 : vector<1x16x16x1xf32> to vector<1x16x16x32xf32>
    %24 = vector.broadcast %22 : vector<1x1x1x32xf32> to vector<1x16x16x32xf32>
    %25 = arith.mulf %23, %24 : vector<1x16x16x32xf32>
    %26 = arith.addf %17, %25 : vector<1x16x16x32xf32>
    %27 = vector.extract_strided_slice %15 {offsets = [0, 0, 1], sizes = [1, 16, 16], strides = [1, 1, 1]} : vector<1x18x18xf32> to vector<1x16x16xf32>
    %28 = vector.shape_cast %27 : vector<1x16x16xf32> to vector<1x16x16x1xf32>
    %29 = vector.extract_strided_slice %16 {offsets = [1, 0], sizes = [1, 32], strides = [1, 1]} : vector<9x32xf32> to vector<1x32xf32>
    %30 = vector.shape_cast %29 : vector<1x32xf32> to vector<32xf32>
    %31 = vector.shape_cast %30 : vector<32xf32> to vector<1x1x1x32xf32>
    %32 = vector.broadcast %28 : vector<1x16x16x1xf32> to vector<1x16x16x32xf32>
    %33 = vector.broadcast %31 : vector<1x1x1x32xf32> to vector<1x16x16x32xf32>
    %34 = arith.mulf %32, %33 : vector<1x16x16x32xf32>
    %35 = arith.addf %26, %34 : vector<1x16x16x32xf32>
    %36 = vector.extract_strided_slice %15 {offsets = [0, 0, 2], sizes = [1, 16, 16], strides = [1, 1, 1]} : vector<1x18x18xf32> to vector<1x16x16xf32>
    %37 = vector.shape_cast %36 : vector<1x16x16xf32> to vector<1x16x16x1xf32>
    %38 = vector.extract_strided_slice %16 {offsets = [2, 0], sizes = [1, 32], strides = [1, 1]} : vector<9x32xf32> to vector<1x32xf32>
    %39 = vector.shape_cast %38 : vector<1x32xf32> to vector<32xf32>
    %40 = vector.shape_cast %39 : vector<32xf32> to vector<1x1x1x32xf32>
    %41 = vector.broadcast %37 : vector<1x16x16x1xf32> to vector<1x16x16x32xf32>
    %42 = vector.broadcast %40 : vector<1x1x1x32xf32> to vector<1x16x16x32xf32>
    %43 = arith.mulf %41, %42 : vector<1x16x16x32xf32>
    %44 = arith.addf %35, %43 : vector<1x16x16x32xf32>
    %45 = vector.extract_strided_slice %15 {offsets = [0, 1, 0], sizes = [1, 16, 16], strides = [1, 1, 1]} : vector<1x18x18xf32> to vector<1x16x16xf32>
    %46 = vector.shape_cast %45 : vector<1x16x16xf32> to vector<1x16x16x1xf32>
    %47 = vector.extract_strided_slice %16 {offsets = [3, 0], sizes = [1, 32], strides = [1, 1]} : vector<9x32xf32> to vector<1x32xf32>
    %48 = vector.shape_cast %47 : vector<1x32xf32> to vector<32xf32>
    %49 = vector.shape_cast %48 : vector<32xf32> to vector<1x1x1x32xf32>
    %50 = vector.broadcast %46 : vector<1x16x16x1xf32> to vector<1x16x16x32xf32>
    %51 = vector.broadcast %49 : vector<1x1x1x32xf32> to vector<1x16x16x32xf32>
    %52 = arith.mulf %50, %51 : vector<1x16x16x32xf32>
    %53 = arith.addf %44, %52 : vector<1x16x16x32xf32>
    %54 = vector.extract_strided_slice %15 {offsets = [0, 1, 1], sizes = [1, 16, 16], strides = [1, 1, 1]} : vector<1x18x18xf32> to vector<1x16x16xf32>
    %55 = vector.shape_cast %54 : vector<1x16x16xf32> to vector<1x16x16x1xf32>
    %56 = vector.extract_strided_slice %16 {offsets = [4, 0], sizes = [1, 32], strides = [1, 1]} : vector<9x32xf32> to vector<1x32xf32>
    %57 = vector.shape_cast %56 : vector<1x32xf32> to vector<32xf32>
    %58 = vector.shape_cast %57 : vector<32xf32> to vector<1x1x1x32xf32>
    %59 = vector.broadcast %55 : vector<1x16x16x1xf32> to vector<1x16x16x32xf32>
    %60 = vector.broadcast %58 : vector<1x1x1x32xf32> to vector<1x16x16x32xf32>
    %61 = arith.mulf %59, %60 : vector<1x16x16x32xf32>
    %62 = arith.addf %53, %61 : vector<1x16x16x32xf32>
    %63 = vector.extract_strided_slice %15 {offsets = [0, 1, 2], sizes = [1, 16, 16], strides = [1, 1, 1]} : vector<1x18x18xf32> to vector<1x16x16xf32>
    %64 = vector.shape_cast %63 : vector<1x16x16xf32> to vector<1x16x16x1xf32>
    %65 = vector.extract_strided_slice %16 {offsets = [5, 0], sizes = [1, 32], strides = [1, 1]} : vector<9x32xf32> to vector<1x32xf32>
    %66 = vector.shape_cast %65 : vector<1x32xf32> to vector<32xf32>
    %67 = vector.shape_cast %66 : vector<32xf32> to vector<1x1x1x32xf32>
    %68 = vector.broadcast %64 : vector<1x16x16x1xf32> to vector<1x16x16x32xf32>
    %69 = vector.broadcast %67 : vector<1x1x1x32xf32> to vector<1x16x16x32xf32>
    %70 = arith.mulf %68, %69 : vector<1x16x16x32xf32>
    %71 = arith.addf %62, %70 : vector<1x16x16x32xf32>
    %72 = vector.extract_strided_slice %15 {offsets = [0, 2, 0], sizes = [1, 16, 16], strides = [1, 1, 1]} : vector<1x18x18xf32> to vector<1x16x16xf32>
    %73 = vector.shape_cast %72 : vector<1x16x16xf32> to vector<1x16x16x1xf32>
    %74 = vector.extract_strided_slice %16 {offsets = [6, 0], sizes = [1, 32], strides = [1, 1]} : vector<9x32xf32> to vector<1x32xf32>
    %75 = vector.shape_cast %74 : vector<1x32xf32> to vector<32xf32>
    %76 = vector.shape_cast %75 : vector<32xf32> to vector<1x1x1x32xf32>
    %77 = vector.broadcast %73 : vector<1x16x16x1xf32> to vector<1x16x16x32xf32>
    %78 = vector.broadcast %76 : vector<1x1x1x32xf32> to vector<1x16x16x32xf32>
    %79 = arith.mulf %77, %78 : vector<1x16x16x32xf32>
    %80 = arith.addf %71, %79 : vector<1x16x16x32xf32>
    %81 = vector.extract_strided_slice %15 {offsets = [0, 2, 1], sizes = [1, 16, 16], strides = [1, 1, 1]} : vector<1x18x18xf32> to vector<1x16x16xf32>
    %82 = vector.shape_cast %81 : vector<1x16x16xf32> to vector<1x16x16x1xf32>
    %83 = vector.extract_strided_slice %16 {offsets = [7, 0], sizes = [1, 32], strides = [1, 1]} : vector<9x32xf32> to vector<1x32xf32>
    %84 = vector.shape_cast %83 : vector<1x32xf32> to vector<32xf32>
    %85 = vector.shape_cast %84 : vector<32xf32> to vector<1x1x1x32xf32>
    %86 = vector.broadcast %82 : vector<1x16x16x1xf32> to vector<1x16x16x32xf32>
    %87 = vector.broadcast %85 : vector<1x1x1x32xf32> to vector<1x16x16x32xf32>
    %88 = arith.mulf %86, %87 : vector<1x16x16x32xf32>
    %89 = arith.addf %80, %88 : vector<1x16x16x32xf32>
    %90 = vector.extract_strided_slice %15 {offsets = [0, 2, 2], sizes = [1, 16, 16], strides = [1, 1, 1]} : vector<1x18x18xf32> to vector<1x16x16xf32>
    %91 = vector.shape_cast %90 : vector<1x16x16xf32> to vector<1x16x16x1xf32>
    %92 = vector.extract_strided_slice %16 {offsets = [8, 0], sizes = [1, 32], strides = [1, 1]} : vector<9x32xf32> to vector<1x32xf32>
    %93 = vector.shape_cast %92 : vector<1x32xf32> to vector<32xf32>
    %94 = vector.shape_cast %93 : vector<32xf32> to vector<1x1x1x32xf32>
    %95 = vector.broadcast %91 : vector<1x16x16x1xf32> to vector<1x16x16x32xf32>
    %96 = vector.broadcast %94 : vector<1x1x1x32xf32> to vector<1x16x16x32xf32>
    %97 = arith.mulf %95, %96 : vector<1x16x16x32xf32>
    %98 = arith.addf %89, %97 : vector<1x16x16x32xf32>
    %c0_41 = arith.constant 0 : index
    %c0_42 = arith.constant 0 : index
    %99 = vector.load %arg3[%c0_41, %c0_42] : memref<1x32xf32, #tpu.memory_space<vmem>>, vector<1x32xf32>
    %100 = vector.shape_cast %99 : vector<1x32xf32> to vector<32xf32>
    %101 = vector.shape_cast %100 : vector<32xf32> to vector<1x1x1x32xf32>
    %102 = vector.broadcast %101 : vector<1x1x1x32xf32> to vector<1x16x16x32xf32>
    %103 = arith.addf %98, %102 : vector<1x16x16x32xf32>
    %cst_43 = arith.constant 0.000000e+00 : f32
    %104 = vector.broadcast %cst_43 : f32 to vector<1x16x16x32xf32>
    %105 = arith.maximumf %103, %104 : vector<1x16x16x32xf32>
    %c0_44 = arith.constant 0 : index
    %c1_45 = arith.constant 1 : index
    %c1_46 = arith.constant 1 : index
    %c0_47 = arith.constant 0 : index
    %106 = vector.load %arg8[%c0_44, %c1_45, %c1_46, %c0_47] : memref<1x18x18x32xf32, #tpu.memory_space<vmem>>, vector<1x16x16x32xf32>
    tpu.vector_store %arg8[%c0_44, %c1_45, %c1_46, %c0_47], %105 {strides = array<i32>} : memref<1x18x18x32xf32, #tpu.memory_space<vmem>>, vector<1x16x16x32xf32>,
    %c0_48 = arith.constant 0 : index
    %c0_49 = arith.constant 0 : index
    %c0_50 = arith.constant 0 : index
    %c0_51 = arith.constant 0 : index
    %107 = vector.load %arg8[%c0_48, %c0_49, %c0_50, %c0_51] : memref<1x18x18x32xf32, #tpu.memory_space<vmem>>, vector<1x16x16x32xf32>
    %108 = vector.shape_cast %107 : vector<1x16x16x32xf32> to vector<256x32xf32>
    %c0_52 = arith.constant 0 : index
    %c0_53 = arith.constant 0 : index
    %c1_54 = arith.constant 1 : index
    %c0_55 = arith.constant 0 : index
    %109 = vector.load %arg8[%c0_52, %c0_53, %c1_54, %c0_55] : memref<1x18x18x32xf32, #tpu.memory_space<vmem>>, vector<1x16x16x32xf32>
    %110 = vector.shape_cast %109 : vector<1x16x16x32xf32> to vector<256x32xf32>
    %c0_56 = arith.constant 0 : index
    %c0_57 = arith.constant 0 : index
    %c2 = arith.constant 2 : index
    %c0_58 = arith.constant 0 : index
    %111 = vector.load %arg8[%c0_56, %c0_57, %c2, %c0_58] : memref<1x18x18x32xf32, #tpu.memory_space<vmem>>, vector<1x16x16x32xf32>
    %112 = vector.shape_cast %111 : vector<1x16x16x32xf32> to vector<256x32xf32>
    %c0_59 = arith.constant 0 : index
    %c1_60 = arith.constant 1 : index
    %c0_61 = arith.constant 0 : index
    %c0_62 = arith.constant 0 : index
    %113 = vector.load %arg8[%c0_59, %c1_60, %c0_61, %c0_62] : memref<1x18x18x32xf32, #tpu.memory_space<vmem>>, vector<1x16x16x32xf32>
    %114 = vector.shape_cast %113 : vector<1x16x16x32xf32> to vector<256x32xf32>
    %c0_63 = arith.constant 0 : index
    %c1_64 = arith.constant 1 : index
    %c1_65 = arith.constant 1 : index
    %c0_66 = arith.constant 0 : index
    %115 = vector.load %arg8[%c0_63, %c1_64, %c1_65, %c0_66] : memref<1x18x18x32xf32, #tpu.memory_space<vmem>>, vector<1x16x16x32xf32>
    %116 = vector.shape_cast %115 : vector<1x16x16x32xf32> to vector<256x32xf32>
    %c0_67 = arith.constant 0 : index
    %c1_68 = arith.constant 1 : index
    %c2_69 = arith.constant 2 : index
    %c0_70 = arith.constant 0 : index
    %117 = vector.load %arg8[%c0_67, %c1_68, %c2_69, %c0_70] : memref<1x18x18x32xf32, #tpu.memory_space<vmem>>, vector<1x16x16x32xf32>
    %118 = vector.shape_cast %117 : vector<1x16x16x32xf32> to vector<256x32xf32>
    %c0_71 = arith.constant 0 : index
    %c2_72 = arith.constant 2 : index
    %c0_73 = arith.constant 0 : index
    %c0_74 = arith.constant 0 : index
    %119 = vector.load %arg8[%c0_71, %c2_72, %c0_73, %c0_74] : memref<1x18x18x32xf32, #tpu.memory_space<vmem>>, vector<1x16x16x32xf32>
    %120 = vector.shape_cast %119 : vector<1x16x16x32xf32> to vector<256x32xf32>
    %c0_75 = arith.constant 0 : index
    %c2_76 = arith.constant 2 : index
    %c1_77 = arith.constant 1 : index
    %c0_78 = arith.constant 0 : index
    %121 = vector.load %arg8[%c0_75, %c2_76, %c1_77, %c0_78] : memref<1x18x18x32xf32, #tpu.memory_space<vmem>>, vector<1x16x16x32xf32>
    %122 = vector.shape_cast %121 : vector<1x16x16x32xf32> to vector<256x32xf32>
    %c0_79 = arith.constant 0 : index
    %c2_80 = arith.constant 2 : index
    %c2_81 = arith.constant 2 : index
    %c0_82 = arith.constant 0 : index
    %123 = vector.load %arg8[%c0_79, %c2_80, %c2_81, %c0_82] : memref<1x18x18x32xf32, #tpu.memory_space<vmem>>, vector<1x16x16x32xf32>
    %124 = vector.shape_cast %123 : vector<1x16x16x32xf32> to vector<256x32xf32>
    %125 = tpu.concatenate %108, %110, %112, %114, %116, %118, %120, %122, %124 in 1 : vector<256x32xf32>, vector<256x32xf32>, vector<256x32xf32>, vector<256x32xf32>, vector<256x32xf32>, vector<256x32xf32>, vector<256x32xf32>, vector<256x32xf32>, vector<256x32xf32> -> vector<256x288xf32>
    %c0_83 = arith.constant 0 : index
    %c0_84 = arith.constant 0 : index
    %126 = vector.load %arg4[%c0_83, %c0_84] : memref<288x64xf32, #tpu.memory_space<vmem>>, vector<288x64xf32>
    %cst_85 = arith.constant dense<0.000000e+00> : vector<256x64xf32>
    %127 = tpu.matmul %125, %126, %cst_85 {dimension_numbers = #tpu.dot_dimension_numbers<[1], [0], [0], [1], [0, 0, 1, 1], [], []>} : vector<256x288xf32>, vector<288x64xf32>, vector<256x64xf32> -> vector<256x64xf32>
    %c0_86 = arith.constant 0 : index
    %c0_87 = arith.constant 0 : index
    %128 = vector.load %arg5[%c0_86, %c0_87] : memref<1x64xf32, #tpu.memory_space<vmem>>, vector<1x64xf32>
    %129 = vector.shape_cast %128 : vector<1x64xf32> to vector<64xf32>
    %130 = vector.shape_cast %129 : vector<64xf32> to vector<1x64xf32>
    %131 = vector.broadcast %130 : vector<1x64xf32> to vector<256x64xf32>
    %132 = arith.addf %127, %131 : vector<256x64xf32>
    %cst_88 = arith.constant 0.000000e+00 : f32
    %133 = vector.broadcast %cst_88 : f32 to vector<256x64xf32>
    %134 = arith.maximumf %132, %133 : vector<256x64xf32>
    %135 = vector.shape_cast %134 : vector<256x64xf32> to vector<1x256x64xf32>
    %c0_89 = arith.constant 0 : index
    %c0_90 = arith.constant 0 : index
    %c0_91 = arith.constant 0 : index
    %136 = vector.load %arg6[%c0_89, %c0_90, %c0_91] : memref<1x256x64xf32, #tpu.memory_space<vmem>>, vector<1x256x64xf32>
    tpu.vector_store %arg6[%c0_89, %c0_90, %c0_91], %135 {strides = array<i32>} : memref<1x256x64xf32, #tpu.memory_space<vmem>>, vector<1x256x64xf32>,
    return
  }
  func.func @transform_0(%arg0: i32) -> (i32, i32, i32, i32) {
    %c1_i32 = arith.constant 1 : i32
    %c0_i32 = arith.constant 0 : i32
    %c0_i32_0 = arith.constant 0 : i32
    %c0_i32_1 = arith.constant 0 : i32
    return %arg0, %c1_i32, %c0_i32, %c0_i32_0 : i32, i32, i32, i32
  }
  func.func @transform_1(%arg0: i32) -> (i32, i32) {
    %c0_i32 = arith.constant 0 : i32
    %c0_i32_0 = arith.constant 0 : i32
    %c0_i32_1 = arith.constant 0 : i32
    return %c0_i32, %c0_i32_0 : i32, i32
  }
  func.func @transform_2(%arg0: i32) -> (i32, i32) {
    %c0_i32 = arith.constant 0 : i32
    %c0_i32_0 = arith.constant 0 : i32
    %c0_i32_1 = arith.constant 0 : i32
    return %c0_i32, %c0_i32_0 : i32, i32
  }
  func.func @transform_3(%arg0: i32) -> (i32, i32) {
    %c0_i32 = arith.constant 0 : i32
    %c0_i32_0 = arith.constant 0 : i32
    %c0_i32_1 = arith.constant 0 : i32
    return %c0_i32, %c0_i32_0 : i32, i32
  }
  func.func @transform_4(%arg0: i32) -> (i32, i32) {
    %c0_i32 = arith.constant 0 : i32
    %c0_i32_0 = arith.constant 0 : i32
    %c0_i32_1 = arith.constant 0 : i32
    return %c0_i32, %c0_i32_0 : i32, i32
  }
  func.func @transform_5(%arg0: i32) -> (i32, i32, i32) {
    %c0_i32 = arith.constant 0 : i32
    %c0_i32_0 = arith.constant 0 : i32
    %c0_i32_1 = arith.constant 0 : i32
    return %arg0, %c0_i32, %c0_i32_0 : i32, i32, i32
  }
}

</mosaic_0001>

<llo_original>
// kernel: squeeze.1
$region0: #{squeeze.1}
  %s0 = inlined_call_operand.vmem [shape: f32[32,3,3], index: 0, kind: input, shape index: {}]
  %s1 = inlined_call_operand.vmem [shape: f32[32,9], index: 1, kind: output, shape index: {}]
  $region1: #{squeeze.1} parent=0
    #allocation0 [shape = 'u8[12288]{0}', space=vmem, size = 0x3000, scoped, tag = 'scoped mem for input reshape']
    %s3 = sshll.u32 1, 4
    %s4 = ssub.s32 %s3, 1
    %s5 = smul.addr 4, 2
    %s6 = scalar_lea.vmem %s0, %s5
    %v7 = vld [vmem:[%s6] sm:%s4]
    %s8 = scalar_lea.vmem [#allocation0], 16
    %9 = vst [vmem:[%s8] sm:%s4] %v7
    %s10 = scalar_lea.vmem %s0, 4
    %v11 = vld [vmem:[%s10] sm:%s4]
    %s12 = scalar_lea.vmem [#allocation0], 8
    %13 = vst [vmem:[%s12] sm:%s4] %v11
    %v14 = vld [vmem:[%s0] sm:%s4]
    %15 = vst [vmem:[#allocation0] sm:%s4] %v14
    %v16 = vld [vmem:[#allocation0] sm:$0x7]
    %vm17 = vcmask 261120
    %18 = vst.msk [vmem:[%s1] sm:$0x7] %vm17, %v16
    %s19 = scalar_lea.vmem [#allocation0], 8
    %v20 = vld [vmem:[%s19] sm:$0x7]
    %vm21 = vcmask 261120
    %s22 = scalar_lea.vmem %s1, 3
    %23 = vst.msk [vmem:[%s22] sm:$0x7] %vm21, %v20
    %s24 = scalar_lea.vmem [#allocation0], 16
    %v25 = vld [vmem:[%s24] sm:$0x7]
    %vm26 = vcmask 261120
    %s27 = scalar_lea.vmem %s1, 6
    %28 = vst.msk [vmem:[%s27] sm:$0x7] %vm26, %v25

// kernel: white_feature_extractor.1
$region0: #{white_feature_extractor.1}
  #allocation0 [shape = 'u32[]', space=smem, size = 0x4, offset = 0x4, fixed_abs, tag = 'smem constant byte address 0x4 - core index']
  #allocation1 [shape = 'u32[144,128]{1,0:T(1,128)}', space=vmem, size = 0x12000, scoped, tag = 'internal scratch']
  #allocation2 [shape = 'f32[1,18,18]{2,1,0:T(8,128)}', space=vmem, size = 0x3000, scoped, tag = 'scratch operand']
  #allocation3 [shape = 'f32[1,18,18,32]{3,2,1,0:T(8,128)}', space=vmem, size = 0x36000, scoped, tag = 'scratch operand']
  %s0 = inlined_call_operand.vmem [shape: f32[2,4,16,16], index: 0, kind: input, shape index: {}]
  %s1 = inlined_call_operand.vmem [shape: f32[9,32], index: 1, kind: input, shape index: {}]
  %s2 = inlined_call_operand.vmem [shape: f32[1,32], index: 2, kind: input, shape index: {}]
  %s3 = inlined_call_operand.vmem [shape: f32[288,64], index: 3, kind: input, shape index: {}]
  %s4 = inlined_call_operand.vmem [shape: f32[1,64], index: 4, kind: input, shape index: {}]
  %s5 = inlined_call_operand.hbm [shape: f32[2,256,64], index: 5, kind: output, shape index: {}]
  %s6 = sld [smem:[#allocation0]]
  $region53: #{white_feature_extractor.1} parent=0
    _
  %s8 = ssub.s32 1, %s6
  %s9 = scalar_select 0, %s8, %s6
  $region1: #{white_feature_extractor.1} parent=0
    #allocation4 [shape = 'u8[262144]{0}', space=vmem, size = 0x40000, scoped, tag = 'output window, operand 0']
    #allocation5 [shape = 's32[2]{0}', space=sflag, size = 0x8, scoped, tag = 'scoped memory for white_feature_extractor.1']
    %10 = vsyncpa [#allocation5], 0
    %s11 = scalar_lea.sflag [#allocation5], 1
    %12 = vsyncpa %s11, 0
    loop: start=0, step=1, limit=4
    $region2: #{white_feature_extractor.1} parent=1 // loop_pre_header
      _
    $region3: #{white_feature_extractor.1} parent=1 // loop_header
      %s14 = sphi 0, %s18
      %p15 = scmp.ge.s32.totalorder %s14, 4
      %s24 = sphi 0, %s26
      %s27 = sphi 0, %s24
      %s28 = sphi 0, %s27
      %s44 = sphi 0, %s28
      %s48 = sphi 0, %s48
      %s50 = sphi 0, %s48
      %s51 = sphi 0, %s50
      %s65 = sphi 0, %s51
      %s69 = sphi 0, %s69
      %s71 = sphi 0, %s69
      %s72 = sphi 0, %s71
      %s86 = sphi 0, %s72
      %s90 = sphi 0, %s90
      %s92 = sphi 0, %s90
      %s93 = sphi 0, %s92
      %s107 = sphi 0, %s93
      %s111 = sphi 0, %s111
      %s113 = sphi 0, %s111
      %s114 = sphi 0, %s113
      %s128 = sphi 0, %s114
      %s134 = sphi 0, %s136
      %s137 = sphi 0, %s134
      %s138 = sphi 0, %s137
      %s154 = sphi 0, %s138
    $region4: #{white_feature_extractor.1} parent=1 // loop_header_branch
      %17 = sbr.rel (%p15) target = $region8
    $region5: #{white_feature_extractor.1} parent=1 // loop_body
      %s19 = ssub.s32 %s14, 1
      %s20 = ssub.s32 %s14, 2
      %s21 = sadd.s32 %s14, 1
      %s22 = ssub.s32 %s14, %s21
      %p23 = scmp.eq.s32.totalorder %s22, 0
      %s25 = sadd.s32 %s24, 1
      %s26 = scalar_select %p23, %s24, %s25
      %p29 = pneg %p23
      %p30 = scmp.eq.s32.totalorder %s14, 1
      %p31 = por %p29, %p30
      %p32 = scmp.ne.s32.totalorder %s24, %s27
      %p33 = scmp.eq.s32.totalorder %s14, 0
      %p34 = por %p32, %p33
      %p35 = scmp.ne.s32.totalorder %s24, %s27
      %p36 = scmp.eq.s32.totalorder %s19, 1
      %p37 = por %p35, %p36
      %p38 = scmp.ne.s32.totalorder %s27, %s28
      %p39 = scmp.eq.s32.totalorder %s19, 0
      %p40 = por %p38, %p39
      %p41 = scmp.ne.s32.totalorder %s27, %s28
      %p42 = scmp.eq.s32.totalorder %s20, 1
      %p43 = por %p41, %p42
      %p45 = scmp.ne.s32.totalorder %s28, %s44
      %p46 = scmp.eq.s32.totalorder %s20, 0
      %p47 = por %p45, %p46
      %s49 = sadd.s32 %s48, 1
      %p52 = scmp.eq.s32.totalorder %s14, 1
      %p53 = scmp.ne.s32.totalorder %s48, %s50
      %p54 = scmp.eq.s32.totalorder %s14, 0
      %p55 = por %p53, %p54
      %p56 = scmp.ne.s32.totalorder %s48, %s50
      %p57 = scmp.eq.s32.totalorder %s19, 1
      %p58 = por %p56, %p57
      %p59 = scmp.ne.s32.totalorder %s50, %s51
      %p60 = scmp.eq.s32.totalorder %s19, 0
      %p61 = por %p59, %p60
      %p62 = scmp.ne.s32.totalorder %s50, %s51
      %p63 = scmp.eq.s32.totalorder %s20, 1
      %p64 = por %p62, %p63
      %p66 = scmp.ne.s32.totalorder %s51, %s65
      %p67 = scmp.eq.s32.totalorder %s20, 0
      %p68 = por %p66, %p67
      %s70 = sadd.s32 %s69, 1
      %p73 = scmp.eq.s32.totalorder %s14, 1
      %p74 = scmp.ne.s32.totalorder %s69, %s71
      %p75 = scmp.eq.s32.totalorder %s14, 0
      %p76 = por %p74, %p75
      %p77 = scmp.ne.s32.totalorder %s69, %s71
      %p78 = scmp.eq.s32.totalorder %s19, 1
      %p79 = por %p77, %p78
      %p80 = scmp.ne.s32.totalorder %s71, %s72
      %p81 = scmp.eq.s32.totalorder %s19, 0
      %p82 = por %p80, %p81
      %p83 = scmp.ne.s32.totalorder %s71, %s72
      %p84 = scmp.eq.s32.totalorder %s20, 1
      %p85 = por %p83, %p84
      %p87 = scmp.ne.s32.totalorder %s72, %s86
      %p88 = scmp.eq.s32.totalorder %s20, 0
      %p89 = por %p87, %p88
      %s91 = sadd.s32 %s90, 1
      %p94 = scmp.eq.s32.totalorder %s14, 1
      %p95 = scmp.ne.s32.totalorder %s90, %s92
      %p96 = scmp.eq.s32.totalorder %s14, 0
      %p97 = por %p95, %p96
      %p98 = scmp.ne.s32.totalorder %s90, %s92
      %p99 = scmp.eq.s32.totalorder %s19, 1
      %p100 = por %p98, %p99
      %p101 = scmp.ne.s32.totalorder %s92, %s93
      %p102 = scmp.eq.s32.totalorder %s19, 0
      %p103 = por %p101, %p102
      %p104 = scmp.ne.s32.totalorder %s92, %s93
      %p105 = scmp.eq.s32.totalorder %s20, 1
      %p106 = por %p104, %p105
      %p108 = scmp.ne.s32.totalorder %s93, %s107
      %p109 = scmp.eq.s32.totalorder %s20, 0
      %p110 = por %p108, %p109
      %s112 = sadd.s32 %s111, 1
      %p115 = scmp.eq.s32.totalorder %s14, 1
      %p116 = scmp.ne.s32.totalorder %s111, %s113
      %p117 = scmp.eq.s32.totalorder %s14, 0
      %p118 = por %p116, %p117
      %p119 = scmp.ne.s32.totalorder %s111, %s113
      %p120 = scmp.eq.s32.totalorder %s19, 1
      %p121 = por %p119, %p120
      %p122 = scmp.ne.s32.totalorder %s113, %s114
      %p123 = scmp.eq.s32.totalorder %s19, 0
      %p124 = por %p122, %p123
      %p125 = scmp.ne.s32.totalorder %s113, %s114
      %p126 = scmp.eq.s32.totalorder %s20, 1
      %p127 = por %p125, %p126
      %p129 = scmp.ne.s32.totalorder %s114, %s128
      %p130 = scmp.eq.s32.totalorder %s20, 0
      %p131 = por %p129, %p130
      %s132 = ssub.s32 %s14, %s21
      %p133 = scmp.eq.s32.totalorder %s132, 0
      %s135 = sadd.s32 %s134, 1
      %s136 = scalar_select %p133, %s134, %s135
      %p139 = pneg %p133
      %p140 = scmp.eq.s32.totalorder %s14, 1
      %p141 = por %p139, %p140
      %p142 = scmp.ne.s32.totalorder %s134, %s137
      %p143 = scmp.eq.s32.totalorder %s14, 0
      %p144 = por %p142, %p143
      %p145 = scmp.ne.s32.totalorder %s134, %s137
      %p146 = scmp.eq.s32.totalorder %s19, 1
      %p147 = por %p145, %p146
      %p148 = scmp.ne.s32.totalorder %s137, %s138
      %p149 = scmp.eq.s32.totalorder %s19, 0
      %p150 = por %p148, %p149
      %p151 = scmp.ne.s32.totalorder %s137, %s138
      %p152 = scmp.eq.s32.totalorder %s20, 1
      %p153 = por %p151, %p152
      %p155 = scmp.ne.s32.totalorder %s138, %s154
      %p156 = scmp.eq.s32.totalorder %s20, 0
      %p157 = por %p155, %p156
      %p158 = scmp.le.s32.totalorder 1, %s14
      %p159 = scmp.lt.s32.totalorder %s14, 3
      %p160 = pnand %p158, %p159
      %p161 = pneg %p160
      // Predicated region
      $region9: #{white_feature_extractor.1} parent=5 // pred_check
        _
      $region10: #{white_feature_extractor.1} parent=5 // pred_check_branch
        %163 = sbr.rel (%p160) target = $region12
      $region11: #{white_feature_extractor.1} parent=5 // pred_region
        %s164 = ssub.s32 %s14, 1
        // Predicated region
        $region13: #{white_feature_extractor.1} parent=11 // pred_check
          %p165 = pneg %p61
        $region14: #{white_feature_extractor.1} parent=11 // pred_check_branch
          %167 = sbr.rel (%p165) target = $region16
        $region15: #{white_feature_extractor.1} parent=11 // pred_region
          _
        $region16: #{white_feature_extractor.1} parent=11 // pred_fallthru
          _
        // Predicated region
        $region17: #{white_feature_extractor.1} parent=11 // pred_check
          %p168 = pneg %p82
        $region18: #{white_feature_extractor.1} parent=11 // pred_check_branch
          %170 = sbr.rel (%p168) target = $region20
        $region19: #{white_feature_extractor.1} parent=11 // pred_region
          _
        $region20: #{white_feature_extractor.1} parent=11 // pred_fallthru
          _
        // Predicated region
        $region21: #{white_feature_extractor.1} parent=11 // pred_check
          %p171 = pneg %p103
        $region22: #{white_feature_extractor.1} parent=11 // pred_check_branch
          %173 = sbr.rel (%p171) target = $region24
        $region23: #{white_feature_extractor.1} parent=11 // pred_region
          _
        $region24: #{white_feature_extractor.1} parent=11 // pred_fallthru
          _
        // Predicated region
        $region25: #{white_feature_extractor.1} parent=11 // pred_check
          %p174 = pneg %p124
        $region26: #{white_feature_extractor.1} parent=11 // pred_check_branch
          %176 = sbr.rel (%p174) target = $region28
        $region27: #{white_feature_extractor.1} parent=11 // pred_region
          _
        $region28: #{white_feature_extractor.1} parent=11 // pred_fallthru
          _
      $region12: #{white_feature_extractor.1} parent=5 // pred_fallthru
        _
      %p177 = scmp.lt.s32.totalorder %s14, 2
      // Predicated region
      $region29: #{white_feature_extractor.1} parent=5 // pred_check
        %p178 = pneg %p177
      $region30: #{white_feature_extractor.1} parent=5 // pred_check_branch
        %180 = sbr.rel (%p178) target = $region32
      $region31: #{white_feature_extractor.1} parent=5 // pred_region
        // Predicated region
        $region33: #{white_feature_extractor.1} parent=31 // pred_check
          %p181 = pneg %p34
        $region34: #{white_feature_extractor.1} parent=31 // pred_check_branch
          %183 = sbr.rel (%p181) target = $region36
        $region35: #{white_feature_extractor.1} parent=31 // pred_region
          %p184 = scmp.lt.s32.totalorder %s14, 1
          %s185 = scalar_select %p184, %s14, 1
          %s186 = smul.addr %s185, 8
          %s187 = sadd.s32 2, %s186
          %s188 = smul.addr %s187, 8
          %s189 = scalar_lea.vmem %s0, %s188
        $region36: #{white_feature_extractor.1} parent=31 // pred_fallthru
          _
      $region32: #{white_feature_extractor.1} parent=5 // pred_fallthru
        _
      %p190 = scmp.le.s32.totalorder 1, %s14
      %p191 = scmp.lt.s32.totalorder %s14, 3
      %p192 = pnand %p190, %p191
      %p193 = pneg %p192
      // Predicated region
      $region37: #{white_feature_extractor.1} parent=5 // pred_check
        _
      $region38: #{white_feature_extractor.1} parent=5 // pred_check_branch
        %195 = sbr.rel (%p192) target = $region40
      $region39: #{white_feature_extractor.1} parent=5 // pred_region
        %s196 = ssub.s32 %s14, 1
        %p197 = scmp.lt.s32.totalorder %s19, 1
        %s198 = scalar_select %p197, %s19, 1
        %s199 = smul.addr %s198, 8
        %s200 = sadd.s32 2, %s199
        %s201 = smul.addr %s200, 8
        %s202 = scalar_lea.vmem %s0, %s201
        %p203 = pneg %p40
        %p204 = pneg %p37
        %p205 = pneg %p61
        %p206 = pneg %p58
        %p207 = pneg %p82
        %p208 = pneg %p79
        %p209 = pneg %p103
        %p210 = pneg %p100
        %p211 = pneg %p124
        %p212 = pneg %p121
        %p213 = pneg %p150
        %p214 = pneg %p147
        %s215 = sand.u32 %s137, 1
        %s216 = scalar_lea.sflag [#allocation5], %s215
        %s217 = sand.u32 %s137, 1
        %s218 = smul.addr %s217, 256
        %s219 = scalar_lea.vmem [#allocation4], %s218
        %p220 = scmp.lt.s32.totalorder %s19, 1
        %s221 = scalar_select %p220, %s19, 1
        %s222 = smul.addr %s221, 8
        %s223 = sadd.s32 2, %s222
        %s224 = smul.addr %s223, 8
        %s225 = scalar_lea.vmem %s0, %s224
        %vm226 = vcmask 139264
        %227 = vst.msk [vmem:[#allocation2] sm:$0x1] %vm226, 0.0
        %228 = vst.msk [vmem:[#allocation2 + $0x11] sm:$0x1] %vm226, 0.0
        %vm229 = vcmask 7168
        %230 = vst.msk [vmem:[#allocation2] sm:$0xff] %vm229, 0.0
        %231 = vst.msk [vmem:[#allocation2 + $0x8] sm:$0xff] %vm229, 0.0
        %vm232 = vcmask 1024
        %233 = vst.msk [vmem:[#allocation2 + $0x10] sm:$0x3] %vm232, 0.0
        %vm234 = vcmask 146568
        %235 = vst.msk [vmem:[#allocation2] sm:$0xff] %vm234, 0.0
        %236 = vst.msk [vmem:[#allocation2 + $0x8] sm:$0xff] %vm234, 0.0
        %vm237 = vcmask 140424
        %238 = vst.msk [vmem:[#allocation2 + $0x10] sm:$0x3] %vm237, 0.0
        %vm239 = vcmask 261120
        %240 = vst.msk [vmem:[#allocation3] sm:$0xff] %vm239, 0.0
        %241 = vst.msk [vmem:[#allocation3 + $0x8] sm:$0xff] %vm239, 0.0
        %vm242 = vcmask 254976
        %243 = vst.msk [vmem:[#allocation3 + $0x10] sm:$0x3] %vm242, 0.0
        %s244 = scalar_lea.vmem [#allocation3], 408
        %245 = vst.msk [vmem:[%s244] sm:$0xff] %vm239, 0.0
        %246 = vst.msk [vmem:[%s244 + $0x8] sm:$0xff] %vm239, 0.0
        %247 = vst.msk [vmem:[%s244 + $0x10] sm:$0x3] %vm242, 0.0
        %vm248 = vcmask 253952
        %249 = vst.msk [vmem:[#allocation3] sm:$0x1] %vm248, 0.0
        %250 = vst.msk [vmem:[#allocation3 + $0x18] sm:$0x1] %vm248, 0.0
        %251 = vst.msk [vmem:[#allocation3 + $0x30] sm:$0x1] %vm248, 0.0
        %252 = vst.msk [vmem:[#allocation3 + $0x48] sm:$0x1] %vm248, 0.0
        %253 = vst.msk [vmem:[#allocation3 + $0x60] sm:$0x1] %vm248, 0.0
        %254 = vst.msk [vmem:[#allocation3 + $0x78] sm:$0x1] %vm248, 0.0
        %255 = vst.msk [vmem:[#allocation3 + $0x90] sm:$0x1] %vm248, 0.0
        %256 = vst.msk [vmem:[#allocation3 + $0xa8] sm:$0x1] %vm248, 0.0
        %257 = vst.msk [vmem:[#allocation3 + $0xc0] sm:$0x1] %vm248, 0.0
        %258 = vst.msk [vmem:[#allocation3 + $0xd8] sm:$0x1] %vm248, 0.0
        %259 = vst.msk [vmem:[#allocation3 + $0xf0] sm:$0x1] %vm248, 0.0
        %260 = vst.msk [vmem:[#allocation3 + $0x108] sm:$0x1] %vm248, 0.0
        %261 = vst.msk [vmem:[#allocation3 + $0x120] sm:$0x1] %vm248, 0.0
        %262 = vst.msk [vmem:[#allocation3 + $0x138] sm:$0x1] %vm248, 0.0
        %263 = vst.msk [vmem:[#allocation3 + $0x150] sm:$0x1] %vm248, 0.0
        %264 = vst.msk [vmem:[#allocation3 + $0x168] sm:$0x1] %vm248, 0.0
        %265 = vst.msk [vmem:[#allocation3 + $0x180] sm:$0x1] %vm248, 0.0
        %266 = vst.msk [vmem:[#allocation3 + $0x198] sm:$0x1] %vm248, 0.0
        %267 = vst.msk [vmem:[#allocation3 + $0x11] sm:$0x1] %vm248, 0.0
        %268 = vst.msk [vmem:[#allocation3 + $0x29] sm:$0x1] %vm248, 0.0
        %269 = vst.msk [vmem:[#allocation3 + $0x41] sm:$0x1] %vm248, 0.0
        %270 = vst.msk [vmem:[#allocation3 + $0x59] sm:$0x1] %vm248, 0.0
        %271 = vst.msk [vmem:[#allocation3 + $0x71] sm:$0x1] %vm248, 0.0
        %272 = vst.msk [vmem:[#allocation3 + $0x89] sm:$0x1] %vm248, 0.0
        %273 = vst.msk [vmem:[#allocation3 + $0xa1] sm:$0x1] %vm248, 0.0
        %274 = vst.msk [vmem:[#allocation3 + $0xb9] sm:$0x1] %vm248, 0.0
        %275 = vst.msk [vmem:[#allocation3 + $0xd1] sm:$0x1] %vm248, 0.0
        %276 = vst.msk [vmem:[#allocation3 + $0xe9] sm:$0x1] %vm248, 0.0
        %277 = vst.msk [vmem:[#allocation3 + $0x101] sm:$0x1] %vm248, 0.0
        %278 = vst.msk [vmem:[#allocation3 + $0x119] sm:$0x1] %vm248, 0.0
        %279 = vst.msk [vmem:[#allocation3 + $0x131] sm:$0x1] %vm248, 0.0
        %280 = vst.msk [vmem:[#allocation3 + $0x149] sm:$0x1] %vm248, 0.0
        %281 = vst.msk [vmem:[#allocation3 + $0x161] sm:$0x1] %vm248, 0.0
        %282 = vst.msk [vmem:[#allocation3 + $0x179] sm:$0x1] %vm248, 0.0
        %283 = vst.msk [vmem:[#allocation3 + $0x191] sm:$0x1] %vm248, 0.0
        %284 = vst.msk [vmem:[#allocation3 + $0x1a9] sm:$0x1] %vm248, 0.0
        %v285 = vld [vmem:[%s225] sm:$0xff]
        %v286 = vld [vmem:[%s225 + $0x8] sm:$0xff]
        %289 = vrot.lane.b32.xlu0 %v285, 1
        %v290 = vpop.permute.xlu0 %289
        %291 = vrot.lane.b32.xlu0 %v286, 1
        %v292 = vpop.permute.xlu0 %291
        %vm295 = vcmask 138248
        %296 = vst.msk [vmem:[#allocation2 + $0x1] sm:$0xff] %vm295, %v290
        %297 = vst.msk [vmem:[#allocation2 + $0x9] sm:$0xff] %vm295, %v292
        %v298 = vld [vmem:[#allocation2] sm:$0xff]
        %v299 = vld [vmem:[#allocation2 + $0x8] sm:$0xff]
        %v300 = vld [vmem:[#allocation2 + $0x10] sm:$0x3]
        %v301 = vld [vmem:[%s1] sm:$0xff]
        %v302 = vld [vmem:[%s1 + $0x8] sm:$0x1]
        %v303 = vlaneseq
        %v304 = vshrl.u32 %v303, 7
        %v305 = vsub.s32 0, %v304
        %v306 = vrot.slane %v298, %v305
        %308 = vbcast.lane.b32.xlu0 %v306, 256
        %v309 = vpop.permute.xlu0 %308
        %s311 = sor.u32 256, 8
        %312 = vbcast.lane.b32.xlu0 %v306, %s311
        %v313 = vpop.permute.xlu0 %312
        %v314 = vlaneseq
        %v315 = vshrl.u32 %v314, 7
        %v316 = vsub.s32 1, %v315
        %v317 = vrot.slane %v298, %v316
        %319 = vbcast.lane.b32.xlu0 %v317, 256
        %v320 = vpop.permute.xlu0 %319
        %s322 = sor.u32 256, 8
        %323 = vbcast.lane.b32.xlu0 %v317, %s322
        %v324 = vpop.permute.xlu0 %323
        %v325 = vlaneseq
        %v326 = vshrl.u32 %v325, 7
        %v327 = vsub.s32 2, %v326
        %v328 = vrot.slane %v298, %v327
        %330 = vbcast.lane.b32.xlu0 %v328, 256
        %v331 = vpop.permute.xlu0 %330
        %s333 = sor.u32 256, 8
        %334 = vbcast.lane.b32.xlu0 %v328, %s333
        %v335 = vpop.permute.xlu0 %334
        %v336 = vlaneseq
        %v337 = vshrl.u32 %v336, 7
        %v338 = vsub.s32 3, %v337
        %v339 = vrot.slane %v298, %v338
        %341 = vbcast.lane.b32.xlu0 %v339, 256
        %v342 = vpop.permute.xlu0 %341
        %s344 = sor.u32 256, 8
        %345 = vbcast.lane.b32.xlu0 %v339, %s344
        %v346 = vpop.permute.xlu0 %345
        %v347 = vlaneseq
        %v348 = vshrl.u32 %v347, 7
        %v349 = vsub.s32 4, %v348
        %v350 = vrot.slane %v298, %v349
        %352 = vbcast.lane.b32.xlu0 %v350, 256
        %v353 = vpop.permute.xlu0 %352
        %s355 = sor.u32 256, 8
        %356 = vbcast.lane.b32.xlu0 %v350, %s355
        %v357 = vpop.permute.xlu0 %356
        %v358 = vlaneseq
        %v359 = vshrl.u32 %v358, 7
        %v360 = vsub.s32 5, %v359
        %v361 = vrot.slane %v298, %v360
        %363 = vbcast.lane.b32.xlu0 %v361, 256
        %v364 = vpop.permute.xlu0 %363
        %s366 = sor.u32 256, 8
        %367 = vbcast.lane.b32.xlu0 %v361, %s366
        %v368 = vpop.permute.xlu0 %367
        %v369 = vlaneseq
        %v370 = vshrl.u32 %v369, 7
        %v371 = vsub.s32 6, %v370
        %v372 = vrot.slane %v298, %v371
        %374 = vbcast.lane.b32.xlu0 %v372, 256
        %v375 = vpop.permute.xlu0 %374
        %s377 = sor.u32 256, 8
        %378 = vbcast.lane.b32.xlu0 %v372, %s377
        %v379 = vpop.permute.xlu0 %378
        %v380 = vlaneseq
        %v381 = vshrl.u32 %v380, 7
        %v382 = vsub.s32 7, %v381
        %v383 = vrot.slane %v298, %v382
        %385 = vbcast.lane.b32.xlu0 %v383, 256
        %v386 = vpop.permute.xlu0 %385
        %s388 = sor.u32 256, 8
        %389 = vbcast.lane.b32.xlu0 %v383, %s388
        %v390 = vpop.permute.xlu0 %389
        %v391 = vlaneseq
        %v392 = vshrl.u32 %v391, 7
        %v393 = vsub.s32 0, %v392
        %v394 = vrot.slane %v299, %v393
        %396 = vbcast.lane.b32.xlu0 %v394, 256
        %v397 = vpop.permute.xlu0 %396
        %s399 = sor.u32 256, 8
        %400 = vbcast.lane.b32.xlu0 %v394, %s399
        %v401 = vpop.permute.xlu0 %400
        %v402 = vlaneseq
        %v403 = vshrl.u32 %v402, 7
        %v404 = vsub.s32 1, %v403
        %v405 = vrot.slane %v299, %v404
        %407 = vbcast.lane.b32.xlu0 %v405, 256
        %v408 = vpop.permute.xlu0 %407
        %s410 = sor.u32 256, 8
        %411 = vbcast.lane.b32.xlu0 %v405, %s410
        %v412 = vpop.permute.xlu0 %411
        %v413 = vlaneseq
        %v414 = vshrl.u32 %v413, 7
        %v415 = vsub.s32 2, %v414
        %v416 = vrot.slane %v299, %v415
        %418 = vbcast.lane.b32.xlu0 %v416, 256
        %v419 = vpop.permute.xlu0 %418
        %s421 = sor.u32 256, 8
        %422 = vbcast.lane.b32.xlu0 %v416, %s421
        %v423 = vpop.permute.xlu0 %422
        %v424 = vlaneseq
        %v425 = vshrl.u32 %v424, 7
        %v426 = vsub.s32 3, %v425
        %v427 = vrot.slane %v299, %v426
        %429 = vbcast.lane.b32.xlu0 %v427, 256
        %v430 = vpop.permute.xlu0 %429
        %s432 = sor.u32 256, 8
        %433 = vbcast.lane.b32.xlu0 %v427, %s432
        %v434 = vpop.permute.xlu0 %433
        %v435 = vlaneseq
        %v436 = vshrl.u32 %v435, 7
        %v437 = vsub.s32 4, %v436
        %v438 = vrot.slane %v299, %v437
        %440 = vbcast.lane.b32.xlu0 %v438, 256
        %v441 = vpop.permute.xlu0 %440
        %s443 = sor.u32 256, 8
        %444 = vbcast.lane.b32.xlu0 %v438, %s443
        %v445 = vpop.permute.xlu0 %444
        %v446 = vlaneseq
        %v447 = vshrl.u32 %v446, 7
        %v448 = vsub.s32 5, %v447
        %v449 = vrot.slane %v299, %v448
        %451 = vbcast.lane.b32.xlu0 %v449, 256
        %v452 = vpop.permute.xlu0 %451
        %s454 = sor.u32 256, 8
        %455 = vbcast.lane.b32.xlu0 %v449, %s454
        %v456 = vpop.permute.xlu0 %455
        %v457 = vlaneseq
        %v458 = vshrl.u32 %v457, 7
        %v459 = vsub.s32 6, %v458
        %v460 = vrot.slane %v299, %v459
        %462 = vbcast.lane.b32.xlu0 %v460, 256
        %v463 = vpop.permute.xlu0 %462
        %s465 = sor.u32 256, 8
        %466 = vbcast.lane.b32.xlu0 %v460, %s465
        %v467 = vpop.permute.xlu0 %466
        %v468 = vlaneseq
        %v469 = vshrl.u32 %v468, 7
        %v470 = vsub.s32 7, %v469
        %v471 = vrot.slane %v299, %v470
        %473 = vbcast.lane.b32.xlu0 %v471, 256
        %v474 = vpop.permute.xlu0 %473
        %s476 = sor.u32 256, 8
        %477 = vbcast.lane.b32.xlu0 %v471, %s476
        %v478 = vpop.permute.xlu0 %477
        %v479 = vlaneseq
        %v480 = vshrl.u32 %v479, 7
        %v481 = vsub.s32 0, %v480
        %v482 = vrot.slane %v301, %v481
        %v483 = vmul.f32 %v309, %v482
        %v484 = vmul.f32 %v313, %v482
        %v485 = vmul.f32 %v320, %v482
        %v486 = vmul.f32 %v324, %v482
        %v487 = vmul.f32 %v331, %v482
        %v488 = vmul.f32 %v335, %v482
        %v489 = vmul.f32 %v342, %v482
        %v490 = vmul.f32 %v346, %v482
        %v491 = vmul.f32 %v353, %v482
        %v492 = vmul.f32 %v357, %v482
        %v493 = vmul.f32 %v364, %v482
        %v494 = vmul.f32 %v368, %v482
        %v495 = vmul.f32 %v375, %v482
        %v496 = vmul.f32 %v379, %v482
        %v497 = vmul.f32 %v386, %v482
        %v498 = vmul.f32 %v390, %v482
        %v499 = vmul.f32 %v397, %v482
        %v500 = vmul.f32 %v401, %v482
        %v501 = vmul.f32 %v408, %v482
        %v502 = vmul.f32 %v412, %v482
        %v503 = vmul.f32 %v419, %v482
        %v504 = vmul.f32 %v423, %v482
        %v505 = vmul.f32 %v430, %v482
        %v506 = vmul.f32 %v434, %v482
        %v507 = vmul.f32 %v441, %v482
        %v508 = vmul.f32 %v445, %v482
        %v509 = vmul.f32 %v452, %v482
        %v510 = vmul.f32 %v456, %v482
        %v511 = vmul.f32 %v463, %v482
        %v512 = vmul.f32 %v467, %v482
        %v513 = vmul.f32 %v474, %v482
        %v514 = vmul.f32 %v478, %v482
        %v515 = vadd.f32 %v483, 0.0
        %v516 = vadd.f32 %v484, 0.0
        %v517 = vadd.f32 %v485, 0.0
        %v518 = vadd.f32 %v486, 0.0
        %v519 = vadd.f32 %v487, 0.0
        %v520 = vadd.f32 %v488, 0.0
        %v521 = vadd.f32 %v489, 0.0
        %v522 = vadd.f32 %v490, 0.0
        %v523 = vadd.f32 %v491, 0.0
        %v524 = vadd.f32 %v492, 0.0
        %v525 = vadd.f32 %v493, 0.0
        %v526 = vadd.f32 %v494, 0.0
        %v527 = vadd.f32 %v495, 0.0
        %v528 = vadd.f32 %v496, 0.0
        %v529 = vadd.f32 %v497, 0.0
        %v530 = vadd.f32 %v498, 0.0
        %v531 = vadd.f32 %v499, 0.0
        %v532 = vadd.f32 %v500, 0.0
        %v533 = vadd.f32 %v501, 0.0
        %v534 = vadd.f32 %v502, 0.0
        %v535 = vadd.f32 %v503, 0.0
        %v536 = vadd.f32 %v504, 0.0
        %v537 = vadd.f32 %v505, 0.0
        %v538 = vadd.f32 %v506, 0.0
        %v539 = vadd.f32 %v507, 0.0
        %v540 = vadd.f32 %v508, 0.0
        %v541 = vadd.f32 %v509, 0.0
        %v542 = vadd.f32 %v510, 0.0
        %v543 = vadd.f32 %v511, 0.0
        %v544 = vadd.f32 %v512, 0.0
        %v545 = vadd.f32 %v513, 0.0
        %v546 = vadd.f32 %v514, 0.0
        %s548 = sor.u32 256, 1
        %549 = vbcast.lane.b32.xlu0 %v306, %s548
        %v550 = vpop.permute.xlu0 %549
        %s552 = sor.u32 256, 9
        %553 = vbcast.lane.b32.xlu0 %v306, %s552
        %v554 = vpop.permute.xlu0 %553
        %s556 = sor.u32 256, 1
        %557 = vbcast.lane.b32.xlu0 %v317, %s556
        %v558 = vpop.permute.xlu0 %557
        %s560 = sor.u32 256, 9
        %561 = vbcast.lane.b32.xlu0 %v317, %s560
        %v562 = vpop.permute.xlu0 %561
        %s564 = sor.u32 256, 1
        %565 = vbcast.lane.b32.xlu0 %v328, %s564
        %v566 = vpop.permute.xlu0 %565
        %s568 = sor.u32 256, 9
        %569 = vbcast.lane.b32.xlu0 %v328, %s568
        %v570 = vpop.permute.xlu0 %569
        %s572 = sor.u32 256, 1
        %573 = vbcast.lane.b32.xlu0 %v339, %s572
        %v574 = vpop.permute.xlu0 %573
        %s576 = sor.u32 256, 9
        %577 = vbcast.lane.b32.xlu0 %v339, %s576
        %v578 = vpop.permute.xlu0 %577
        %s580 = sor.u32 256, 1
        %581 = vbcast.lane.b32.xlu0 %v350, %s580
        %v582 = vpop.permute.xlu0 %581
        %s584 = sor.u32 256, 9
        %585 = vbcast.lane.b32.xlu0 %v350, %s584
        %v586 = vpop.permute.xlu0 %585
        %s588 = sor.u32 256, 1
        %589 = vbcast.lane.b32.xlu0 %v361, %s588
        %v590 = vpop.permute.xlu0 %589
        %s592 = sor.u32 256, 9
        %593 = vbcast.lane.b32.xlu0 %v361, %s592
        %v594 = vpop.permute.xlu0 %593
        %s596 = sor.u32 256, 1
        %597 = vbcast.lane.b32.xlu0 %v372, %s596
        %v598 = vpop.permute.xlu0 %597
        %s600 = sor.u32 256, 9
        %601 = vbcast.lane.b32.xlu0 %v372, %s600
        %v602 = vpop.permute.xlu0 %601
        %s604 = sor.u32 256, 1
        %605 = vbcast.lane.b32.xlu0 %v383, %s604
        %v606 = vpop.permute.xlu0 %605
        %s608 = sor.u32 256, 9
        %609 = vbcast.lane.b32.xlu0 %v383, %s608
        %v610 = vpop.permute.xlu0 %609
        %s612 = sor.u32 256, 1
        %613 = vbcast.lane.b32.xlu0 %v394, %s612
        %v614 = vpop.permute.xlu0 %613
        %s616 = sor.u32 256, 9
        %617 = vbcast.lane.b32.xlu0 %v394, %s616
        %v618 = vpop.permute.xlu0 %617
        %s620 = sor.u32 256, 1
        %621 = vbcast.lane.b32.xlu0 %v405, %s620
        %v622 = vpop.permute.xlu0 %621
        %s624 = sor.u32 256, 9
        %625 = vbcast.lane.b32.xlu0 %v405, %s624
        %v626 = vpop.permute.xlu0 %625
        %s628 = sor.u32 256, 1
        %629 = vbcast.lane.b32.xlu0 %v416, %s628
        %v630 = vpop.permute.xlu0 %629
        %s632 = sor.u32 256, 9
        %633 = vbcast.lane.b32.xlu0 %v416, %s632
        %v634 = vpop.permute.xlu0 %633
        %s636 = sor.u32 256, 1
        %637 = vbcast.lane.b32.xlu0 %v427, %s636
        %v638 = vpop.permute.xlu0 %637
        %s640 = sor.u32 256, 9
        %641 = vbcast.lane.b32.xlu0 %v427, %s640
        %v642 = vpop.permute.xlu0 %641
        %s644 = sor.u32 256, 1
        %645 = vbcast.lane.b32.xlu0 %v438, %s644
        %v646 = vpop.permute.xlu0 %645
        %s648 = sor.u32 256, 9
        %649 = vbcast.lane.b32.xlu0 %v438, %s648
        %v650 = vpop.permute.xlu0 %649
        %s652 = sor.u32 256, 1
        %653 = vbcast.lane.b32.xlu0 %v449, %s652
        %v654 = vpop.permute.xlu0 %653
        %s656 = sor.u32 256, 9
        %657 = vbcast.lane.b32.xlu0 %v449, %s656
        %v658 = vpop.permute.xlu0 %657
        %s660 = sor.u32 256, 1
        %661 = vbcast.lane.b32.xlu0 %v460, %s660
        %v662 = vpop.permute.xlu0 %661
        %s664 = sor.u32 256, 9
        %665 = vbcast.lane.b32.xlu0 %v460, %s664
        %v666 = vpop.permute.xlu0 %665
        %s668 = sor.u32 256, 1
        %669 = vbcast.lane.b32.xlu0 %v471, %s668
        %v670 = vpop.permute.xlu0 %669
        %s672 = sor.u32 256, 9
        %673 = vbcast.lane.b32.xlu0 %v471, %s672
        %v674 = vpop.permute.xlu0 %673
        %v675 = vlaneseq
        %v676 = vshrl.u32 %v675, 7
        %v677 = vsub.s32 1, %v676
        %v678 = vrot.slane %v301, %v677
        %v679 = vmul.f32 %v550, %v678
        %v680 = vmul.f32 %v554, %v678
        %v681 = vmul.f32 %v558, %v678
        %v682 = vmul.f32 %v562, %v678
        %v683 = vmul.f32 %v566, %v678
        %v684 = vmul.f32 %v570, %v678
        %v685 = vmul.f32 %v574, %v678
        %v686 = vmul.f32 %v578, %v678
        %v687 = vmul.f32 %v582, %v678
        %v688 = vmul.f32 %v586, %v678
        %v689 = vmul.f32 %v590, %v678
        %v690 = vmul.f32 %v594, %v678
        %v691 = vmul.f32 %v598, %v678
        %v692 = vmul.f32 %v602, %v678
        %v693 = vmul.f32 %v606, %v678
        %v694 = vmul.f32 %v610, %v678
        %v695 = vmul.f32 %v614, %v678
        %v696 = vmul.f32 %v618, %v678
        %v697 = vmul.f32 %v622, %v678
        %v698 = vmul.f32 %v626, %v678
        %v699 = vmul.f32 %v630, %v678
        %v700 = vmul.f32 %v634, %v678
        %v701 = vmul.f32 %v638, %v678
        %v702 = vmul.f32 %v642, %v678
        %v703 = vmul.f32 %v646, %v678
        %v704 = vmul.f32 %v650, %v678
        %v705 = vmul.f32 %v654, %v678
        %v706 = vmul.f32 %v658, %v678
        %v707 = vmul.f32 %v662, %v678
        %v708 = vmul.f32 %v666, %v678
        %v709 = vmul.f32 %v670, %v678
        %v710 = vmul.f32 %v674, %v678
        %v711 = vadd.f32 %v515, %v679
        %v712 = vadd.f32 %v516, %v680
        %v713 = vadd.f32 %v517, %v681
        %v714 = vadd.f32 %v518, %v682
        %v715 = vadd.f32 %v519, %v683
        %v716 = vadd.f32 %v520, %v684
        %v717 = vadd.f32 %v521, %v685
        %v718 = vadd.f32 %v522, %v686
        %v719 = vadd.f32 %v523, %v687
        %v720 = vadd.f32 %v524, %v688
        %v721 = vadd.f32 %v525, %v689
        %v722 = vadd.f32 %v526, %v690
        %v723 = vadd.f32 %v527, %v691
        %v724 = vadd.f32 %v528, %v692
        %v725 = vadd.f32 %v529, %v693
        %v726 = vadd.f32 %v530, %v694
        %v727 = vadd.f32 %v531, %v695
        %v728 = vadd.f32 %v532, %v696
        %v729 = vadd.f32 %v533, %v697
        %v730 = vadd.f32 %v534, %v698
        %v731 = vadd.f32 %v535, %v699
        %v732 = vadd.f32 %v536, %v700
        %v733 = vadd.f32 %v537, %v701
        %v734 = vadd.f32 %v538, %v702
        %v735 = vadd.f32 %v539, %v703
        %v736 = vadd.f32 %v540, %v704
        %v737 = vadd.f32 %v541, %v705
        %v738 = vadd.f32 %v542, %v706
        %v739 = vadd.f32 %v543, %v707
        %v740 = vadd.f32 %v544, %v708
        %v741 = vadd.f32 %v545, %v709
        %v742 = vadd.f32 %v546, %v710
        %s744 = sor.u32 256, 2
        %745 = vbcast.lane.b32.xlu0 %v306, %s744
        %v746 = vpop.permute.xlu0 %745
        %s748 = sor.u32 256, 10
        %749 = vbcast.lane.b32.xlu0 %v306, %s748
        %v750 = vpop.permute.xlu0 %749
        %s752 = sor.u32 256, 2
        %753 = vbcast.lane.b32.xlu0 %v317, %s752
        %v754 = vpop.permute.xlu0 %753
        %s756 = sor.u32 256, 10
        %757 = vbcast.lane.b32.xlu0 %v317, %s756
        %v758 = vpop.permute.xlu0 %757
        %s760 = sor.u32 256, 2
        %761 = vbcast.lane.b32.xlu0 %v328, %s760
        %v762 = vpop.permute.xlu0 %761
        %s764 = sor.u32 256, 10
        %765 = vbcast.lane.b32.xlu0 %v328, %s764
        %v766 = vpop.permute.xlu0 %765
        %s768 = sor.u32 256, 2
        %769 = vbcast.lane.b32.xlu0 %v339, %s768
        %v770 = vpop.permute.xlu0 %769
        %s772 = sor.u32 256, 10
        %773 = vbcast.lane.b32.xlu0 %v339, %s772
        %v774 = vpop.permute.xlu0 %773
        %s776 = sor.u32 256, 2
        %777 = vbcast.lane.b32.xlu0 %v350, %s776
        %v778 = vpop.permute.xlu0 %777
        %s780 = sor.u32 256, 10
        %781 = vbcast.lane.b32.xlu0 %v350, %s780
        %v782 = vpop.permute.xlu0 %781
        %s784 = sor.u32 256, 2
        %785 = vbcast.lane.b32.xlu0 %v361, %s784
        %v786 = vpop.permute.xlu0 %785
        %s788 = sor.u32 256, 10
        %789 = vbcast.lane.b32.xlu0 %v361, %s788
        %v790 = vpop.permute.xlu0 %789
        %s792 = sor.u32 256, 2
        %793 = vbcast.lane.b32.xlu0 %v372, %s792
        %v794 = vpop.permute.xlu0 %793
        %s796 = sor.u32 256, 10
        %797 = vbcast.lane.b32.xlu0 %v372, %s796
        %v798 = vpop.permute.xlu0 %797
        %s800 = sor.u32 256, 2
        %801 = vbcast.lane.b32.xlu0 %v383, %s800
        %v802 = vpop.permute.xlu0 %801
        %s804 = sor.u32 256, 10
        %805 = vbcast.lane.b32.xlu0 %v383, %s804
        %v806 = vpop.permute.xlu0 %805
        %s808 = sor.u32 256, 2
        %809 = vbcast.lane.b32.xlu0 %v394, %s808
        %v810 = vpop.permute.xlu0 %809
        %s812 = sor.u32 256, 10
        %813 = vbcast.lane.b32.xlu0 %v394, %s812
        %v814 = vpop.permute.xlu0 %813
        %s816 = sor.u32 256, 2
        %817 = vbcast.lane.b32.xlu0 %v405, %s816
        %v818 = vpop.permute.xlu0 %817
        %s820 = sor.u32 256, 10
        %821 = vbcast.lane.b32.xlu0 %v405, %s820
        %v822 = vpop.permute.xlu0 %821
        %s824 = sor.u32 256, 2
        %825 = vbcast.lane.b32.xlu0 %v416, %s824
        %v826 = vpop.permute.xlu0 %825
        %s828 = sor.u32 256, 10
        %829 = vbcast.lane.b32.xlu0 %v416, %s828
        %v830 = vpop.permute.xlu0 %829
        %s832 = sor.u32 256, 2
        %833 = vbcast.lane.b32.xlu0 %v427, %s832
        %v834 = vpop.permute.xlu0 %833
        %s836 = sor.u32 256, 10
        %837 = vbcast.lane.b32.xlu0 %v427, %s836
        %v838 = vpop.permute.xlu0 %837
        %s840 = sor.u32 256, 2
        %841 = vbcast.lane.b32.xlu0 %v438, %s840
        %v842 = vpop.permute.xlu0 %841
        %s844 = sor.u32 256, 10
        %845 = vbcast.lane.b32.xlu0 %v438, %s844
        %v846 = vpop.permute.xlu0 %845
        %s848 = sor.u32 256, 2
        %849 = vbcast.lane.b32.xlu0 %v449, %s848
        %v850 = vpop.permute.xlu0 %849
        %s852 = sor.u32 256, 10
        %853 = vbcast.lane.b32.xlu0 %v449, %s852
        %v854 = vpop.permute.xlu0 %853
        %s856 = sor.u32 256, 2
        %857 = vbcast.lane.b32.xlu0 %v460, %s856
        %v858 = vpop.permute.xlu0 %857
        %s860 = sor.u32 256, 10
        %861 = vbcast.lane.b32.xlu0 %v460, %s860
        %v862 = vpop.permute.xlu0 %861
        %s864 = sor.u32 256, 2
        %865 = vbcast.lane.b32.xlu0 %v471, %s864
        %v866 = vpop.permute.xlu0 %865
        %s868 = sor.u32 256, 10
        %869 = vbcast.lane.b32.xlu0 %v471, %s868
        %v870 = vpop.permute.xlu0 %869
        %v871 = vlaneseq
        %v872 = vshrl.u32 %v871, 7
        %v873 = vsub.s32 2, %v872
        %v874 = vrot.slane %v301, %v873
        %v875 = vmul.f32 %v746, %v874
        %v876 = vmul.f32 %v750, %v874
        %v877 = vmul.f32 %v754, %v874
        %v878 = vmul.f32 %v758, %v874
        %v879 = vmul.f32 %v762, %v874
        %v880 = vmul.f32 %v766, %v874
        %v881 = vmul.f32 %v770, %v874
        %v882 = vmul.f32 %v774, %v874
        %v883 = vmul.f32 %v778, %v874
        %v884 = vmul.f32 %v782, %v874
        %v885 = vmul.f32 %v786, %v874
        %v886 = vmul.f32 %v790, %v874
        %v887 = vmul.f32 %v794, %v874
        %v888 = vmul.f32 %v798, %v874
        %v889 = vmul.f32 %v802, %v874
        %v890 = vmul.f32 %v806, %v874
        %v891 = vmul.f32 %v810, %v874
        %v892 = vmul.f32 %v814, %v874
        %v893 = vmul.f32 %v818, %v874
        %v894 = vmul.f32 %v822, %v874
        %v895 = vmul.f32 %v826, %v874
        %v896 = vmul.f32 %v830, %v874
        %v897 = vmul.f32 %v834, %v874
        %v898 = vmul.f32 %v838, %v874
        %v899 = vmul.f32 %v842, %v874
        %v900 = vmul.f32 %v846, %v874
        %v901 = vmul.f32 %v850, %v874
        %v902 = vmul.f32 %v854, %v874
        %v903 = vmul.f32 %v858, %v874
        %v904 = vmul.f32 %v862, %v874
        %v905 = vmul.f32 %v866, %v874
        %v906 = vmul.f32 %v870, %v874
        %v907 = vadd.f32 %v711, %v875
        %v908 = vadd.f32 %v712, %v876
        %v909 = vadd.f32 %v713, %v877
        %v910 = vadd.f32 %v714, %v878
        %v911 = vadd.f32 %v715, %v879
        %v912 = vadd.f32 %v716, %v880
        %v913 = vadd.f32 %v717, %v881
        %v914 = vadd.f32 %v718, %v882
        %v915 = vadd.f32 %v719, %v883
        %v916 = vadd.f32 %v720, %v884
        %v917 = vadd.f32 %v721, %v885
        %v918 = vadd.f32 %v722, %v886
        %v919 = vadd.f32 %v723, %v887
        %v920 = vadd.f32 %v724, %v888
        %v921 = vadd.f32 %v725, %v889
        %v922 = vadd.f32 %v726, %v890
        %v923 = vadd.f32 %v727, %v891
        %v924 = vadd.f32 %v728, %v892
        %v925 = vadd.f32 %v729, %v893
        %v926 = vadd.f32 %v730, %v894
        %v927 = vadd.f32 %v731, %v895
        %v928 = vadd.f32 %v732, %v896
        %v929 = vadd.f32 %v733, %v897
        %v930 = vadd.f32 %v734, %v898
        %v931 = vadd.f32 %v735, %v899
        %v932 = vadd.f32 %v736, %v900
        %v933 = vadd.f32 %v737, %v901
        %v934 = vadd.f32 %v738, %v902
        %v935 = vadd.f32 %v739, %v903
        %v936 = vadd.f32 %v740, %v904
        %v937 = vadd.f32 %v741, %v905
        %v938 = vadd.f32 %v742, %v906
        %v939 = vlaneseq
        %v940 = vshrl.u32 %v939, 7
        %v941 = vsub.s32 0, %v940
        %v942 = vrot.slane %v300, %v941
        %944 = vbcast.lane.b32.xlu0 %v942, 256
        %v945 = vpop.permute.xlu0 %944
        %s947 = sor.u32 256, 8
        %948 = vbcast.lane.b32.xlu0 %v942, %s947
        %v949 = vpop.permute.xlu0 %948
        %v950 = vlaneseq
        %v951 = vshrl.u32 %v950, 7
        %v952 = vsub.s32 3, %v951
        %v953 = vrot.slane %v301, %v952
        %v954 = vmul.f32 %v320, %v953
        %v955 = vmul.f32 %v324, %v953
        %v956 = vmul.f32 %v331, %v953
        %v957 = vmul.f32 %v335, %v953
        %v958 = vmul.f32 %v342, %v953
        %v959 = vmul.f32 %v346, %v953
        %v960 = vmul.f32 %v353, %v953
        %v961 = vmul.f32 %v357, %v953
        %v962 = vmul.f32 %v364, %v953
        %v963 = vmul.f32 %v368, %v953
        %v964 = vmul.f32 %v375, %v953
        %v965 = vmul.f32 %v379, %v953
        %v966 = vmul.f32 %v386, %v953
        %v967 = vmul.f32 %v390, %v953
        %v968 = vmul.f32 %v397, %v953
        %v969 = vmul.f32 %v401, %v953
        %v970 = vmul.f32 %v408, %v953
        %v971 = vmul.f32 %v412, %v953
        %v972 = vmul.f32 %v419, %v953
        %v973 = vmul.f32 %v423, %v953
        %v974 = vmul.f32 %v430, %v953
        %v975 = vmul.f32 %v434, %v953
        %v976 = vmul.f32 %v441, %v953
        %v977 = vmul.f32 %v445, %v953
        %v978 = vmul.f32 %v452, %v953
        %v979 = vmul.f32 %v456, %v953
        %v980 = vmul.f32 %v463, %v953
        %v981 = vmul.f32 %v467, %v953
        %v982 = vmul.f32 %v474, %v953
        %v983 = vmul.f32 %v478, %v953
        %v984 = vmul.f32 %v945, %v953
        %v985 = vmul.f32 %v949, %v953
        %v986 = vadd.f32 %v907, %v954
        %v987 = vadd.f32 %v908, %v955
        %v988 = vadd.f32 %v909, %v956
        %v989 = vadd.f32 %v910, %v957
        %v990 = vadd.f32 %v911, %v958
        %v991 = vadd.f32 %v912, %v959
        %v992 = vadd.f32 %v913, %v960
        %v993 = vadd.f32 %v914, %v961
        %v994 = vadd.f32 %v915, %v962
        %v995 = vadd.f32 %v916, %v963
        %v996 = vadd.f32 %v917, %v964
        %v997 = vadd.f32 %v918, %v965
        %v998 = vadd.f32 %v919, %v966
        %v999 = vadd.f32 %v920, %v967
        %v1000 = vadd.f32 %v921, %v968
        %v1001 = vadd.f32 %v922, %v969
        %v1002 = vadd.f32 %v923, %v970
        %v1003 = vadd.f32 %v924, %v971
        %v1004 = vadd.f32 %v925, %v972
        %v1005 = vadd.f32 %v926, %v973
        %v1006 = vadd.f32 %v927, %v974
        %v1007 = vadd.f32 %v928, %v975
        %v1008 = vadd.f32 %v929, %v976
        %v1009 = vadd.f32 %v930, %v977
        %v1010 = vadd.f32 %v931, %v978
        %v1011 = vadd.f32 %v932, %v979
        %v1012 = vadd.f32 %v933, %v980
        %v1013 = vadd.f32 %v934, %v981
        %v1014 = vadd.f32 %v935, %v982
        %v1015 = vadd.f32 %v936, %v983
        %v1016 = vadd.f32 %v937, %v984
        %v1017 = vadd.f32 %v938, %v985
        %s1019 = sor.u32 256, 1
        %1020 = vbcast.lane.b32.xlu0 %v942, %s1019
        %v1021 = vpop.permute.xlu0 %1020
        %s1023 = sor.u32 256, 9
        %1024 = vbcast.lane.b32.xlu0 %v942, %s1023
        %v1025 = vpop.permute.xlu0 %1024
        %v1026 = vlaneseq
        %v1027 = vshrl.u32 %v1026, 7
        %v1028 = vsub.s32 4, %v1027
        %v1029 = vrot.slane %v301, %v1028
        %v1030 = vmul.f32 %v558, %v1029
        %v1031 = vmul.f32 %v562, %v1029
        %v1032 = vmul.f32 %v566, %v1029
        %v1033 = vmul.f32 %v570, %v1029
        %v1034 = vmul.f32 %v574, %v1029
        %v1035 = vmul.f32 %v578, %v1029
        %v1036 = vmul.f32 %v582, %v1029
        %v1037 = vmul.f32 %v586, %v1029
        %v1038 = vmul.f32 %v590, %v1029
        %v1039 = vmul.f32 %v594, %v1029
        %v1040 = vmul.f32 %v598, %v1029
        %v1041 = vmul.f32 %v602, %v1029
        %v1042 = vmul.f32 %v606, %v1029
        %v1043 = vmul.f32 %v610, %v1029
        %v1044 = vmul.f32 %v614, %v1029
        %v1045 = vmul.f32 %v618, %v1029
        %v1046 = vmul.f32 %v622, %v1029
        %v1047 = vmul.f32 %v626, %v1029
        %v1048 = vmul.f32 %v630, %v1029
        %v1049 = vmul.f32 %v634, %v1029
        %v1050 = vmul.f32 %v638, %v1029
        %v1051 = vmul.f32 %v642, %v1029
        %v1052 = vmul.f32 %v646, %v1029
        %v1053 = vmul.f32 %v650, %v1029
        %v1054 = vmul.f32 %v654, %v1029
        %v1055 = vmul.f32 %v658, %v1029
        %v1056 = vmul.f32 %v662, %v1029
        %v1057 = vmul.f32 %v666, %v1029
        %v1058 = vmul.f32 %v670, %v1029
        %v1059 = vmul.f32 %v674, %v1029
        %v1060 = vmul.f32 %v1021, %v1029
        %v1061 = vmul.f32 %v1025, %v1029
        %v1062 = vadd.f32 %v986, %v1030
        %v1063 = vadd.f32 %v987, %v1031
        %v1064 = vadd.f32 %v988, %v1032
        %v1065 = vadd.f32 %v989, %v1033
        %v1066 = vadd.f32 %v990, %v1034
        %v1067 = vadd.f32 %v991, %v1035
        %v1068 = vadd.f32 %v992, %v1036
        %v1069 = vadd.f32 %v993, %v1037
        %v1070 = vadd.f32 %v994, %v1038
        %v1071 = vadd.f32 %v995, %v1039
        %v1072 = vadd.f32 %v996, %v1040
        %v1073 = vadd.f32 %v997, %v1041
        %v1074 = vadd.f32 %v998, %v1042
        %v1075 = vadd.f32 %v999, %v1043
        %v1076 = vadd.f32 %v1000, %v1044
        %v1077 = vadd.f32 %v1001, %v1045
        %v1078 = vadd.f32 %v1002, %v1046
        %v1079 = vadd.f32 %v1003, %v1047
        %v1080 = vadd.f32 %v1004, %v1048
        %v1081 = vadd.f32 %v1005, %v1049
        %v1082 = vadd.f32 %v1006, %v1050
        %v1083 = vadd.f32 %v1007, %v1051
        %v1084 = vadd.f32 %v1008, %v1052
        %v1085 = vadd.f32 %v1009, %v1053
        %v1086 = vadd.f32 %v1010, %v1054
        %v1087 = vadd.f32 %v1011, %v1055
        %v1088 = vadd.f32 %v1012, %v1056
        %v1089 = vadd.f32 %v1013, %v1057
        %v1090 = vadd.f32 %v1014, %v1058
        %v1091 = vadd.f32 %v1015, %v1059
        %v1092 = vadd.f32 %v1016, %v1060
        %v1093 = vadd.f32 %v1017, %v1061
        %s1095 = sor.u32 256, 2
        %1096 = vbcast.lane.b32.xlu0 %v942, %s1095
        %v1097 = vpop.permute.xlu0 %1096
        %s1099 = sor.u32 256, 10
        %1100 = vbcast.lane.b32.xlu0 %v942, %s1099
        %v1101 = vpop.permute.xlu0 %1100
        %v1102 = vlaneseq
        %v1103 = vshrl.u32 %v1102, 7
        %v1104 = vsub.s32 5, %v1103
        %v1105 = vrot.slane %v301, %v1104
        %v1106 = vmul.f32 %v754, %v1105
        %v1107 = vmul.f32 %v758, %v1105
        %v1108 = vmul.f32 %v762, %v1105
        %v1109 = vmul.f32 %v766, %v1105
        %v1110 = vmul.f32 %v770, %v1105
        %v1111 = vmul.f32 %v774, %v1105
        %v1112 = vmul.f32 %v778, %v1105
        %v1113 = vmul.f32 %v782, %v1105
        %v1114 = vmul.f32 %v786, %v1105
        %v1115 = vmul.f32 %v790, %v1105
        %v1116 = vmul.f32 %v794, %v1105
        %v1117 = vmul.f32 %v798, %v1105
        %v1118 = vmul.f32 %v802, %v1105
        %v1119 = vmul.f32 %v806, %v1105
        %v1120 = vmul.f32 %v810, %v1105
        %v1121 = vmul.f32 %v814, %v1105
        %v1122 = vmul.f32 %v818, %v1105
        %v1123 = vmul.f32 %v822, %v1105
        %v1124 = vmul.f32 %v826, %v1105
        %v1125 = vmul.f32 %v830, %v1105
        %v1126 = vmul.f32 %v834, %v1105
        %v1127 = vmul.f32 %v838, %v1105
        %v1128 = vmul.f32 %v842, %v1105
        %v1129 = vmul.f32 %v846, %v1105
        %v1130 = vmul.f32 %v850, %v1105
        %v1131 = vmul.f32 %v854, %v1105
        %v1132 = vmul.f32 %v858, %v1105
        %v1133 = vmul.f32 %v862, %v1105
        %v1134 = vmul.f32 %v866, %v1105
        %v1135 = vmul.f32 %v870, %v1105
        %v1136 = vmul.f32 %v1097, %v1105
        %v1137 = vmul.f32 %v1101, %v1105
        %v1138 = vadd.f32 %v1062, %v1106
        %v1139 = vadd.f32 %v1063, %v1107
        %v1140 = vadd.f32 %v1064, %v1108
        %v1141 = vadd.f32 %v1065, %v1109
        %v1142 = vadd.f32 %v1066, %v1110
        %v1143 = vadd.f32 %v1067, %v1111
        %v1144 = vadd.f32 %v1068, %v1112
        %v1145 = vadd.f32 %v1069, %v1113
        %v1146 = vadd.f32 %v1070, %v1114
        %v1147 = vadd.f32 %v1071, %v1115
        %v1148 = vadd.f32 %v1072, %v1116
        %v1149 = vadd.f32 %v1073, %v1117
        %v1150 = vadd.f32 %v1074, %v1118
        %v1151 = vadd.f32 %v1075, %v1119
        %v1152 = vadd.f32 %v1076, %v1120
        %v1153 = vadd.f32 %v1077, %v1121
        %v1154 = vadd.f32 %v1078, %v1122
        %v1155 = vadd.f32 %v1079, %v1123
        %v1156 = vadd.f32 %v1080, %v1124
        %v1157 = vadd.f32 %v1081, %v1125
        %v1158 = vadd.f32 %v1082, %v1126
        %v1159 = vadd.f32 %v1083, %v1127
        %v1160 = vadd.f32 %v1084, %v1128
        %v1161 = vadd.f32 %v1085, %v1129
        %v1162 = vadd.f32 %v1086, %v1130
        %v1163 = vadd.f32 %v1087, %v1131
        %v1164 = vadd.f32 %v1088, %v1132
        %v1165 = vadd.f32 %v1089, %v1133
        %v1166 = vadd.f32 %v1090, %v1134
        %v1167 = vadd.f32 %v1091, %v1135
        %v1168 = vadd.f32 %v1092, %v1136
        %v1169 = vadd.f32 %v1093, %v1137
        %v1170 = vlaneseq
        %v1171 = vshrl.u32 %v1170, 7
        %v1172 = vsub.s32 1, %v1171
        %v1173 = vrot.slane %v300, %v1172
        %1175 = vbcast.lane.b32.xlu0 %v1173, 256
        %v1176 = vpop.permute.xlu0 %1175
        %s1178 = sor.u32 256, 8
        %1179 = vbcast.lane.b32.xlu0 %v1173, %s1178
        %v1180 = vpop.permute.xlu0 %1179
        %v1181 = vlaneseq
        %v1182 = vshrl.u32 %v1181, 7
        %v1183 = vsub.s32 6, %v1182
        %v1184 = vrot.slane %v301, %v1183
        %v1185 = vmul.f32 %v331, %v1184
        %v1186 = vmul.f32 %v335, %v1184
        %v1187 = vmul.f32 %v342, %v1184
        %v1188 = vmul.f32 %v346, %v1184
        %v1189 = vmul.f32 %v353, %v1184
        %v1190 = vmul.f32 %v357, %v1184
        %v1191 = vmul.f32 %v364, %v1184
        %v1192 = vmul.f32 %v368, %v1184
        %v1193 = vmul.f32 %v375, %v1184
        %v1194 = vmul.f32 %v379, %v1184
        %v1195 = vmul.f32 %v386, %v1184
        %v1196 = vmul.f32 %v390, %v1184
        %v1197 = vmul.f32 %v397, %v1184
        %v1198 = vmul.f32 %v401, %v1184
        %v1199 = vmul.f32 %v408, %v1184
        %v1200 = vmul.f32 %v412, %v1184
        %v1201 = vmul.f32 %v419, %v1184
        %v1202 = vmul.f32 %v423, %v1184
        %v1203 = vmul.f32 %v430, %v1184
        %v1204 = vmul.f32 %v434, %v1184
        %v1205 = vmul.f32 %v441, %v1184
        %v1206 = vmul.f32 %v445, %v1184
        %v1207 = vmul.f32 %v452, %v1184
        %v1208 = vmul.f32 %v456, %v1184
        %v1209 = vmul.f32 %v463, %v1184
        %v1210 = vmul.f32 %v467, %v1184
        %v1211 = vmul.f32 %v474, %v1184
        %v1212 = vmul.f32 %v478, %v1184
        %v1213 = vmul.f32 %v945, %v1184
        %v1214 = vmul.f32 %v949, %v1184
        %v1215 = vmul.f32 %v1176, %v1184
        %v1216 = vmul.f32 %v1180, %v1184
        %v1217 = vadd.f32 %v1138, %v1185
        %v1218 = vadd.f32 %v1139, %v1186
        %v1219 = vadd.f32 %v1140, %v1187
        %v1220 = vadd.f32 %v1141, %v1188
        %v1221 = vadd.f32 %v1142, %v1189
        %v1222 = vadd.f32 %v1143, %v1190
        %v1223 = vadd.f32 %v1144, %v1191
        %v1224 = vadd.f32 %v1145, %v1192
        %v1225 = vadd.f32 %v1146, %v1193
        %v1226 = vadd.f32 %v1147, %v1194
        %v1227 = vadd.f32 %v1148, %v1195
        %v1228 = vadd.f32 %v1149, %v1196
        %v1229 = vadd.f32 %v1150, %v1197
        %v1230 = vadd.f32 %v1151, %v1198
        %v1231 = vadd.f32 %v1152, %v1199
        %v1232 = vadd.f32 %v1153, %v1200
        %v1233 = vadd.f32 %v1154, %v1201
        %v1234 = vadd.f32 %v1155, %v1202
        %v1235 = vadd.f32 %v1156, %v1203
        %v1236 = vadd.f32 %v1157, %v1204
        %v1237 = vadd.f32 %v1158, %v1205
        %v1238 = vadd.f32 %v1159, %v1206
        %v1239 = vadd.f32 %v1160, %v1207
        %v1240 = vadd.f32 %v1161, %v1208
        %v1241 = vadd.f32 %v1162, %v1209
        %v1242 = vadd.f32 %v1163, %v1210
        %v1243 = vadd.f32 %v1164, %v1211
        %v1244 = vadd.f32 %v1165, %v1212
        %v1245 = vadd.f32 %v1166, %v1213
        %v1246 = vadd.f32 %v1167, %v1214
        %v1247 = vadd.f32 %v1168, %v1215
        %v1248 = vadd.f32 %v1169, %v1216
        %s1250 = sor.u32 256, 1
        %1251 = vbcast.lane.b32.xlu0 %v1173, %s1250
        %v1252 = vpop.permute.xlu0 %1251
        %s1254 = sor.u32 256, 9
        %1255 = vbcast.lane.b32.xlu0 %v1173, %s1254
        %v1256 = vpop.permute.xlu0 %1255
        %v1257 = vlaneseq
        %v1258 = vshrl.u32 %v1257, 7
        %v1259 = vsub.s32 7, %v1258
        %v1260 = vrot.slane %v301, %v1259
        %v1261 = vmul.f32 %v566, %v1260
        %v1262 = vmul.f32 %v570, %v1260
        %v1263 = vmul.f32 %v574, %v1260
        %v1264 = vmul.f32 %v578, %v1260
        %v1265 = vmul.f32 %v582, %v1260
        %v1266 = vmul.f32 %v586, %v1260
        %v1267 = vmul.f32 %v590, %v1260
        %v1268 = vmul.f32 %v594, %v1260
        %v1269 = vmul.f32 %v598, %v1260
        %v1270 = vmul.f32 %v602, %v1260
        %v1271 = vmul.f32 %v606, %v1260
        %v1272 = vmul.f32 %v610, %v1260
        %v1273 = vmul.f32 %v614, %v1260
        %v1274 = vmul.f32 %v618, %v1260
        %v1275 = vmul.f32 %v622, %v1260
        %v1276 = vmul.f32 %v626, %v1260
        %v1277 = vmul.f32 %v630, %v1260
        %v1278 = vmul.f32 %v634, %v1260
        %v1279 = vmul.f32 %v638, %v1260
        %v1280 = vmul.f32 %v642, %v1260
        %v1281 = vmul.f32 %v646, %v1260
        %v1282 = vmul.f32 %v650, %v1260
        %v1283 = vmul.f32 %v654, %v1260
        %v1284 = vmul.f32 %v658, %v1260
        %v1285 = vmul.f32 %v662, %v1260
        %v1286 = vmul.f32 %v666, %v1260
        %v1287 = vmul.f32 %v670, %v1260
        %v1288 = vmul.f32 %v674, %v1260
        %v1289 = vmul.f32 %v1021, %v1260
        %v1290 = vmul.f32 %v1025, %v1260
        %v1291 = vmul.f32 %v1252, %v1260
        %v1292 = vmul.f32 %v1256, %v1260
        %v1293 = vadd.f32 %v1217, %v1261
        %v1294 = vadd.f32 %v1218, %v1262
        %v1295 = vadd.f32 %v1219, %v1263
        %v1296 = vadd.f32 %v1220, %v1264
        %v1297 = vadd.f32 %v1221, %v1265
        %v1298 = vadd.f32 %v1222, %v1266
        %v1299 = vadd.f32 %v1223, %v1267
        %v1300 = vadd.f32 %v1224, %v1268
        %v1301 = vadd.f32 %v1225, %v1269
        %v1302 = vadd.f32 %v1226, %v1270
        %v1303 = vadd.f32 %v1227, %v1271
        %v1304 = vadd.f32 %v1228, %v1272
        %v1305 = vadd.f32 %v1229, %v1273
        %v1306 = vadd.f32 %v1230, %v1274
        %v1307 = vadd.f32 %v1231, %v1275
        %v1308 = vadd.f32 %v1232, %v1276
        %v1309 = vadd.f32 %v1233, %v1277
        %v1310 = vadd.f32 %v1234, %v1278
        %v1311 = vadd.f32 %v1235, %v1279
        %v1312 = vadd.f32 %v1236, %v1280
        %v1313 = vadd.f32 %v1237, %v1281
        %v1314 = vadd.f32 %v1238, %v1282
        %v1315 = vadd.f32 %v1239, %v1283
        %v1316 = vadd.f32 %v1240, %v1284
        %v1317 = vadd.f32 %v1241, %v1285
        %v1318 = vadd.f32 %v1242, %v1286
        %v1319 = vadd.f32 %v1243, %v1287
        %v1320 = vadd.f32 %v1244, %v1288
        %v1321 = vadd.f32 %v1245, %v1289
        %v1322 = vadd.f32 %v1246, %v1290
        %v1323 = vadd.f32 %v1247, %v1291
        %v1324 = vadd.f32 %v1248, %v1292
        %s1326 = sor.u32 256, 2
        %1327 = vbcast.lane.b32.xlu0 %v1173, %s1326
        %v1328 = vpop.permute.xlu0 %1327
        %s1330 = sor.u32 256, 10
        %1331 = vbcast.lane.b32.xlu0 %v1173, %s1330
        %v1332 = vpop.permute.xlu0 %1331
        %v1333 = vlaneseq
        %v1334 = vshrl.u32 %v1333, 7
        %v1335 = vsub.s32 0, %v1334
        %v1336 = vrot.slane %v302, %v1335
        %v1337 = vmul.f32 %v762, %v1336
        %v1338 = vmul.f32 %v766, %v1336
        %v1339 = vmul.f32 %v770, %v1336
        %v1340 = vmul.f32 %v774, %v1336
        %v1341 = vmul.f32 %v778, %v1336
        %v1342 = vmul.f32 %v782, %v1336
        %v1343 = vmul.f32 %v786, %v1336
        %v1344 = vmul.f32 %v790, %v1336
        %v1345 = vmul.f32 %v794, %v1336
        %v1346 = vmul.f32 %v798, %v1336
        %v1347 = vmul.f32 %v802, %v1336
        %v1348 = vmul.f32 %v806, %v1336
        %v1349 = vmul.f32 %v810, %v1336
        %v1350 = vmul.f32 %v814, %v1336
        %v1351 = vmul.f32 %v818, %v1336
        %v1352 = vmul.f32 %v822, %v1336
        %v1353 = vmul.f32 %v826, %v1336
        %v1354 = vmul.f32 %v830, %v1336
        %v1355 = vmul.f32 %v834, %v1336
        %v1356 = vmul.f32 %v838, %v1336
        %v1357 = vmul.f32 %v842, %v1336
        %v1358 = vmul.f32 %v846, %v1336
        %v1359 = vmul.f32 %v850, %v1336
        %v1360 = vmul.f32 %v854, %v1336
        %v1361 = vmul.f32 %v858, %v1336
        %v1362 = vmul.f32 %v862, %v1336
        %v1363 = vmul.f32 %v866, %v1336
        %v1364 = vmul.f32 %v870, %v1336
        %v1365 = vmul.f32 %v1097, %v1336
        %v1366 = vmul.f32 %v1101, %v1336
        %v1367 = vmul.f32 %v1328, %v1336
        %v1368 = vmul.f32 %v1332, %v1336
        %v1369 = vadd.f32 %v1293, %v1337
        %v1370 = vadd.f32 %v1294, %v1338
        %v1371 = vadd.f32 %v1295, %v1339
        %v1372 = vadd.f32 %v1296, %v1340
        %v1373 = vadd.f32 %v1297, %v1341
        %v1374 = vadd.f32 %v1298, %v1342
        %v1375 = vadd.f32 %v1299, %v1343
        %v1376 = vadd.f32 %v1300, %v1344
        %v1377 = vadd.f32 %v1301, %v1345
        %v1378 = vadd.f32 %v1302, %v1346
        %v1379 = vadd.f32 %v1303, %v1347
        %v1380 = vadd.f32 %v1304, %v1348
        %v1381 = vadd.f32 %v1305, %v1349
        %v1382 = vadd.f32 %v1306, %v1350
        %v1383 = vadd.f32 %v1307, %v1351
        %v1384 = vadd.f32 %v1308, %v1352
        %v1385 = vadd.f32 %v1309, %v1353
        %v1386 = vadd.f32 %v1310, %v1354
        %v1387 = vadd.f32 %v1311, %v1355
        %v1388 = vadd.f32 %v1312, %v1356
        %v1389 = vadd.f32 %v1313, %v1357
        %v1390 = vadd.f32 %v1314, %v1358
        %v1391 = vadd.f32 %v1315, %v1359
        %v1392 = vadd.f32 %v1316, %v1360
        %v1393 = vadd.f32 %v1317, %v1361
        %v1394 = vadd.f32 %v1318, %v1362
        %v1395 = vadd.f32 %v1319, %v1363
        %v1396 = vadd.f32 %v1320, %v1364
        %v1397 = vadd.f32 %v1321, %v1365
        %v1398 = vadd.f32 %v1322, %v1366
        %v1399 = vadd.f32 %v1323, %v1367
        %v1400 = vadd.f32 %v1324, %v1368
        %v1401 = vld [vmem:[%s2] sm:$0x1]
        %v1403 = vlaneseq
        %v1404 = vshrl.u32 %v1403, 7
        %v1405 = vsub.s32 0, %v1404
        %v1406 = vrot.slane %v1401, %v1405
        %v1408 = vadd.f32 %v1369, %v1406
        %v1409 = vadd.f32 %v1370, %v1406
        %v1410 = vadd.f32 %v1371, %v1406
        %v1411 = vadd.f32 %v1372, %v1406
        %v1412 = vadd.f32 %v1373, %v1406
        %v1413 = vadd.f32 %v1374, %v1406
        %v1414 = vadd.f32 %v1375, %v1406
        %v1415 = vadd.f32 %v1376, %v1406
        %v1416 = vadd.f32 %v1377, %v1406
        %v1417 = vadd.f32 %v1378, %v1406
        %v1418 = vadd.f32 %v1379, %v1406
        %v1419 = vadd.f32 %v1380, %v1406
        %v1420 = vadd.f32 %v1381, %v1406
        %v1421 = vadd.f32 %v1382, %v1406
        %v1422 = vadd.f32 %v1383, %v1406
        %v1423 = vadd.f32 %v1384, %v1406
        %v1424 = vadd.f32 %v1385, %v1406
        %v1425 = vadd.f32 %v1386, %v1406
        %v1426 = vadd.f32 %v1387, %v1406
        %v1427 = vadd.f32 %v1388, %v1406
        %v1428 = vadd.f32 %v1389, %v1406
        %v1429 = vadd.f32 %v1390, %v1406
        %v1430 = vadd.f32 %v1391, %v1406
        %v1431 = vadd.f32 %v1392, %v1406
        %v1432 = vadd.f32 %v1393, %v1406
        %v1433 = vadd.f32 %v1394, %v1406
        %v1434 = vadd.f32 %v1395, %v1406
        %v1435 = vadd.f32 %v1396, %v1406
        %v1436 = vadd.f32 %v1397, %v1406
        %v1437 = vadd.f32 %v1398, %v1406
        %v1438 = vadd.f32 %v1399, %v1406
        %v1439 = vadd.f32 %v1400, %v1406
        %v1440 = vmax.f32 %v1408, 0.0
        %v1441 = vmax.f32 %v1409, 0.0
        %v1442 = vmax.f32 %v1410, 0.0
        %v1443 = vmax.f32 %v1411, 0.0
        %v1444 = vmax.f32 %v1412, 0.0
        %v1445 = vmax.f32 %v1413, 0.0
        %v1446 = vmax.f32 %v1414, 0.0
        %v1447 = vmax.f32 %v1415, 0.0
        %v1448 = vmax.f32 %v1416, 0.0
        %v1449 = vmax.f32 %v1417, 0.0
        %v1450 = vmax.f32 %v1418, 0.0
        %v1451 = vmax.f32 %v1419, 0.0
        %v1452 = vmax.f32 %v1420, 0.0
        %v1453 = vmax.f32 %v1421, 0.0
        %v1454 = vmax.f32 %v1422, 0.0
        %v1455 = vmax.f32 %v1423, 0.0
        %v1456 = vmax.f32 %v1424, 0.0
        %v1457 = vmax.f32 %v1425, 0.0
        %v1458 = vmax.f32 %v1426, 0.0
        %v1459 = vmax.f32 %v1427, 0.0
        %v1460 = vmax.f32 %v1428, 0.0
        %v1461 = vmax.f32 %v1429, 0.0
        %v1462 = vmax.f32 %v1430, 0.0
        %v1463 = vmax.f32 %v1431, 0.0
        %v1464 = vmax.f32 %v1432, 0.0
        %v1465 = vmax.f32 %v1433, 0.0
        %v1466 = vmax.f32 %v1434, 0.0
        %v1467 = vmax.f32 %v1435, 0.0
        %v1468 = vmax.f32 %v1436, 0.0
        %v1469 = vmax.f32 %v1437, 0.0
        %v1470 = vmax.f32 %v1438, 0.0
        %v1471 = vmax.f32 %v1439, 0.0
        %s1472 = scalar_lea.vmem [#allocation3], 24
        %1473 = vst.msk [vmem:[%s1472 + $0x1] sm:$0xff] %vm239, %v1440
        %1474 = vst.msk [vmem:[%s1472 + $0x9] sm:$0xff] %vm239, %v1441
        %1475 = vst.msk [vmem:[%s1472 + $0x19] sm:$0xff] %vm239, %v1442
        %1476 = vst.msk [vmem:[%s1472 + $0x21] sm:$0xff] %vm239, %v1443
        %1477 = vst.msk [vmem:[%s1472 + $0x31] sm:$0xff] %vm239, %v1444
        %1478 = vst.msk [vmem:[%s1472 + $0x39] sm:$0xff] %vm239, %v1445
        %1479 = vst.msk [vmem:[%s1472 + $0x49] sm:$0xff] %vm239, %v1446
        %1480 = vst.msk [vmem:[%s1472 + $0x51] sm:$0xff] %vm239, %v1447
        %1481 = vst.msk [vmem:[%s1472 + $0x61] sm:$0xff] %vm239, %v1448
        %1482 = vst.msk [vmem:[%s1472 + $0x69] sm:$0xff] %vm239, %v1449
        %1483 = vst.msk [vmem:[%s1472 + $0x79] sm:$0xff] %vm239, %v1450
        %1484 = vst.msk [vmem:[%s1472 + $0x81] sm:$0xff] %vm239, %v1451
        %1485 = vst.msk [vmem:[%s1472 + $0x91] sm:$0xff] %vm239, %v1452
        %1486 = vst.msk [vmem:[%s1472 + $0x99] sm:$0xff] %vm239, %v1453
        %1487 = vst.msk [vmem:[%s1472 + $0xa9] sm:$0xff] %vm239, %v1454
        %1488 = vst.msk [vmem:[%s1472 + $0xb1] sm:$0xff] %vm239, %v1455
        %1489 = vst.msk [vmem:[%s1472 + $0xc1] sm:$0xff] %vm239, %v1456
        %1490 = vst.msk [vmem:[%s1472 + $0xc9] sm:$0xff] %vm239, %v1457
        %1491 = vst.msk [vmem:[%s1472 + $0xd9] sm:$0xff] %vm239, %v1458
        %1492 = vst.msk [vmem:[%s1472 + $0xe1] sm:$0xff] %vm239, %v1459
        %1493 = vst.msk [vmem:[%s1472 + $0xf1] sm:$0xff] %vm239, %v1460
        %1494 = vst.msk [vmem:[%s1472 + $0xf9] sm:$0xff] %vm239, %v1461
        %1495 = vst.msk [vmem:[%s1472 + $0x109] sm:$0xff] %vm239, %v1462
        %1496 = vst.msk [vmem:[%s1472 + $0x111] sm:$0xff] %vm239, %v1463
        %1497 = vst.msk [vmem:[%s1472 + $0x121] sm:$0xff] %vm239, %v1464
        %1498 = vst.msk [vmem:[%s1472 + $0x129] sm:$0xff] %vm239, %v1465
        %1499 = vst.msk [vmem:[%s1472 + $0x139] sm:$0xff] %vm239, %v1466
        %1500 = vst.msk [vmem:[%s1472 + $0x141] sm:$0xff] %vm239, %v1467
        %1501 = vst.msk [vmem:[%s1472 + $0x151] sm:$0xff] %vm239, %v1468
        %1502 = vst.msk [vmem:[%s1472 + $0x159] sm:$0xff] %vm239, %v1469
        %1503 = vst.msk [vmem:[%s1472 + $0x169] sm:$0xff] %vm239, %v1470
        %1504 = vst.msk [vmem:[%s1472 + $0x171] sm:$0xff] %vm239, %v1471
        %v1505 = vld [vmem:[#allocation3] sm:$0xff]
        %v1506 = vld [vmem:[#allocation3 + $0x8] sm:$0xff]
        %v1507 = vld [vmem:[#allocation3 + $0x18] sm:$0xff]
        %v1508 = vld [vmem:[#allocation3 + $0x20] sm:$0xff]
        %v1509 = vld [vmem:[#allocation3 + $0x30] sm:$0xff]
        %v1510 = vld [vmem:[#allocation3 + $0x38] sm:$0xff]
        %v1511 = vld [vmem:[#allocation3 + $0x48] sm:$0xff]
        %v1512 = vld [vmem:[#allocation3 + $0x50] sm:$0xff]
        %v1513 = vld [vmem:[#allocation3 + $0x60] sm:$0xff]
        %v1514 = vld [vmem:[#allocation3 + $0x68] sm:$0xff]
        %v1515 = vld [vmem:[#allocation3 + $0x78] sm:$0xff]
        %v1516 = vld [vmem:[#allocation3 + $0x80] sm:$0xff]
        %v1517 = vld [vmem:[#allocation3 + $0x90] sm:$0xff]
        %v1518 = vld [vmem:[#allocation3 + $0x98] sm:$0xff]
        %v1519 = vld [vmem:[#allocation3 + $0xa8] sm:$0xff]
        %v1520 = vld [vmem:[#allocation3 + $0xb0] sm:$0xff]
        %v1521 = vld [vmem:[#allocation3 + $0xc0] sm:$0xff]
        %v1522 = vld [vmem:[#allocation3 + $0xc8] sm:$0xff]
        %v1523 = vld [vmem:[#allocation3 + $0xd8] sm:$0xff]
        %v1524 = vld [vmem:[#allocation3 + $0xe0] sm:$0xff]
        %v1525 = vld [vmem:[#allocation3 + $0xf0] sm:$0xff]
        %v1526 = vld [vmem:[#allocation3 + $0xf8] sm:$0xff]
        %v1527 = vld [vmem:[#allocation3 + $0x108] sm:$0xff]
        %v1528 = vld [vmem:[#allocation3 + $0x110] sm:$0xff]
        %v1529 = vld [vmem:[#allocation3 + $0x120] sm:$0xff]
        %v1530 = vld [vmem:[#allocation3 + $0x128] sm:$0xff]
        %v1531 = vld [vmem:[#allocation3 + $0x138] sm:$0xff]
        %v1532 = vld [vmem:[#allocation3 + $0x140] sm:$0xff]
        %v1533 = vld [vmem:[#allocation3 + $0x150] sm:$0xff]
        %v1534 = vld [vmem:[#allocation3 + $0x158] sm:$0xff]
        %v1535 = vld [vmem:[#allocation3 + $0x168] sm:$0xff]
        %v1536 = vld [vmem:[#allocation3 + $0x170] sm:$0xff]
        %v1537 = vld [vmem:[#allocation3 + $0x1] sm:$0xff]
        %v1538 = vld [vmem:[#allocation3 + $0x9] sm:$0xff]
        %v1539 = vld [vmem:[#allocation3 + $0x19] sm:$0xff]
        %v1540 = vld [vmem:[#allocation3 + $0x21] sm:$0xff]
        %v1541 = vld [vmem:[#allocation3 + $0x31] sm:$0xff]
        %v1542 = vld [vmem:[#allocation3 + $0x39] sm:$0xff]
        %v1543 = vld [vmem:[#allocation3 + $0x49] sm:$0xff]
        %v1544 = vld [vmem:[#allocation3 + $0x51] sm:$0xff]
        %v1545 = vld [vmem:[#allocation3 + $0x61] sm:$0xff]
        %v1546 = vld [vmem:[#allocation3 + $0x69] sm:$0xff]
        %v1547 = vld [vmem:[#allocation3 + $0x79] sm:$0xff]
        %v1548 = vld [vmem:[#allocation3 + $0x81] sm:$0xff]
        %v1549 = vld [vmem:[#allocation3 + $0x91] sm:$0xff]
        %v1550 = vld [vmem:[#allocation3 + $0x99] sm:$0xff]
        %v1551 = vld [vmem:[#allocation3 + $0xa9] sm:$0xff]
        %v1552 = vld [vmem:[#allocation3 + $0xb1] sm:$0xff]
        %v1553 = vld [vmem:[#allocation3 + $0xc1] sm:$0xff]
        %v1554 = vld [vmem:[#allocation3 + $0xc9] sm:$0xff]
        %v1555 = vld [vmem:[#allocation3 + $0xd9] sm:$0xff]
        %v1556 = vld [vmem:[#allocation3 + $0xe1] sm:$0xff]
        %v1557 = vld [vmem:[#allocation3 + $0xf1] sm:$0xff]
        %v1558 = vld [vmem:[#allocation3 + $0xf9] sm:$0xff]
        %v1559 = vld [vmem:[#allocation3 + $0x109] sm:$0xff]
        %v1560 = vld [vmem:[#allocation3 + $0x111] sm:$0xff]
        %v1561 = vld [vmem:[#allocation3 + $0x121] sm:$0xff]
        %v1562 = vld [vmem:[#allocation3 + $0x129] sm:$0xff]
        %v1563 = vld [vmem:[#allocation3 + $0x139] sm:$0xff]
        %v1564 = vld [vmem:[#allocation3 + $0x141] sm:$0xff]
        %v1565 = vld [vmem:[#allocation3 + $0x151] sm:$0xff]
        %v1566 = vld [vmem:[#allocation3 + $0x159] sm:$0xff]
        %v1567 = vld [vmem:[#allocation3 + $0x169] sm:$0xff]
        %v1568 = vld [vmem:[#allocation3 + $0x171] sm:$0xff]
        %v1569 = vld [vmem:[#allocation3 + $0x2] sm:$0xff]
        %v1570 = vld [vmem:[#allocation3 + $0xa] sm:$0xff]
        %v1571 = vld [vmem:[#allocation3 + $0x1a] sm:$0xff]
        %v1572 = vld [vmem:[#allocation3 + $0x22] sm:$0xff]
        %v1573 = vld [vmem:[#allocation3 + $0x32] sm:$0xff]
        %v1574 = vld [vmem:[#allocation3 + $0x3a] sm:$0xff]
        %v1575 = vld [vmem:[#allocation3 + $0x4a] sm:$0xff]
        %v1576 = vld [vmem:[#allocation3 + $0x52] sm:$0xff]
        %v1577 = vld [vmem:[#allocation3 + $0x62] sm:$0xff]
        %v1578 = vld [vmem:[#allocation3 + $0x6a] sm:$0xff]
        %v1579 = vld [vmem:[#allocation3 + $0x7a] sm:$0xff]
        %v1580 = vld [vmem:[#allocation3 + $0x82] sm:$0xff]
        %v1581 = vld [vmem:[#allocation3 + $0x92] sm:$0xff]
        %v1582 = vld [vmem:[#allocation3 + $0x9a] sm:$0xff]
        %v1583 = vld [vmem:[#allocation3 + $0xaa] sm:$0xff]
        %v1584 = vld [vmem:[#allocation3 + $0xb2] sm:$0xff]
        %v1585 = vld [vmem:[#allocation3 + $0xc2] sm:$0xff]
        %v1586 = vld [vmem:[#allocation3 + $0xca] sm:$0xff]
        %v1587 = vld [vmem:[#allocation3 + $0xda] sm:$0xff]
        %v1588 = vld [vmem:[#allocation3 + $0xe2] sm:$0xff]
        %v1589 = vld [vmem:[#allocation3 + $0xf2] sm:$0xff]
        %v1590 = vld [vmem:[#allocation3 + $0xfa] sm:$0xff]
        %v1591 = vld [vmem:[#allocation3 + $0x10a] sm:$0xff]
        %v1592 = vld [vmem:[#allocation3 + $0x112] sm:$0xff]
        %v1593 = vld [vmem:[#allocation3 + $0x122] sm:$0xff]
        %v1594 = vld [vmem:[#allocation3 + $0x12a] sm:$0xff]
        %v1595 = vld [vmem:[#allocation3 + $0x13a] sm:$0xff]
        %v1596 = vld [vmem:[#allocation3 + $0x142] sm:$0xff]
        %v1597 = vld [vmem:[#allocation3 + $0x152] sm:$0xff]
        %v1598 = vld [vmem:[#allocation3 + $0x15a] sm:$0xff]
        %v1599 = vld [vmem:[#allocation3 + $0x16a] sm:$0xff]
        %v1600 = vld [vmem:[#allocation3 + $0x172] sm:$0xff]
        %v1601 = vld [vmem:[%s1472] sm:$0xff]
        %v1602 = vld [vmem:[%s1472 + $0x8] sm:$0xff]
        %v1603 = vld [vmem:[%s1472 + $0x18] sm:$0xff]
        %v1604 = vld [vmem:[%s1472 + $0x20] sm:$0xff]
        %v1605 = vld [vmem:[%s1472 + $0x30] sm:$0xff]
        %v1606 = vld [vmem:[%s1472 + $0x38] sm:$0xff]
        %v1607 = vld [vmem:[%s1472 + $0x48] sm:$0xff]
        %v1608 = vld [vmem:[%s1472 + $0x50] sm:$0xff]
        %v1609 = vld [vmem:[%s1472 + $0x60] sm:$0xff]
        %v1610 = vld [vmem:[%s1472 + $0x68] sm:$0xff]
        %v1611 = vld [vmem:[%s1472 + $0x78] sm:$0xff]
        %v1612 = vld [vmem:[%s1472 + $0x80] sm:$0xff]
        %v1613 = vld [vmem:[%s1472 + $0x90] sm:$0xff]
        %v1614 = vld [vmem:[%s1472 + $0x98] sm:$0xff]
        %v1615 = vld [vmem:[%s1472 + $0xa8] sm:$0xff]
        %v1616 = vld [vmem:[%s1472 + $0xb0] sm:$0xff]
        %v1617 = vld [vmem:[%s1472 + $0xc0] sm:$0xff]
        %v1618 = vld [vmem:[%s1472 + $0xc8] sm:$0xff]
        %v1619 = vld [vmem:[%s1472 + $0xd8] sm:$0xff]
        %v1620 = vld [vmem:[%s1472 + $0xe0] sm:$0xff]
        %v1621 = vld [vmem:[%s1472 + $0xf0] sm:$0xff]
        %v1622 = vld [vmem:[%s1472 + $0xf8] sm:$0xff]
        %v1623 = vld [vmem:[%s1472 + $0x108] sm:$0xff]
        %v1624 = vld [vmem:[%s1472 + $0x110] sm:$0xff]
        %v1625 = vld [vmem:[%s1472 + $0x120] sm:$0xff]
        %v1626 = vld [vmem:[%s1472 + $0x128] sm:$0xff]
        %v1627 = vld [vmem:[%s1472 + $0x138] sm:$0xff]
        %v1628 = vld [vmem:[%s1472 + $0x140] sm:$0xff]
        %v1629 = vld [vmem:[%s1472 + $0x150] sm:$0xff]
        %v1630 = vld [vmem:[%s1472 + $0x158] sm:$0xff]
        %v1631 = vld [vmem:[%s1472 + $0x168] sm:$0xff]
        %v1632 = vld [vmem:[%s1472 + $0x170] sm:$0xff]
        %v1633 = vld [vmem:[%s1472 + $0x1] sm:$0xff]
        %v1634 = vld [vmem:[%s1472 + $0x9] sm:$0xff]
        %v1635 = vld [vmem:[%s1472 + $0x19] sm:$0xff]
        %v1636 = vld [vmem:[%s1472 + $0x21] sm:$0xff]
        %v1637 = vld [vmem:[%s1472 + $0x31] sm:$0xff]
        %v1638 = vld [vmem:[%s1472 + $0x39] sm:$0xff]
        %v1639 = vld [vmem:[%s1472 + $0x49] sm:$0xff]
        %v1640 = vld [vmem:[%s1472 + $0x51] sm:$0xff]
        %v1641 = vld [vmem:[%s1472 + $0x61] sm:$0xff]
        %v1642 = vld [vmem:[%s1472 + $0x69] sm:$0xff]
        %v1643 = vld [vmem:[%s1472 + $0x79] sm:$0xff]
        %v1644 = vld [vmem:[%s1472 + $0x81] sm:$0xff]
        %v1645 = vld [vmem:[%s1472 + $0x91] sm:$0xff]
        %v1646 = vld [vmem:[%s1472 + $0x99] sm:$0xff]
        %v1647 = vld [vmem:[%s1472 + $0xa9] sm:$0xff]
        %v1648 = vld [vmem:[%s1472 + $0xb1] sm:$0xff]
        %v1649 = vld [vmem:[%s1472 + $0xc1] sm:$0xff]
        %v1650 = vld [vmem:[%s1472 + $0xc9] sm:$0xff]
        %v1651 = vld [vmem:[%s1472 + $0xd9] sm:$0xff]
        %v1652 = vld [vmem:[%s1472 + $0xe1] sm:$0xff]
        %v1653 = vld [vmem:[%s1472 + $0xf1] sm:$0xff]
        %v1654 = vld [vmem:[%s1472 + $0xf9] sm:$0xff]
        %v1655 = vld [vmem:[%s1472 + $0x109] sm:$0xff]
        %v1656 = vld [vmem:[%s1472 + $0x111] sm:$0xff]
        %v1657 = vld [vmem:[%s1472 + $0x121] sm:$0xff]
        %v1658 = vld [vmem:[%s1472 + $0x129] sm:$0xff]
        %v1659 = vld [vmem:[%s1472 + $0x139] sm:$0xff]
        %v1660 = vld [vmem:[%s1472 + $0x141] sm:$0xff]
        %v1661 = vld [vmem:[%s1472 + $0x151] sm:$0xff]
        %v1662 = vld [vmem:[%s1472 + $0x159] sm:$0xff]
        %v1663 = vld [vmem:[%s1472 + $0x169] sm:$0xff]
        %v1664 = vld [vmem:[%s1472 + $0x171] sm:$0xff]
        %v1665 = vld [vmem:[%s1472 + $0x2] sm:$0xff]
        %v1666 = vld [vmem:[%s1472 + $0xa] sm:$0xff]
        %v1667 = vld [vmem:[%s1472 + $0x1a] sm:$0xff]
        %v1668 = vld [vmem:[%s1472 + $0x22] sm:$0xff]
        %v1669 = vld [vmem:[%s1472 + $0x32] sm:$0xff]
        %v1670 = vld [vmem:[%s1472 + $0x3a] sm:$0xff]
        %v1671 = vld [vmem:[%s1472 + $0x4a] sm:$0xff]
        %v1672 = vld [vmem:[%s1472 + $0x52] sm:$0xff]
        %v1673 = vld [vmem:[%s1472 + $0x62] sm:$0xff]
        %v1674 = vld [vmem:[%s1472 + $0x6a] sm:$0xff]
        %v1675 = vld [vmem:[%s1472 + $0x7a] sm:$0xff]
        %v1676 = vld [vmem:[%s1472 + $0x82] sm:$0xff]
        %v1677 = vld [vmem:[%s1472 + $0x92] sm:$0xff]
        %v1678 = vld [vmem:[%s1472 + $0x9a] sm:$0xff]
        %v1679 = vld [vmem:[%s1472 + $0xaa] sm:$0xff]
        %v1680 = vld [vmem:[%s1472 + $0xb2] sm:$0xff]
        %v1681 = vld [vmem:[%s1472 + $0xc2] sm:$0xff]
        %v1682 = vld [vmem:[%s1472 + $0xca] sm:$0xff]
        %v1683 = vld [vmem:[%s1472 + $0xda] sm:$0xff]
        %v1684 = vld [vmem:[%s1472 + $0xe2] sm:$0xff]
        %v1685 = vld [vmem:[%s1472 + $0xf2] sm:$0xff]
        %v1686 = vld [vmem:[%s1472 + $0xfa] sm:$0xff]
        %v1687 = vld [vmem:[%s1472 + $0x10a] sm:$0xff]
        %v1688 = vld [vmem:[%s1472 + $0x112] sm:$0xff]
        %v1689 = vld [vmem:[%s1472 + $0x122] sm:$0xff]
        %v1690 = vld [vmem:[%s1472 + $0x12a] sm:$0xff]
        %v1691 = vld [vmem:[%s1472 + $0x13a] sm:$0xff]
        %v1692 = vld [vmem:[%s1472 + $0x142] sm:$0xff]
        %v1693 = vld [vmem:[%s1472 + $0x152] sm:$0xff]
        %v1694 = vld [vmem:[%s1472 + $0x15a] sm:$0xff]
        %v1695 = vld [vmem:[%s1472 + $0x16a] sm:$0xff]
        %v1696 = vld [vmem:[%s1472 + $0x172] sm:$0xff]
        %s1697 = scalar_lea.vmem [#allocation3], 48
        %v1698 = vld [vmem:[%s1697] sm:$0xff]
        %v1699 = vld [vmem:[%s1697 + $0x8] sm:$0xff]
        %v1700 = vld [vmem:[%s1697 + $0x18] sm:$0xff]
        %v1701 = vld [vmem:[%s1697 + $0x20] sm:$0xff]
        %v1702 = vld [vmem:[%s1697 + $0x30] sm:$0xff]
        %v1703 = vld [vmem:[%s1697 + $0x38] sm:$0xff]
        %v1704 = vld [vmem:[%s1697 + $0x48] sm:$0xff]
        %v1705 = vld [vmem:[%s1697 + $0x50] sm:$0xff]
        %v1706 = vld [vmem:[%s1697 + $0x60] sm:$0xff]
        %v1707 = vld [vmem:[%s1697 + $0x68] sm:$0xff]
        %v1708 = vld [vmem:[%s1697 + $0x78] sm:$0xff]
        %v1709 = vld [vmem:[%s1697 + $0x80] sm:$0xff]
        %v1710 = vld [vmem:[%s1697 + $0x90] sm:$0xff]
        %v1711 = vld [vmem:[%s1697 + $0x98] sm:$0xff]
        %v1712 = vld [vmem:[%s1697 + $0xa8] sm:$0xff]
        %v1713 = vld [vmem:[%s1697 + $0xb0] sm:$0xff]
        %v1714 = vld [vmem:[%s1697 + $0xc0] sm:$0xff]
        %v1715 = vld [vmem:[%s1697 + $0xc8] sm:$0xff]
        %v1716 = vld [vmem:[%s1697 + $0xd8] sm:$0xff]
        %v1717 = vld [vmem:[%s1697 + $0xe0] sm:$0xff]
        %v1718 = vld [vmem:[%s1697 + $0xf0] sm:$0xff]
        %v1719 = vld [vmem:[%s1697 + $0xf8] sm:$0xff]
        %v1720 = vld [vmem:[%s1697 + $0x108] sm:$0xff]
        %v1721 = vld [vmem:[%s1697 + $0x110] sm:$0xff]
        %v1722 = vld [vmem:[%s1697 + $0x120] sm:$0xff]
        %v1723 = vld [vmem:[%s1697 + $0x128] sm:$0xff]
        %v1724 = vld [vmem:[%s1697 + $0x138] sm:$0xff]
        %v1725 = vld [vmem:[%s1697 + $0x140] sm:$0xff]
        %v1726 = vld [vmem:[%s1697 + $0x150] sm:$0xff]
        %v1727 = vld [vmem:[%s1697 + $0x158] sm:$0xff]
        %v1728 = vld [vmem:[%s1697 + $0x168] sm:$0xff]
        %v1729 = vld [vmem:[%s1697 + $0x170] sm:$0xff]
        %v1730 = vld [vmem:[%s1697 + $0x1] sm:$0xff]
        %v1731 = vld [vmem:[%s1697 + $0x9] sm:$0xff]
        %v1732 = vld [vmem:[%s1697 + $0x19] sm:$0xff]
        %v1733 = vld [vmem:[%s1697 + $0x21] sm:$0xff]
        %v1734 = vld [vmem:[%s1697 + $0x31] sm:$0xff]
        %v1735 = vld [vmem:[%s1697 + $0x39] sm:$0xff]
        %v1736 = vld [vmem:[%s1697 + $0x49] sm:$0xff]
        %v1737 = vld [vmem:[%s1697 + $0x51] sm:$0xff]
        %v1738 = vld [vmem:[%s1697 + $0x61] sm:$0xff]
        %v1739 = vld [vmem:[%s1697 + $0x69] sm:$0xff]
        %v1740 = vld [vmem:[%s1697 + $0x79] sm:$0xff]
        %v1741 = vld [vmem:[%s1697 + $0x81] sm:$0xff]
        %v1742 = vld [vmem:[%s1697 + $0x91] sm:$0xff]
        %v1743 = vld [vmem:[%s1697 + $0x99] sm:$0xff]
        %v1744 = vld [vmem:[%s1697 + $0xa9] sm:$0xff]
        %v1745 = vld [vmem:[%s1697 + $0xb1] sm:$0xff]
        %v1746 = vld [vmem:[%s1697 + $0xc1] sm:$0xff]
        %v1747 = vld [vmem:[%s1697 + $0xc9] sm:$0xff]
        %v1748 = vld [vmem:[%s1697 + $0xd9] sm:$0xff]
        %v1749 = vld [vmem:[%s1697 + $0xe1] sm:$0xff]
        %v1750 = vld [vmem:[%s1697 + $0xf1] sm:$0xff]
        %v1751 = vld [vmem:[%s1697 + $0xf9] sm:$0xff]
        %v1752 = vld [vmem:[%s1697 + $0x109] sm:$0xff]
        %v1753 = vld [vmem:[%s1697 + $0x111] sm:$0xff]
        %v1754 = vld [vmem:[%s1697 + $0x121] sm:$0xff]
        %v1755 = vld [vmem:[%s1697 + $0x129] sm:$0xff]
        %v1756 = vld [vmem:[%s1697 + $0x139] sm:$0xff]
        %v1757 = vld [vmem:[%s1697 + $0x141] sm:$0xff]
        %v1758 = vld [vmem:[%s1697 + $0x151] sm:$0xff]
        %v1759 = vld [vmem:[%s1697 + $0x159] sm:$0xff]
        %v1760 = vld [vmem:[%s1697 + $0x169] sm:$0xff]
        %v1761 = vld [vmem:[%s1697 + $0x171] sm:$0xff]
        %v1762 = vld [vmem:[%s1697 + $0x2] sm:$0xff]
        %v1763 = vld [vmem:[%s1697 + $0xa] sm:$0xff]
        %v1764 = vld [vmem:[%s1697 + $0x1a] sm:$0xff]
        %v1765 = vld [vmem:[%s1697 + $0x22] sm:$0xff]
        %v1766 = vld [vmem:[%s1697 + $0x32] sm:$0xff]
        %v1767 = vld [vmem:[%s1697 + $0x3a] sm:$0xff]
        %v1768 = vld [vmem:[%s1697 + $0x4a] sm:$0xff]
        %v1769 = vld [vmem:[%s1697 + $0x52] sm:$0xff]
        %v1770 = vld [vmem:[%s1697 + $0x62] sm:$0xff]
        %v1771 = vld [vmem:[%s1697 + $0x6a] sm:$0xff]
        %v1772 = vld [vmem:[%s1697 + $0x7a] sm:$0xff]
        %v1773 = vld [vmem:[%s1697 + $0x82] sm:$0xff]
        %v1774 = vld [vmem:[%s1697 + $0x92] sm:$0xff]
        %v1775 = vld [vmem:[%s1697 + $0x9a] sm:$0xff]
        %v1776 = vld [vmem:[%s1697 + $0xaa] sm:$0xff]
        %v1777 = vld [vmem:[%s1697 + $0xb2] sm:$0xff]
        %v1778 = vld [vmem:[%s1697 + $0xc2] sm:$0xff]
        %v1779 = vld [vmem:[%s1697 + $0xca] sm:$0xff]
        %v1780 = vld [vmem:[%s1697 + $0xda] sm:$0xff]
        %v1781 = vld [vmem:[%s1697 + $0xe2] sm:$0xff]
        %v1782 = vld [vmem:[%s1697 + $0xf2] sm:$0xff]
        %v1783 = vld [vmem:[%s1697 + $0xfa] sm:$0xff]
        %v1784 = vld [vmem:[%s1697 + $0x10a] sm:$0xff]
        %v1785 = vld [vmem:[%s1697 + $0x112] sm:$0xff]
        %v1786 = vld [vmem:[%s1697 + $0x122] sm:$0xff]
        %v1787 = vld [vmem:[%s1697 + $0x12a] sm:$0xff]
        %v1788 = vld [vmem:[%s1697 + $0x13a] sm:$0xff]
        %v1789 = vld [vmem:[%s1697 + $0x142] sm:$0xff]
        %v1790 = vld [vmem:[%s1697 + $0x152] sm:$0xff]
        %v1791 = vld [vmem:[%s1697 + $0x15a] sm:$0xff]
        %v1792 = vld [vmem:[%s1697 + $0x16a] sm:$0xff]
        %v1793 = vld [vmem:[%s1697 + $0x172] sm:$0xff]
        %1826 = vrot.lane.b32.xlu0 %v1537, 32
        %v1827 = vpop.permute.xlu0 %1826
        %1828 = vrot.lane.b32.xlu0 %v1538, 32
        %v1829 = vpop.permute.xlu0 %1828
        %1830 = vrot.lane.b32.xlu0 %v1539, 32
        %v1831 = vpop.permute.xlu0 %1830
        %1832 = vrot.lane.b32.xlu0 %v1540, 32
        %v1833 = vpop.permute.xlu0 %1832
        %1834 = vrot.lane.b32.xlu0 %v1541, 32
        %v1835 = vpop.permute.xlu0 %1834
        %1836 = vrot.lane.b32.xlu0 %v1542, 32
        %v1837 = vpop.permute.xlu0 %1836
        %1838 = vrot.lane.b32.xlu0 %v1543, 32
        %v1839 = vpop.permute.xlu0 %1838
        %1840 = vrot.lane.b32.xlu0 %v1544, 32
        %v1841 = vpop.permute.xlu0 %1840
        %1842 = vrot.lane.b32.xlu0 %v1545, 32
        %v1843 = vpop.permute.xlu0 %1842
        %1844 = vrot.lane.b32.xlu0 %v1546, 32
        %v1845 = vpop.permute.xlu0 %1844
        %1846 = vrot.lane.b32.xlu0 %v1547, 32
        %v1847 = vpop.permute.xlu0 %1846
        %1848 = vrot.lane.b32.xlu0 %v1548, 32
        %v1849 = vpop.permute.xlu0 %1848
        %1850 = vrot.lane.b32.xlu0 %v1549, 32
        %v1851 = vpop.permute.xlu0 %1850
        %1852 = vrot.lane.b32.xlu0 %v1550, 32
        %v1853 = vpop.permute.xlu0 %1852
        %1854 = vrot.lane.b32.xlu0 %v1551, 32
        %v1855 = vpop.permute.xlu0 %1854
        %1856 = vrot.lane.b32.xlu0 %v1552, 32
        %v1857 = vpop.permute.xlu0 %1856
        %1858 = vrot.lane.b32.xlu0 %v1553, 32
        %v1859 = vpop.permute.xlu0 %1858
        %1860 = vrot.lane.b32.xlu0 %v1554, 32
        %v1861 = vpop.permute.xlu0 %1860
        %1862 = vrot.lane.b32.xlu0 %v1555, 32
        %v1863 = vpop.permute.xlu0 %1862
        %1864 = vrot.lane.b32.xlu0 %v1556, 32
        %v1865 = vpop.permute.xlu0 %1864
        %1866 = vrot.lane.b32.xlu0 %v1557, 32
        %v1867 = vpop.permute.xlu0 %1866
        %1868 = vrot.lane.b32.xlu0 %v1558, 32
        %v1869 = vpop.permute.xlu0 %1868
        %1870 = vrot.lane.b32.xlu0 %v1559, 32
        %v1871 = vpop.permute.xlu0 %1870
        %1872 = vrot.lane.b32.xlu0 %v1560, 32
        %v1873 = vpop.permute.xlu0 %1872
        %1874 = vrot.lane.b32.xlu0 %v1561, 32
        %v1875 = vpop.permute.xlu0 %1874
        %1876 = vrot.lane.b32.xlu0 %v1562, 32
        %v1877 = vpop.permute.xlu0 %1876
        %1878 = vrot.lane.b32.xlu0 %v1563, 32
        %v1879 = vpop.permute.xlu0 %1878
        %1880 = vrot.lane.b32.xlu0 %v1564, 32
        %v1881 = vpop.permute.xlu0 %1880
        %1882 = vrot.lane.b32.xlu0 %v1565, 32
        %v1883 = vpop.permute.xlu0 %1882
        %1884 = vrot.lane.b32.xlu0 %v1566, 32
        %v1885 = vpop.permute.xlu0 %1884
        %1886 = vrot.lane.b32.xlu0 %v1567, 32
        %v1887 = vpop.permute.xlu0 %1886
        %1888 = vrot.lane.b32.xlu0 %v1568, 32
        %v1889 = vpop.permute.xlu0 %1888
        %1954 = vrot.lane.b32.xlu0 %v1569, 64
        %v1955 = vpop.permute.xlu0 %1954
        %1956 = vrot.lane.b32.xlu0 %v1570, 64
        %v1957 = vpop.permute.xlu0 %1956
        %1958 = vrot.lane.b32.xlu0 %v1571, 64
        %v1959 = vpop.permute.xlu0 %1958
        %1960 = vrot.lane.b32.xlu0 %v1572, 64
        %v1961 = vpop.permute.xlu0 %1960
        %1962 = vrot.lane.b32.xlu0 %v1573, 64
        %v1963 = vpop.permute.xlu0 %1962
        %1964 = vrot.lane.b32.xlu0 %v1574, 64
        %v1965 = vpop.permute.xlu0 %1964
        %1966 = vrot.lane.b32.xlu0 %v1575, 64
        %v1967 = vpop.permute.xlu0 %1966
        %1968 = vrot.lane.b32.xlu0 %v1576, 64
        %v1969 = vpop.permute.xlu0 %1968
        %1970 = vrot.lane.b32.xlu0 %v1577, 64
        %v1971 = vpop.permute.xlu0 %1970
        %1972 = vrot.lane.b32.xlu0 %v1578, 64
        %v1973 = vpop.permute.xlu0 %1972
        %1974 = vrot.lane.b32.xlu0 %v1579, 64
        %v1975 = vpop.permute.xlu0 %1974
        %1976 = vrot.lane.b32.xlu0 %v1580, 64
        %v1977 = vpop.permute.xlu0 %1976
        %1978 = vrot.lane.b32.xlu0 %v1581, 64
        %v1979 = vpop.permute.xlu0 %1978
        %1980 = vrot.lane.b32.xlu0 %v1582, 64
        %v1981 = vpop.permute.xlu0 %1980
        %1982 = vrot.lane.b32.xlu0 %v1583, 64
        %v1983 = vpop.permute.xlu0 %1982
        %1984 = vrot.lane.b32.xlu0 %v1584, 64
        %v1985 = vpop.permute.xlu0 %1984
        %1986 = vrot.lane.b32.xlu0 %v1585, 64
        %v1987 = vpop.permute.xlu0 %1986
        %1988 = vrot.lane.b32.xlu0 %v1586, 64
        %v1989 = vpop.permute.xlu0 %1988
        %1990 = vrot.lane.b32.xlu0 %v1587, 64
        %v1991 = vpop.permute.xlu0 %1990
        %1992 = vrot.lane.b32.xlu0 %v1588, 64
        %v1993 = vpop.permute.xlu0 %1992
        %1994 = vrot.lane.b32.xlu0 %v1589, 64
        %v1995 = vpop.permute.xlu0 %1994
        %1996 = vrot.lane.b32.xlu0 %v1590, 64
        %v1997 = vpop.permute.xlu0 %1996
        %1998 = vrot.lane.b32.xlu0 %v1591, 64
        %v1999 = vpop.permute.xlu0 %1998
        %2000 = vrot.lane.b32.xlu0 %v1592, 64
        %v2001 = vpop.permute.xlu0 %2000
        %2002 = vrot.lane.b32.xlu0 %v1593, 64
        %v2003 = vpop.permute.xlu0 %2002
        %2004 = vrot.lane.b32.xlu0 %v1594, 64
        %v2005 = vpop.permute.xlu0 %2004
        %2006 = vrot.lane.b32.xlu0 %v1595, 64
        %v2007 = vpop.permute.xlu0 %2006
        %2008 = vrot.lane.b32.xlu0 %v1596, 64
        %v2009 = vpop.permute.xlu0 %2008
        %2010 = vrot.lane.b32.xlu0 %v1597, 64
        %v2011 = vpop.permute.xlu0 %2010
        %2012 = vrot.lane.b32.xlu0 %v1598, 64
        %v2013 = vpop.permute.xlu0 %2012
        %2014 = vrot.lane.b32.xlu0 %v1599, 64
        %v2015 = vpop.permute.xlu0 %2014
        %2016 = vrot.lane.b32.xlu0 %v1600, 64
        %v2017 = vpop.permute.xlu0 %2016
        %2082 = vrot.lane.b32.xlu0 %v1601, 96
        %v2083 = vpop.permute.xlu0 %2082
        %2084 = vrot.lane.b32.xlu0 %v1602, 96
        %v2085 = vpop.permute.xlu0 %2084
        %2086 = vrot.lane.b32.xlu0 %v1603, 96
        %v2087 = vpop.permute.xlu0 %2086
        %2088 = vrot.lane.b32.xlu0 %v1604, 96
        %v2089 = vpop.permute.xlu0 %2088
        %2090 = vrot.lane.b32.xlu0 %v1605, 96
        %v2091 = vpop.permute.xlu0 %2090
        %2092 = vrot.lane.b32.xlu0 %v1606, 96
        %v2093 = vpop.permute.xlu0 %2092
        %2094 = vrot.lane.b32.xlu0 %v1607, 96
        %v2095 = vpop.permute.xlu0 %2094
        %2096 = vrot.lane.b32.xlu0 %v1608, 96
        %v2097 = vpop.permute.xlu0 %2096
        %2098 = vrot.lane.b32.xlu0 %v1609, 96
        %v2099 = vpop.permute.xlu0 %2098
        %2100 = vrot.lane.b32.xlu0 %v1610, 96
        %v2101 = vpop.permute.xlu0 %2100
        %2102 = vrot.lane.b32.xlu0 %v1611, 96
        %v2103 = vpop.permute.xlu0 %2102
        %2104 = vrot.lane.b32.xlu0 %v1612, 96
        %v2105 = vpop.permute.xlu0 %2104
        %2106 = vrot.lane.b32.xlu0 %v1613, 96
        %v2107 = vpop.permute.xlu0 %2106
        %2108 = vrot.lane.b32.xlu0 %v1614, 96
        %v2109 = vpop.permute.xlu0 %2108
        %2110 = vrot.lane.b32.xlu0 %v1615, 96
        %v2111 = vpop.permute.xlu0 %2110
        %2112 = vrot.lane.b32.xlu0 %v1616, 96
        %v2113 = vpop.permute.xlu0 %2112
        %2114 = vrot.lane.b32.xlu0 %v1617, 96
        %v2115 = vpop.permute.xlu0 %2114
        %2116 = vrot.lane.b32.xlu0 %v1618, 96
        %v2117 = vpop.permute.xlu0 %2116
        %2118 = vrot.lane.b32.xlu0 %v1619, 96
        %v2119 = vpop.permute.xlu0 %2118
        %2120 = vrot.lane.b32.xlu0 %v1620, 96
        %v2121 = vpop.permute.xlu0 %2120
        %2122 = vrot.lane.b32.xlu0 %v1621, 96
        %v2123 = vpop.permute.xlu0 %2122
        %2124 = vrot.lane.b32.xlu0 %v1622, 96
        %v2125 = vpop.permute.xlu0 %2124
        %2126 = vrot.lane.b32.xlu0 %v1623, 96
        %v2127 = vpop.permute.xlu0 %2126
        %2128 = vrot.lane.b32.xlu0 %v1624, 96
        %v2129 = vpop.permute.xlu0 %2128
        %2130 = vrot.lane.b32.xlu0 %v1625, 96
        %v2131 = vpop.permute.xlu0 %2130
        %2132 = vrot.lane.b32.xlu0 %v1626, 96
        %v2133 = vpop.permute.xlu0 %2132
        %2134 = vrot.lane.b32.xlu0 %v1627, 96
        %v2135 = vpop.permute.xlu0 %2134
        %2136 = vrot.lane.b32.xlu0 %v1628, 96
        %v2137 = vpop.permute.xlu0 %2136
        %2138 = vrot.lane.b32.xlu0 %v1629, 96
        %v2139 = vpop.permute.xlu0 %2138
        %2140 = vrot.lane.b32.xlu0 %v1630, 96
        %v2141 = vpop.permute.xlu0 %2140
        %2142 = vrot.lane.b32.xlu0 %v1631, 96
        %v2143 = vpop.permute.xlu0 %2142
        %2144 = vrot.lane.b32.xlu0 %v1632, 96
        %v2145 = vpop.permute.xlu0 %2144
        %2210 = vrot.lane.b32.xlu0 %v1665, 32
        %v2211 = vpop.permute.xlu0 %2210
        %2212 = vrot.lane.b32.xlu0 %v1666, 32
        %v2213 = vpop.permute.xlu0 %2212
        %2214 = vrot.lane.b32.xlu0 %v1667, 32
        %v2215 = vpop.permute.xlu0 %2214
        %2216 = vrot.lane.b32.xlu0 %v1668, 32
        %v2217 = vpop.permute.xlu0 %2216
        %2218 = vrot.lane.b32.xlu0 %v1669, 32
        %v2219 = vpop.permute.xlu0 %2218
        %2220 = vrot.lane.b32.xlu0 %v1670, 32
        %v2221 = vpop.permute.xlu0 %2220
        %2222 = vrot.lane.b32.xlu0 %v1671, 32
        %v2223 = vpop.permute.xlu0 %2222
        %2224 = vrot.lane.b32.xlu0 %v1672, 32
        %v2225 = vpop.permute.xlu0 %2224
        %2226 = vrot.lane.b32.xlu0 %v1673, 32
        %v2227 = vpop.permute.xlu0 %2226
        %2228 = vrot.lane.b32.xlu0 %v1674, 32
        %v2229 = vpop.permute.xlu0 %2228
        %2230 = vrot.lane.b32.xlu0 %v1675, 32
        %v2231 = vpop.permute.xlu0 %2230
        %2232 = vrot.lane.b32.xlu0 %v1676, 32
        %v2233 = vpop.permute.xlu0 %2232
        %2234 = vrot.lane.b32.xlu0 %v1677, 32
        %v2235 = vpop.permute.xlu0 %2234
        %2236 = vrot.lane.b32.xlu0 %v1678, 32
        %v2237 = vpop.permute.xlu0 %2236
        %2238 = vrot.lane.b32.xlu0 %v1679, 32
        %v2239 = vpop.permute.xlu0 %2238
        %2240 = vrot.lane.b32.xlu0 %v1680, 32
        %v2241 = vpop.permute.xlu0 %2240
        %2242 = vrot.lane.b32.xlu0 %v1681, 32
        %v2243 = vpop.permute.xlu0 %2242
        %2244 = vrot.lane.b32.xlu0 %v1682, 32
        %v2245 = vpop.permute.xlu0 %2244
        %2246 = vrot.lane.b32.xlu0 %v1683, 32
        %v2247 = vpop.permute.xlu0 %2246
        %2248 = vrot.lane.b32.xlu0 %v1684, 32
        %v2249 = vpop.permute.xlu0 %2248
        %2250 = vrot.lane.b32.xlu0 %v1685, 32
        %v2251 = vpop.permute.xlu0 %2250
        %2252 = vrot.lane.b32.xlu0 %v1686, 32
        %v2253 = vpop.permute.xlu0 %2252
        %2254 = vrot.lane.b32.xlu0 %v1687, 32
        %v2255 = vpop.permute.xlu0 %2254
        %2256 = vrot.lane.b32.xlu0 %v1688, 32
        %v2257 = vpop.permute.xlu0 %2256
        %2258 = vrot.lane.b32.xlu0 %v1689, 32
        %v2259 = vpop.permute.xlu0 %2258
        %2260 = vrot.lane.b32.xlu0 %v1690, 32
        %v2261 = vpop.permute.xlu0 %2260
        %2262 = vrot.lane.b32.xlu0 %v1691, 32
        %v2263 = vpop.permute.xlu0 %2262
        %2264 = vrot.lane.b32.xlu0 %v1692, 32
        %v2265 = vpop.permute.xlu0 %2264
        %2266 = vrot.lane.b32.xlu0 %v1693, 32
        %v2267 = vpop.permute.xlu0 %2266
        %2268 = vrot.lane.b32.xlu0 %v1694, 32
        %v2269 = vpop.permute.xlu0 %2268
        %2270 = vrot.lane.b32.xlu0 %v1695, 32
        %v2271 = vpop.permute.xlu0 %2270
        %2272 = vrot.lane.b32.xlu0 %v1696, 32
        %v2273 = vpop.permute.xlu0 %2272
        %2338 = vrot.lane.b32.xlu0 %v1698, 64
        %v2339 = vpop.permute.xlu0 %2338
        %2340 = vrot.lane.b32.xlu0 %v1699, 64
        %v2341 = vpop.permute.xlu0 %2340
        %2342 = vrot.lane.b32.xlu0 %v1700, 64
        %v2343 = vpop.permute.xlu0 %2342
        %2344 = vrot.lane.b32.xlu0 %v1701, 64
        %v2345 = vpop.permute.xlu0 %2344
        %2346 = vrot.lane.b32.xlu0 %v1702, 64
        %v2347 = vpop.permute.xlu0 %2346
        %2348 = vrot.lane.b32.xlu0 %v1703, 64
        %v2349 = vpop.permute.xlu0 %2348
        %2350 = vrot.lane.b32.xlu0 %v1704, 64
        %v2351 = vpop.permute.xlu0 %2350
        %2352 = vrot.lane.b32.xlu0 %v1705, 64
        %v2353 = vpop.permute.xlu0 %2352
        %2354 = vrot.lane.b32.xlu0 %v1706, 64
        %v2355 = vpop.permute.xlu0 %2354
        %2356 = vrot.lane.b32.xlu0 %v1707, 64
        %v2357 = vpop.permute.xlu0 %2356
        %2358 = vrot.lane.b32.xlu0 %v1708, 64
        %v2359 = vpop.permute.xlu0 %2358
        %2360 = vrot.lane.b32.xlu0 %v1709, 64
        %v2361 = vpop.permute.xlu0 %2360
        %2362 = vrot.lane.b32.xlu0 %v1710, 64
        %v2363 = vpop.permute.xlu0 %2362
        %2364 = vrot.lane.b32.xlu0 %v1711, 64
        %v2365 = vpop.permute.xlu0 %2364
        %2366 = vrot.lane.b32.xlu0 %v1712, 64
        %v2367 = vpop.permute.xlu0 %2366
        %2368 = vrot.lane.b32.xlu0 %v1713, 64
        %v2369 = vpop.permute.xlu0 %2368
        %2370 = vrot.lane.b32.xlu0 %v1714, 64
        %v2371 = vpop.permute.xlu0 %2370
        %2372 = vrot.lane.b32.xlu0 %v1715, 64
        %v2373 = vpop.permute.xlu0 %2372
        %2374 = vrot.lane.b32.xlu0 %v1716, 64
        %v2375 = vpop.permute.xlu0 %2374
        %2376 = vrot.lane.b32.xlu0 %v1717, 64
        %v2377 = vpop.permute.xlu0 %2376
        %2378 = vrot.lane.b32.xlu0 %v1718, 64
        %v2379 = vpop.permute.xlu0 %2378
        %2380 = vrot.lane.b32.xlu0 %v1719, 64
        %v2381 = vpop.permute.xlu0 %2380
        %2382 = vrot.lane.b32.xlu0 %v1720, 64
        %v2383 = vpop.permute.xlu0 %2382
        %2384 = vrot.lane.b32.xlu0 %v1721, 64
        %v2385 = vpop.permute.xlu0 %2384
        %2386 = vrot.lane.b32.xlu0 %v1722, 64
        %v2387 = vpop.permute.xlu0 %2386
        %2388 = vrot.lane.b32.xlu0 %v1723, 64
        %v2389 = vpop.permute.xlu0 %2388
        %2390 = vrot.lane.b32.xlu0 %v1724, 64
        %v2391 = vpop.permute.xlu0 %2390
        %2392 = vrot.lane.b32.xlu0 %v1725, 64
        %v2393 = vpop.permute.xlu0 %2392
        %2394 = vrot.lane.b32.xlu0 %v1726, 64
        %v2395 = vpop.permute.xlu0 %2394
        %2396 = vrot.lane.b32.xlu0 %v1727, 64
        %v2397 = vpop.permute.xlu0 %2396
        %2398 = vrot.lane.b32.xlu0 %v1728, 64
        %v2399 = vpop.permute.xlu0 %2398
        %2400 = vrot.lane.b32.xlu0 %v1729, 64
        %v2401 = vpop.permute.xlu0 %2400
        %2466 = vrot.lane.b32.xlu0 %v1730, 96
        %v2467 = vpop.permute.xlu0 %2466
        %2468 = vrot.lane.b32.xlu0 %v1731, 96
        %v2469 = vpop.permute.xlu0 %2468
        %2470 = vrot.lane.b32.xlu0 %v1732, 96
        %v2471 = vpop.permute.xlu0 %2470
        %2472 = vrot.lane.b32.xlu0 %v1733, 96
        %v2473 = vpop.permute.xlu0 %2472
        %2474 = vrot.lane.b32.xlu0 %v1734, 96
        %v2475 = vpop.permute.xlu0 %2474
        %2476 = vrot.lane.b32.xlu0 %v1735, 96
        %v2477 = vpop.permute.xlu0 %2476
        %2478 = vrot.lane.b32.xlu0 %v1736, 96
        %v2479 = vpop.permute.xlu0 %2478
        %2480 = vrot.lane.b32.xlu0 %v1737, 96
        %v2481 = vpop.permute.xlu0 %2480
        %2482 = vrot.lane.b32.xlu0 %v1738, 96
        %v2483 = vpop.permute.xlu0 %2482
        %2484 = vrot.lane.b32.xlu0 %v1739, 96
        %v2485 = vpop.permute.xlu0 %2484
        %2486 = vrot.lane.b32.xlu0 %v1740, 96
        %v2487 = vpop.permute.xlu0 %2486
        %2488 = vrot.lane.b32.xlu0 %v1741, 96
        %v2489 = vpop.permute.xlu0 %2488
        %2490 = vrot.lane.b32.xlu0 %v1742, 96
        %v2491 = vpop.permute.xlu0 %2490
        %2492 = vrot.lane.b32.xlu0 %v1743, 96
        %v2493 = vpop.permute.xlu0 %2492
        %2494 = vrot.lane.b32.xlu0 %v1744, 96
        %v2495 = vpop.permute.xlu0 %2494
        %2496 = vrot.lane.b32.xlu0 %v1745, 96
        %v2497 = vpop.permute.xlu0 %2496
        %2498 = vrot.lane.b32.xlu0 %v1746, 96
        %v2499 = vpop.permute.xlu0 %2498
        %2500 = vrot.lane.b32.xlu0 %v1747, 96
        %v2501 = vpop.permute.xlu0 %2500
        %2502 = vrot.lane.b32.xlu0 %v1748, 96
        %v2503 = vpop.permute.xlu0 %2502
        %2504 = vrot.lane.b32.xlu0 %v1749, 96
        %v2505 = vpop.permute.xlu0 %2504
        %2506 = vrot.lane.b32.xlu0 %v1750, 96
        %v2507 = vpop.permute.xlu0 %2506
        %2508 = vrot.lane.b32.xlu0 %v1751, 96
        %v2509 = vpop.permute.xlu0 %2508
        %2510 = vrot.lane.b32.xlu0 %v1752, 96
        %v2511 = vpop.permute.xlu0 %2510
        %2512 = vrot.lane.b32.xlu0 %v1753, 96
        %v2513 = vpop.permute.xlu0 %2512
        %2514 = vrot.lane.b32.xlu0 %v1754, 96
        %v2515 = vpop.permute.xlu0 %2514
        %2516 = vrot.lane.b32.xlu0 %v1755, 96
        %v2517 = vpop.permute.xlu0 %2516
        %2518 = vrot.lane.b32.xlu0 %v1756, 96
        %v2519 = vpop.permute.xlu0 %2518
        %2520 = vrot.lane.b32.xlu0 %v1757, 96
        %v2521 = vpop.permute.xlu0 %2520
        %2522 = vrot.lane.b32.xlu0 %v1758, 96
        %v2523 = vpop.permute.xlu0 %2522
        %2524 = vrot.lane.b32.xlu0 %v1759, 96
        %v2525 = vpop.permute.xlu0 %2524
        %2526 = vrot.lane.b32.xlu0 %v1760, 96
        %v2527 = vpop.permute.xlu0 %2526
        %2528 = vrot.lane.b32.xlu0 %v1761, 96
        %v2529 = vpop.permute.xlu0 %2528
        %v2562 = vsel %vm239, %v1505, %v1827
        %v2563 = vsel %vm239, %v1506, %v1829
        %v2564 = vsel %vm239, %v1507, %v1831
        %v2565 = vsel %vm239, %v1508, %v1833
        %v2566 = vsel %vm239, %v1509, %v1835
        %v2567 = vsel %vm239, %v1510, %v1837
        %v2568 = vsel %vm239, %v1511, %v1839
        %v2569 = vsel %vm239, %v1512, %v1841
        %v2570 = vsel %vm239, %v1513, %v1843
        %v2571 = vsel %vm239, %v1514, %v1845
        %v2572 = vsel %vm239, %v1515, %v1847
        %v2573 = vsel %vm239, %v1516, %v1849
        %v2574 = vsel %vm239, %v1517, %v1851
        %v2575 = vsel %vm239, %v1518, %v1853
        %v2576 = vsel %vm239, %v1519, %v1855
        %v2577 = vsel %vm239, %v1520, %v1857
        %v2578 = vsel %vm239, %v1521, %v1859
        %v2579 = vsel %vm239, %v1522, %v1861
        %v2580 = vsel %vm239, %v1523, %v1863
        %v2581 = vsel %vm239, %v1524, %v1865
        %v2582 = vsel %vm239, %v1525, %v1867
        %v2583 = vsel %vm239, %v1526, %v1869
        %v2584 = vsel %vm239, %v1527, %v1871
        %v2585 = vsel %vm239, %v1528, %v1873
        %v2586 = vsel %vm239, %v1529, %v1875
        %v2587 = vsel %vm239, %v1530, %v1877
        %v2588 = vsel %vm239, %v1531, %v1879
        %v2589 = vsel %vm239, %v1532, %v1881
        %v2590 = vsel %vm239, %v1533, %v1883
        %v2591 = vsel %vm239, %v1534, %v1885
        %v2592 = vsel %vm239, %v1535, %v1887
        %v2593 = vsel %vm239, %v1536, %v1889
        %vm2594 = vcmask 523264
        %v2595 = vsel %vm2594, %v2562, %v1955
        %v2596 = vsel %vm2594, %v2563, %v1957
        %v2597 = vsel %vm2594, %v2564, %v1959
        %v2598 = vsel %vm2594, %v2565, %v1961
        %v2599 = vsel %vm2594, %v2566, %v1963
        %v2600 = vsel %vm2594, %v2567, %v1965
        %v2601 = vsel %vm2594, %v2568, %v1967
        %v2602 = vsel %vm2594, %v2569, %v1969
        %v2603 = vsel %vm2594, %v2570, %v1971
        %v2604 = vsel %vm2594, %v2571, %v1973
        %v2605 = vsel %vm2594, %v2572, %v1975
        %v2606 = vsel %vm2594, %v2573, %v1977
        %v2607 = vsel %vm2594, %v2574, %v1979
        %v2608 = vsel %vm2594, %v2575, %v1981
        %v2609 = vsel %vm2594, %v2576, %v1983
        %v2610 = vsel %vm2594, %v2577, %v1985
        %v2611 = vsel %vm2594, %v2578, %v1987
        %v2612 = vsel %vm2594, %v2579, %v1989
        %v2613 = vsel %vm2594, %v2580, %v1991
        %v2614 = vsel %vm2594, %v2581, %v1993
        %v2615 = vsel %vm2594, %v2582, %v1995
        %v2616 = vsel %vm2594, %v2583, %v1997
        %v2617 = vsel %vm2594, %v2584, %v1999
        %v2618 = vsel %vm2594, %v2585, %v2001
        %v2619 = vsel %vm2594, %v2586, %v2003
        %v2620 = vsel %vm2594, %v2587, %v2005
        %v2621 = vsel %vm2594, %v2588, %v2007
        %v2622 = vsel %vm2594, %v2589, %v2009
        %v2623 = vsel %vm2594, %v2590, %v2011
        %v2624 = vsel %vm2594, %v2591, %v2013
        %v2625 = vsel %vm2594, %v2592, %v2015
        %v2626 = vsel %vm2594, %v2593, %v2017
        %vm2627 = vcmask 785408
        %v2628 = vsel %vm2627, %v2595, %v2083
        %v2629 = vsel %vm2627, %v2596, %v2085
        %v2630 = vsel %vm2627, %v2597, %v2087
        %v2631 = vsel %vm2627, %v2598, %v2089
        %v2632 = vsel %vm2627, %v2599, %v2091
        %v2633 = vsel %vm2627, %v2600, %v2093
        %v2634 = vsel %vm2627, %v2601, %v2095
        %v2635 = vsel %vm2627, %v2602, %v2097
        %v2636 = vsel %vm2627, %v2603, %v2099
        %v2637 = vsel %vm2627, %v2604, %v2101
        %v2638 = vsel %vm2627, %v2605, %v2103
        %v2639 = vsel %vm2627, %v2606, %v2105
        %v2640 = vsel %vm2627, %v2607, %v2107
        %v2641 = vsel %vm2627, %v2608, %v2109
        %v2642 = vsel %vm2627, %v2609, %v2111
        %v2643 = vsel %vm2627, %v2610, %v2113
        %v2644 = vsel %vm2627, %v2611, %v2115
        %v2645 = vsel %vm2627, %v2612, %v2117
        %v2646 = vsel %vm2627, %v2613, %v2119
        %v2647 = vsel %vm2627, %v2614, %v2121
        %v2648 = vsel %vm2627, %v2615, %v2123
        %v2649 = vsel %vm2627, %v2616, %v2125
        %v2650 = vsel %vm2627, %v2617, %v2127
        %v2651 = vsel %vm2627, %v2618, %v2129
        %v2652 = vsel %vm2627, %v2619, %v2131
        %v2653 = vsel %vm2627, %v2620, %v2133
        %v2654 = vsel %vm2627, %v2621, %v2135
        %v2655 = vsel %vm2627, %v2622, %v2137
        %v2656 = vsel %vm2627, %v2623, %v2139
        %v2657 = vsel %vm2627, %v2624, %v2141
        %v2658 = vsel %vm2627, %v2625, %v2143
        %v2659 = vsel %vm2627, %v2626, %v2145
        %v2660 = vsel %vm239, %v1633, %v2211
        %v2661 = vsel %vm239, %v1634, %v2213
        %v2662 = vsel %vm239, %v1635, %v2215
        %v2663 = vsel %vm239, %v1636, %v2217
        %v2664 = vsel %vm239, %v1637, %v2219
        %v2665 = vsel %vm239, %v1638, %v2221
        %v2666 = vsel %vm239, %v1639, %v2223
        %v2667 = vsel %vm239, %v1640, %v2225
        %v2668 = vsel %vm239, %v1641, %v2227
        %v2669 = vsel %vm239, %v1642, %v2229
        %v2670 = vsel %vm239, %v1643, %v2231
        %v2671 = vsel %vm239, %v1644, %v2233
        %v2672 = vsel %vm239, %v1645, %v2235
        %v2673 = vsel %vm239, %v1646, %v2237
        %v2674 = vsel %vm239, %v1647, %v2239
        %v2675 = vsel %vm239, %v1648, %v2241
        %v2676 = vsel %vm239, %v1649, %v2243
        %v2677 = vsel %vm239, %v1650, %v2245
        %v2678 = vsel %vm239, %v1651, %v2247
        %v2679 = vsel %vm239, %v1652, %v2249
        %v2680 = vsel %vm239, %v1653, %v2251
        %v2681 = vsel %vm239, %v1654, %v2253
        %v2682 = vsel %vm239, %v1655, %v2255
        %v2683 = vsel %vm239, %v1656, %v2257
        %v2684 = vsel %vm239, %v1657, %v2259
        %v2685 = vsel %vm239, %v1658, %v2261
        %v2686 = vsel %vm239, %v1659, %v2263
        %v2687 = vsel %vm239, %v1660, %v2265
        %v2688 = vsel %vm239, %v1661, %v2267
        %v2689 = vsel %vm239, %v1662, %v2269
        %v2690 = vsel %vm239, %v1663, %v2271
        %v2691 = vsel %vm239, %v1664, %v2273
        %v2692 = vsel %vm2594, %v2660, %v2339
        %v2693 = vsel %vm2594, %v2661, %v2341
        %v2694 = vsel %vm2594, %v2662, %v2343
        %v2695 = vsel %vm2594, %v2663, %v2345
        %v2696 = vsel %vm2594, %v2664, %v2347
        %v2697 = vsel %vm2594, %v2665, %v2349
        %v2698 = vsel %vm2594, %v2666, %v2351
        %v2699 = vsel %vm2594, %v2667, %v2353
        %v2700 = vsel %vm2594, %v2668, %v2355
        %v2701 = vsel %vm2594, %v2669, %v2357
        %v2702 = vsel %vm2594, %v2670, %v2359
        %v2703 = vsel %vm2594, %v2671, %v2361
        %v2704 = vsel %vm2594, %v2672, %v2363
        %v2705 = vsel %vm2594, %v2673, %v2365
        %v2706 = vsel %vm2594, %v2674, %v2367
        %v2707 = vsel %vm2594, %v2675, %v2369
        %v2708 = vsel %vm2594, %v2676, %v2371
        %v2709 = vsel %vm2594, %v2677, %v2373
        %v2710 = vsel %vm2594, %v2678, %v2375
        %v2711 = vsel %vm2594, %v2679, %v2377
        %v2712 = vsel %vm2594, %v2680, %v2379
        %v2713 = vsel %vm2594, %v2681, %v2381
        %v2714 = vsel %vm2594, %v2682, %v2383
        %v2715 = vsel %vm2594, %v2683, %v2385
        %v2716 = vsel %vm2594, %v2684, %v2387
        %v2717 = vsel %vm2594, %v2685, %v2389
        %v2718 = vsel %vm2594, %v2686, %v2391
        %v2719 = vsel %vm2594, %v2687, %v2393
        %v2720 = vsel %vm2594, %v2688, %v2395
        %v2721 = vsel %vm2594, %v2689, %v2397
        %v2722 = vsel %vm2594, %v2690, %v2399
        %v2723 = vsel %vm2594, %v2691, %v2401
        %v2724 = vsel %vm2627, %v2692, %v2467
        %v2725 = vsel %vm2627, %v2693, %v2469
        %v2726 = vsel %vm2627, %v2694, %v2471
        %v2727 = vsel %vm2627, %v2695, %v2473
        %v2728 = vsel %vm2627, %v2696, %v2475
        %v2729 = vsel %vm2627, %v2697, %v2477
        %v2730 = vsel %vm2627, %v2698, %v2479
        %v2731 = vsel %vm2627, %v2699, %v2481
        %v2732 = vsel %vm2627, %v2700, %v2483
        %v2733 = vsel %vm2627, %v2701, %v2485
        %v2734 = vsel %vm2627, %v2702, %v2487
        %v2735 = vsel %vm2627, %v2703, %v2489
        %v2736 = vsel %vm2627, %v2704, %v2491
        %v2737 = vsel %vm2627, %v2705, %v2493
        %v2738 = vsel %vm2627, %v2706, %v2495
        %v2739 = vsel %vm2627, %v2707, %v2497
        %v2740 = vsel %vm2627, %v2708, %v2499
        %v2741 = vsel %vm2627, %v2709, %v2501
        %v2742 = vsel %vm2627, %v2710, %v2503
        %v2743 = vsel %vm2627, %v2711, %v2505
        %v2744 = vsel %vm2627, %v2712, %v2507
        %v2745 = vsel %vm2627, %v2713, %v2509
        %v2746 = vsel %vm2627, %v2714, %v2511
        %v2747 = vsel %vm2627, %v2715, %v2513
        %v2748 = vsel %vm2627, %v2716, %v2515
        %v2749 = vsel %vm2627, %v2717, %v2517
        %v2750 = vsel %vm2627, %v2718, %v2519
        %v2751 = vsel %vm2627, %v2719, %v2521
        %v2752 = vsel %vm2627, %v2720, %v2523
        %v2753 = vsel %vm2627, %v2721, %v2525
        %v2754 = vsel %vm2627, %v2722, %v2527
        %v2755 = vsel %vm2627, %v2723, %v2529
        %v2756 = vld [vmem:[%s3] sm:$0xff]
        %v2757 = vld [vmem:[%s3 + $0x8] sm:$0xff]
        %v2758 = vld [vmem:[%s3 + $0x10] sm:$0xff]
        %v2759 = vld [vmem:[%s3 + $0x18] sm:$0xff]
        %v2760 = vld [vmem:[%s3 + $0x20] sm:$0xff]
        %v2761 = vld [vmem:[%s3 + $0x28] sm:$0xff]
        %v2762 = vld [vmem:[%s3 + $0x30] sm:$0xff]
        %v2763 = vld [vmem:[%s3 + $0x38] sm:$0xff]
        %v2764 = vld [vmem:[%s3 + $0x40] sm:$0xff]
        %v2765 = vld [vmem:[%s3 + $0x48] sm:$0xff]
        %v2766 = vld [vmem:[%s3 + $0x50] sm:$0xff]
        %v2767 = vld [vmem:[%s3 + $0x58] sm:$0xff]
        %v2768 = vld [vmem:[%s3 + $0x60] sm:$0xff]
        %v2769 = vld [vmem:[%s3 + $0x68] sm:$0xff]
        %v2770 = vld [vmem:[%s3 + $0x70] sm:$0xff]
        %v2771 = vld [vmem:[%s3 + $0x78] sm:$0xff]
        %v2772 = vld [vmem:[%s3 + $0x80] sm:$0xff]
        %v2773 = vld [vmem:[%s3 + $0x88] sm:$0xff]
        %v2774 = vld [vmem:[%s3 + $0x90] sm:$0xff]
        %v2775 = vld [vmem:[%s3 + $0x98] sm:$0xff]
        %v2776 = vld [vmem:[%s3 + $0xa0] sm:$0xff]
        %v2777 = vld [vmem:[%s3 + $0xa8] sm:$0xff]
        %v2778 = vld [vmem:[%s3 + $0xb0] sm:$0xff]
        %v2779 = vld [vmem:[%s3 + $0xb8] sm:$0xff]
        %v2780 = vld [vmem:[%s3 + $0xc0] sm:$0xff]
        %v2781 = vld [vmem:[%s3 + $0xc8] sm:$0xff]
        %v2782 = vld [vmem:[%s3 + $0xd0] sm:$0xff]
        %v2783 = vld [vmem:[%s3 + $0xd8] sm:$0xff]
        %v2784 = vld [vmem:[%s3 + $0xe0] sm:$0xff]
        %v2785 = vld [vmem:[%s3 + $0xe8] sm:$0xff]
        %v2786 = vld [vmem:[%s3 + $0xf0] sm:$0xff]
        %v2787 = vld [vmem:[%s3 + $0xf8] sm:$0xff]
        %v2788 = vld [vmem:[%s3 + $0x100] sm:$0xff]
        %v2789 = vld [vmem:[%s3 + $0x108] sm:$0xff]
        %v2790 = vld [vmem:[%s3 + $0x110] sm:$0xff]
        %v2791 = vld [vmem:[%s3 + $0x118] sm:$0xff]
        %v2792 = vld [vmem:[%s4] sm:$0x1]
        %v2794 = vlaneseq
        %v2795 = vshrl.u32 %v2794, 7
        %v2796 = vsub.s32 0, %v2795
        %v2797 = vrot.slane %v2792, %v2796
        %v2800 = vsel %vm239, %v1762, 0
        %v2803 = vsel %vm239, %v1763, 0
        %v2806 = vsel %vm239, %v1764, 0
        %v2809 = vsel %vm239, %v1765, 0
        %v2812 = vsel %vm239, %v1766, 0
        %v2815 = vsel %vm239, %v1767, 0
        %v2818 = vsel %vm239, %v1768, 0
        %v2821 = vsel %vm239, %v1769, 0
        %v2824 = vsel %vm239, %v1770, 0
        %v2827 = vsel %vm239, %v1771, 0
        %v2830 = vsel %vm239, %v1772, 0
        %v2833 = vsel %vm239, %v1773, 0
        %v2836 = vsel %vm239, %v1774, 0
        %v2839 = vsel %vm239, %v1775, 0
        %v2842 = vsel %vm239, %v1776, 0
        %v2845 = vsel %vm239, %v1777, 0
        %v2848 = vsel %vm239, %v1778, 0
        %v2851 = vsel %vm239, %v1779, 0
        %v2854 = vsel %vm239, %v1780, 0
        %v2857 = vsel %vm239, %v1781, 0
        %v2860 = vsel %vm239, %v1782, 0
        %v2863 = vsel %vm239, %v1783, 0
        %v2866 = vsel %vm239, %v1784, 0
        %v2869 = vsel %vm239, %v1785, 0
        %v2872 = vsel %vm239, %v1786, 0
        %v2875 = vsel %vm239, %v1787, 0
        %v2878 = vsel %vm239, %v1788, 0
        %v2881 = vsel %vm239, %v1789, 0
        %v2884 = vsel %vm239, %v1790, 0
        %v2887 = vsel %vm239, %v1791, 0
        %v2890 = vsel %vm239, %v1792, 0
        %v2893 = vsel %vm239, %v1793, 0
        %2895 = vmatprep.subr.mxu0 0.0
        %2896 = vmatpush1.msra.mxu0 %v2771
        %2897 = vmatprep.subr.mxu0 0.0
        %2898 = vmatpush1.msra.mxu0 %v2770
        %2899 = vmatprep.subr.mxu0 0.0
        %2900 = vmatpush1.msra.mxu0 %v2769
        %2901 = vmatprep.subr.mxu0 0.0
        %2902 = vmatpush1.msra.mxu0 %v2768
        %2903 = vmatprep.subr.mxu0 0.0
        %2904 = vmatpush1.msra.mxu0 %v2767
        %2905 = vmatprep.subr.mxu0 0.0
        %2906 = vmatpush1.msra.mxu0 %v2766
        %2907 = vmatprep.subr.mxu0 0.0
        %2908 = vmatpush1.msra.mxu0 %v2765
        %2909 = vmatprep.subr.mxu0 0.0
        %2910 = vmatpush1.msra.mxu0 %v2764
        %2911 = vmatprep.subr.mxu0 0.0
        %2912 = vmatpush1.msra.mxu0 %v2763
        %2913 = vmatprep.subr.mxu0 0.0
        %2914 = vmatpush1.msra.mxu0 %v2762
        %2915 = vmatprep.subr.mxu0 0.0
        %2916 = vmatpush1.msra.mxu0 %v2761
        %2917 = vmatprep.subr.mxu0 0.0
        %2918 = vmatpush1.msra.mxu0 %v2760
        %2919 = vmatprep.subr.mxu0 0.0
        %2920 = vmatpush1.msra.mxu0 %v2759
        %2921 = vmatprep.subr.mxu0 0.0
        %2922 = vmatpush1.msra.mxu0 %v2758
        %2923 = vmatprep.subr.mxu0 0.0
        %2924 = vmatpush1.msra.mxu0 %v2757
        %2925 = vmatprep.subr.mxu0 0.0
        %2926 = vmatpush1.msra.mxu0 %v2756
        %2927 = vmatprep.subr.mxu0 0.0
        %2928 = vmatpush2.msra.mxu0 %v2787
        %2929 = vmatprep.subr.mxu0 0.0
        %2930 = vmatpush2.msra.mxu0 %v2786
        %2931 = vmatprep.subr.mxu0 0.0
        %2932 = vmatpush2.msra.mxu0 %v2785
        %2933 = vmatprep.subr.mxu0 0.0
        %2934 = vmatpush2.msra.mxu0 %v2784
        %2935 = vmatprep.subr.mxu0 0.0
        %2936 = vmatpush2.msra.mxu0 %v2783
        %2937 = vmatprep.subr.mxu0 0.0
        %2938 = vmatpush2.msra.mxu0 %v2782
        %2939 = vmatprep.subr.mxu0 0.0
        %2940 = vmatpush2.msra.mxu0 %v2781
        %2941 = vmatprep.subr.mxu0 0.0
        %2942 = vmatpush2.msra.mxu0 %v2780
        %2943 = vmatprep.subr.mxu0 0.0
        %2944 = vmatpush2.msra.mxu0 %v2779
        %2945 = vmatprep.subr.mxu0 0.0
        %2946 = vmatpush2.msra.mxu0 %v2778
        %2947 = vmatprep.subr.mxu0 0.0
        %2948 = vmatpush2.msra.mxu0 %v2777
        %2949 = vmatprep.subr.mxu0 0.0
        %2950 = vmatpush2.msra.mxu0 %v2776
        %2951 = vmatprep.subr.mxu0 0.0
        %2952 = vmatpush2.msra.mxu0 %v2775
        %2953 = vmatprep.subr.mxu0 0.0
        %2954 = vmatpush2.msra.mxu0 %v2774
        %2955 = vmatprep.subr.mxu0 0.0
        %2956 = vmatpush2.msra.mxu0 %v2773
        %2957 = vmatprep.subr.mxu0 0.0
        %2958 = vmatpush2.msra.mxu0 %v2772
        %2959 = vmatprep.mubr.f32.mxu0 %v2724
        %2960 = vmatmul.mubr.f32.gmra.mxu0 %v2628
        %v2961 = vpop.f32.mrf.mxu0
        %v2962 = vadd.f32 %v2797, %v2961
        %v2963 = vpop.f32.mrf.mxu0
        %2964 = vmatprep.mubr.f32.mxu0 %v2725
        %2965 = vmatmul.mubr.f32.gmra.mxu0 %v2629
        %v2966 = vpop.f32.mrf.mxu0
        %v2967 = vadd.f32 %v2797, %v2966
        %v2968 = vpop.f32.mrf.mxu0
        %2969 = vmatprep.mubr.f32.mxu0 %v2726
        %2970 = vmatmul.mubr.f32.gmra.mxu0 %v2630
        %v2971 = vpop.f32.mrf.mxu0
        %v2972 = vadd.f32 %v2797, %v2971
        %v2973 = vpop.f32.mrf.mxu0
        %2974 = vmatprep.mubr.f32.mxu0 %v2727
        %2975 = vmatmul.mubr.f32.gmra.mxu0 %v2631
        %v2976 = vpop.f32.mrf.mxu0
        %v2977 = vadd.f32 %v2797, %v2976
        %v2978 = vpop.f32.mrf.mxu0
        %2979 = vmatprep.mubr.f32.mxu0 %v2728
        %2980 = vmatmul.mubr.f32.gmra.mxu0 %v2632
        %v2981 = vpop.f32.mrf.mxu0
        %v2982 = vadd.f32 %v2797, %v2981
        %v2983 = vpop.f32.mrf.mxu0
        %2984 = vmatprep.mubr.f32.mxu0 %v2729
        %2985 = vmatmul.mubr.f32.gmra.mxu0 %v2633
        %v2986 = vpop.f32.mrf.mxu0
        %v2987 = vadd.f32 %v2797, %v2986
        %v2988 = vpop.f32.mrf.mxu0
        %2989 = vmatprep.mubr.f32.mxu0 %v2730
        %2990 = vmatmul.mubr.f32.gmra.mxu0 %v2634
        %v2991 = vpop.f32.mrf.mxu0
        %v2992 = vadd.f32 %v2797, %v2991
        %v2993 = vpop.f32.mrf.mxu0
        %2994 = vmatprep.mubr.f32.mxu0 %v2731
        %2995 = vmatmul.mubr.f32.gmra.mxu0 %v2635
        %v2996 = vpop.f32.mrf.mxu0
        %v2997 = vadd.f32 %v2797, %v2996
        %v2998 = vpop.f32.mrf.mxu0
        %2999 = vmatprep.mubr.f32.mxu0 %v2732
        %3000 = vmatmul.mubr.f32.gmra.mxu0 %v2636
        %v3001 = vpop.f32.mrf.mxu0
        %v3002 = vadd.f32 %v2797, %v3001
        %v3003 = vpop.f32.mrf.mxu0
        %3004 = vmatprep.mubr.f32.mxu0 %v2733
        %3005 = vmatmul.mubr.f32.gmra.mxu0 %v2637
        %v3006 = vpop.f32.mrf.mxu0
        %v3007 = vadd.f32 %v2797, %v3006
        %v3008 = vpop.f32.mrf.mxu0
        %3009 = vmatprep.mubr.f32.mxu0 %v2734
        %3010 = vmatmul.mubr.f32.gmra.mxu0 %v2638
        %v3011 = vpop.f32.mrf.mxu0
        %v3012 = vadd.f32 %v2797, %v3011
        %v3013 = vpop.f32.mrf.mxu0
        %3014 = vmatprep.mubr.f32.mxu0 %v2735
        %3015 = vmatmul.mubr.f32.gmra.mxu0 %v2639
        %v3016 = vpop.f32.mrf.mxu0
        %v3017 = vadd.f32 %v2797, %v3016
        %v3018 = vpop.f32.mrf.mxu0
        %3019 = vmatprep.mubr.f32.mxu0 %v2736
        %3020 = vmatmul.mubr.f32.gmra.mxu0 %v2640
        %v3021 = vpop.f32.mrf.mxu0
        %v3022 = vadd.f32 %v2797, %v3021
        %v3023 = vpop.f32.mrf.mxu0
        %3024 = vmatprep.mubr.f32.mxu0 %v2737
        %3025 = vmatmul.mubr.f32.gmra.mxu0 %v2641
        %v3026 = vpop.f32.mrf.mxu0
        %v3027 = vadd.f32 %v2797, %v3026
        %v3028 = vpop.f32.mrf.mxu0
        %3029 = vmatprep.mubr.f32.mxu0 %v2738
        %3030 = vmatmul.mubr.f32.gmra.mxu0 %v2642
        %v3031 = vpop.f32.mrf.mxu0
        %v3032 = vadd.f32 %v2797, %v3031
        %v3033 = vpop.f32.mrf.mxu0
        %3034 = vmatprep.mubr.f32.mxu0 %v2739
        %3035 = vmatmul.mubr.f32.gmra.mxu0 %v2643
        %v3036 = vpop.f32.mrf.mxu0
        %v3037 = vadd.f32 %v2797, %v3036
        %v3038 = vpop.f32.mrf.mxu0
        %3039 = vmatprep.mubr.f32.mxu0 %v2740
        %3040 = vmatmul.mubr.f32.gmra.mxu0 %v2644
        %v3041 = vpop.f32.mrf.mxu0
        %v3042 = vadd.f32 %v2797, %v3041
        %v3043 = vpop.f32.mrf.mxu0
        %3044 = vmatprep.mubr.f32.mxu0 %v2741
        %3045 = vmatmul.mubr.f32.gmra.mxu0 %v2645
        %v3046 = vpop.f32.mrf.mxu0
        %v3047 = vadd.f32 %v2797, %v3046
        %v3048 = vpop.f32.mrf.mxu0
        %3049 = vmatprep.mubr.f32.mxu0 %v2742
        %3050 = vmatmul.mubr.f32.gmra.mxu0 %v2646
        %v3051 = vpop.f32.mrf.mxu0
        %v3052 = vadd.f32 %v2797, %v3051
        %v3053 = vpop.f32.mrf.mxu0
        %3054 = vmatprep.mubr.f32.mxu0 %v2743
        %3055 = vmatmul.mubr.f32.gmra.mxu0 %v2647
        %v3056 = vpop.f32.mrf.mxu0
        %v3057 = vadd.f32 %v2797, %v3056
        %v3058 = vpop.f32.mrf.mxu0
        %3059 = vmatprep.mubr.f32.mxu0 %v2744
        %3060 = vmatmul.mubr.f32.gmra.mxu0 %v2648
        %v3061 = vpop.f32.mrf.mxu0
        %v3062 = vadd.f32 %v2797, %v3061
        %v3063 = vpop.f32.mrf.mxu0
        %3064 = vmatprep.mubr.f32.mxu0 %v2745
        %3065 = vmatmul.mubr.f32.gmra.mxu0 %v2649
        %v3066 = vpop.f32.mrf.mxu0
        %v3067 = vadd.f32 %v2797, %v3066
        %v3068 = vpop.f32.mrf.mxu0
        %3069 = vmatprep.mubr.f32.mxu0 %v2746
        %3070 = vmatmul.mubr.f32.gmra.mxu0 %v2650
        %v3071 = vpop.f32.mrf.mxu0
        %v3072 = vadd.f32 %v2797, %v3071
        %v3073 = vpop.f32.mrf.mxu0
        %3074 = vmatprep.mubr.f32.mxu0 %v2747
        %3075 = vmatmul.mubr.f32.gmra.mxu0 %v2651
        %v3076 = vpop.f32.mrf.mxu0
        %v3077 = vadd.f32 %v2797, %v3076
        %v3078 = vpop.f32.mrf.mxu0
        %3079 = vmatprep.mubr.f32.mxu0 %v2748
        %3080 = vmatmul.mubr.f32.gmra.mxu0 %v2652
        %v3081 = vpop.f32.mrf.mxu0
        %v3082 = vadd.f32 %v2797, %v3081
        %v3083 = vpop.f32.mrf.mxu0
        %3084 = vmatprep.mubr.f32.mxu0 %v2749
        %3085 = vmatmul.mubr.f32.gmra.mxu0 %v2653
        %v3086 = vpop.f32.mrf.mxu0
        %v3087 = vadd.f32 %v2797, %v3086
        %v3088 = vpop.f32.mrf.mxu0
        %3089 = vmatprep.mubr.f32.mxu0 %v2750
        %3090 = vmatmul.mubr.f32.gmra.mxu0 %v2654
        %v3091 = vpop.f32.mrf.mxu0
        %v3092 = vadd.f32 %v2797, %v3091
        %v3093 = vpop.f32.mrf.mxu0
        %3094 = vmatprep.mubr.f32.mxu0 %v2751
        %3095 = vmatmul.mubr.f32.gmra.mxu0 %v2655
        %v3096 = vpop.f32.mrf.mxu0
        %v3097 = vadd.f32 %v2797, %v3096
        %v3098 = vpop.f32.mrf.mxu0
        %3099 = vmatprep.mubr.f32.mxu0 %v2752
        %3100 = vmatmul.mubr.f32.gmra.mxu0 %v2656
        %v3101 = vpop.f32.mrf.mxu0
        %v3102 = vadd.f32 %v2797, %v3101
        %v3103 = vpop.f32.mrf.mxu0
        %3104 = vmatprep.mubr.f32.mxu0 %v2753
        %3105 = vmatmul.mubr.f32.gmra.mxu0 %v2657
        %v3106 = vpop.f32.mrf.mxu0
        %v3107 = vadd.f32 %v2797, %v3106
        %v3108 = vpop.f32.mrf.mxu0
        %3109 = vmatprep.mubr.f32.mxu0 %v2754
        %3110 = vmatmul.mubr.f32.gmra.mxu0 %v2658
        %v3111 = vpop.f32.mrf.mxu0
        %v3112 = vadd.f32 %v2797, %v3111
        %v3113 = vpop.f32.mrf.mxu0
        %3114 = vmatprep.mubr.f32.mxu0 %v2755
        %3115 = vmatmul.mubr.f32.gmra.mxu0 %v2659
        %v3116 = vpop.f32.mrf.mxu0
        %v3117 = vadd.f32 %v2797, %v3116
        %v3118 = vpop.f32.mrf.mxu0
        %3119 = vdwg.mxu0
        %3120 = vmatprep.subr.mxu0 0.0
        %3121 = vmatpush1.msra.mxu0 0.0
        %3122 = vmatprep.subr.mxu0 0.0
        %3123 = vmatpush1.msra.mxu0 0.0
        %3124 = vmatprep.subr.mxu0 0.0
        %3125 = vmatpush1.msra.mxu0 0.0
        %3126 = vmatprep.subr.mxu0 0.0
        %3127 = vmatpush1.msra.mxu0 0.0
        %3128 = vmatprep.subr.mxu0 0.0
        %3129 = vmatpush1.msra.mxu0 0.0
        %3130 = vmatprep.subr.mxu0 0.0
        %3131 = vmatpush1.msra.mxu0 0.0
        %3132 = vmatprep.subr.mxu0 0.0
        %3133 = vmatpush1.msra.mxu0 0.0
        %3134 = vmatprep.subr.mxu0 0.0
        %3135 = vmatpush1.msra.mxu0 0.0
        %3136 = vmatprep.subr.mxu0 0.0
        %3137 = vmatpush1.msra.mxu0 0.0
        %3138 = vmatprep.subr.mxu0 0.0
        %3139 = vmatpush1.msra.mxu0 0.0
        %3140 = vmatprep.subr.mxu0 0.0
        %3141 = vmatpush1.msra.mxu0 0.0
        %3142 = vmatprep.subr.mxu0 0.0
        %3143 = vmatpush1.msra.mxu0 0.0
        %3144 = vmatprep.subr.mxu0 0.0
        %3145 = vmatpush1.msra.mxu0 %v2791
        %3146 = vmatprep.subr.mxu0 0.0
        %3147 = vmatpush1.msra.mxu0 %v2790
        %3148 = vmatprep.subr.mxu0 0.0
        %3149 = vmatpush1.msra.mxu0 %v2789
        %3150 = vmatprep.subr.mxu0 0.0
        %3151 = vmatpush1.msra.mxu0 %v2788
        %3152 = vmatprep.subr.mxu0 0.0
        %3153 = vmatpush2.msra.mxu0 0.0
        %3154 = vmatprep.subr.mxu0 0.0
        %3155 = vmatpush2.msra.mxu0 0.0
        %3156 = vmatprep.subr.mxu0 0.0
        %3157 = vmatpush2.msra.mxu0 0.0
        %3158 = vmatprep.subr.mxu0 0.0
        %3159 = vmatpush2.msra.mxu0 0.0
        %3160 = vmatprep.subr.mxu0 0.0
        %3161 = vmatpush2.msra.mxu0 0.0
        %3162 = vmatprep.subr.mxu0 0.0
        %3163 = vmatpush2.msra.mxu0 0.0
        %3164 = vmatprep.subr.mxu0 0.0
        %3165 = vmatpush2.msra.mxu0 0.0
        %3166 = vmatprep.subr.mxu0 0.0
        %3167 = vmatpush2.msra.mxu0 0.0
        %3168 = vmatprep.subr.mxu0 0.0
        %3169 = vmatpush2.msra.mxu0 0.0
        %3170 = vmatprep.subr.mxu0 0.0
        %3171 = vmatpush2.msra.mxu0 0.0
        %3172 = vmatprep.subr.mxu0 0.0
        %3173 = vmatpush2.msra.mxu0 0.0
        %3174 = vmatprep.subr.mxu0 0.0
        %3175 = vmatpush2.msra.mxu0 0.0
        %3176 = vmatprep.subr.mxu0 0.0
        %3177 = vmatpush2.msra.mxu0 0.0
        %3178 = vmatprep.subr.mxu0 0.0
        %3179 = vmatpush2.msra.mxu0 0.0
        %3180 = vmatprep.subr.mxu0 0.0
        %3181 = vmatpush2.msra.mxu0 0.0
        %3182 = vmatprep.subr.mxu0 0.0
        %3183 = vmatpush2.msra.mxu0 0.0
        %3184 = vmatprep.mubr.f32.mxu0 0.0
        %3185 = vmatmul.mubr.f32.gmra.mxu0 %v2800
        %v3186 = vpop.f32.mrf.mxu0
        %v3187 = vadd.f32 %v2962, %v3186
        %v3188 = vpop.f32.mrf.mxu0
        %3189 = vmatprep.mubr.f32.mxu0 0.0
        %3190 = vmatmul.mubr.f32.gmra.mxu0 %v2803
        %v3191 = vpop.f32.mrf.mxu0
        %v3192 = vadd.f32 %v2967, %v3191
        %v3193 = vpop.f32.mrf.mxu0
        %3194 = vmatprep.mubr.f32.mxu0 0.0
        %3195 = vmatmul.mubr.f32.gmra.mxu0 %v2806
        %v3196 = vpop.f32.mrf.mxu0
        %v3197 = vadd.f32 %v2972, %v3196
        %v3198 = vpop.f32.mrf.mxu0
        %3199 = vmatprep.mubr.f32.mxu0 0.0
        %3200 = vmatmul.mubr.f32.gmra.mxu0 %v2809
        %v3201 = vpop.f32.mrf.mxu0
        %v3202 = vadd.f32 %v2977, %v3201
        %v3203 = vpop.f32.mrf.mxu0
        %3204 = vmatprep.mubr.f32.mxu0 0.0
        %3205 = vmatmul.mubr.f32.gmra.mxu0 %v2812
        %v3206 = vpop.f32.mrf.mxu0
        %v3207 = vadd.f32 %v2982, %v3206
        %v3208 = vpop.f32.mrf.mxu0
        %3209 = vmatprep.mubr.f32.mxu0 0.0
        %3210 = vmatmul.mubr.f32.gmra.mxu0 %v2815
        %v3211 = vpop.f32.mrf.mxu0
        %v3212 = vadd.f32 %v2987, %v3211
        %v3213 = vpop.f32.mrf.mxu0
        %3214 = vmatprep.mubr.f32.mxu0 0.0
        %3215 = vmatmul.mubr.f32.gmra.mxu0 %v2818
        %v3216 = vpop.f32.mrf.mxu0
        %v3217 = vadd.f32 %v2992, %v3216
        %v3218 = vpop.f32.mrf.mxu0
        %3219 = vmatprep.mubr.f32.mxu0 0.0
        %3220 = vmatmul.mubr.f32.gmra.mxu0 %v2821
        %v3221 = vpop.f32.mrf.mxu0
        %v3222 = vadd.f32 %v2997, %v3221
        %v3223 = vpop.f32.mrf.mxu0
        %3224 = vmatprep.mubr.f32.mxu0 0.0
        %3225 = vmatmul.mubr.f32.gmra.mxu0 %v2824
        %v3226 = vpop.f32.mrf.mxu0
        %v3227 = vadd.f32 %v3002, %v3226
        %v3228 = vpop.f32.mrf.mxu0
        %3229 = vmatprep.mubr.f32.mxu0 0.0
        %3230 = vmatmul.mubr.f32.gmra.mxu0 %v2827
        %v3231 = vpop.f32.mrf.mxu0
        %v3232 = vadd.f32 %v3007, %v3231
        %v3233 = vpop.f32.mrf.mxu0
        %3234 = vmatprep.mubr.f32.mxu0 0.0
        %3235 = vmatmul.mubr.f32.gmra.mxu0 %v2830
        %v3236 = vpop.f32.mrf.mxu0
        %v3237 = vadd.f32 %v3012, %v3236
        %v3238 = vpop.f32.mrf.mxu0
        %3239 = vmatprep.mubr.f32.mxu0 0.0
        %3240 = vmatmul.mubr.f32.gmra.mxu0 %v2833
        %v3241 = vpop.f32.mrf.mxu0
        %v3242 = vadd.f32 %v3017, %v3241
        %v3243 = vpop.f32.mrf.mxu0
        %3244 = vmatprep.mubr.f32.mxu0 0.0
        %3245 = vmatmul.mubr.f32.gmra.mxu0 %v2836
        %v3246 = vpop.f32.mrf.mxu0
        %v3247 = vadd.f32 %v3022, %v3246
        %v3248 = vpop.f32.mrf.mxu0
        %3249 = vmatprep.mubr.f32.mxu0 0.0
        %3250 = vmatmul.mubr.f32.gmra.mxu0 %v2839
        %v3251 = vpop.f32.mrf.mxu0
        %v3252 = vadd.f32 %v3027, %v3251
        %v3253 = vpop.f32.mrf.mxu0
        %3254 = vmatprep.mubr.f32.mxu0 0.0
        %3255 = vmatmul.mubr.f32.gmra.mxu0 %v2842
        %v3256 = vpop.f32.mrf.mxu0
        %v3257 = vadd.f32 %v3032, %v3256
        %v3258 = vpop.f32.mrf.mxu0
        %3259 = vmatprep.mubr.f32.mxu0 0.0
        %3260 = vmatmul.mubr.f32.gmra.mxu0 %v2845
        %v3261 = vpop.f32.mrf.mxu0
        %v3262 = vadd.f32 %v3037, %v3261
        %v3263 = vpop.f32.mrf.mxu0
        %3264 = vmatprep.mubr.f32.mxu0 0.0
        %3265 = vmatmul.mubr.f32.gmra.mxu0 %v2848
        %v3266 = vpop.f32.mrf.mxu0
        %v3267 = vadd.f32 %v3042, %v3266
        %v3268 = vpop.f32.mrf.mxu0
        %3269 = vmatprep.mubr.f32.mxu0 0.0
        %3270 = vmatmul.mubr.f32.gmra.mxu0 %v2851
        %v3271 = vpop.f32.mrf.mxu0
        %v3272 = vadd.f32 %v3047, %v3271
        %v3273 = vpop.f32.mrf.mxu0
        %3274 = vmatprep.mubr.f32.mxu0 0.0
        %3275 = vmatmul.mubr.f32.gmra.mxu0 %v2854
        %v3276 = vpop.f32.mrf.mxu0
        %v3277 = vadd.f32 %v3052, %v3276
        %v3278 = vpop.f32.mrf.mxu0
        %3279 = vmatprep.mubr.f32.mxu0 0.0
        %3280 = vmatmul.mubr.f32.gmra.mxu0 %v2857
        %v3281 = vpop.f32.mrf.mxu0
        %v3282 = vadd.f32 %v3057, %v3281
        %v3283 = vpop.f32.mrf.mxu0
        %3284 = vmatprep.mubr.f32.mxu0 0.0
        %3285 = vmatmul.mubr.f32.gmra.mxu0 %v2860
        %v3286 = vpop.f32.mrf.mxu0
        %v3287 = vadd.f32 %v3062, %v3286
        %v3288 = vpop.f32.mrf.mxu0
        %3289 = vmatprep.mubr.f32.mxu0 0.0
        %3290 = vmatmul.mubr.f32.gmra.mxu0 %v2863
        %v3291 = vpop.f32.mrf.mxu0
        %v3292 = vadd.f32 %v3067, %v3291
        %v3293 = vpop.f32.mrf.mxu0
        %3294 = vmatprep.mubr.f32.mxu0 0.0
        %3295 = vmatmul.mubr.f32.gmra.mxu0 %v2866
        %v3296 = vpop.f32.mrf.mxu0
        %v3297 = vadd.f32 %v3072, %v3296
        %v3298 = vpop.f32.mrf.mxu0
        %3299 = vmatprep.mubr.f32.mxu0 0.0
        %3300 = vmatmul.mubr.f32.gmra.mxu0 %v2869
        %v3301 = vpop.f32.mrf.mxu0
        %v3302 = vadd.f32 %v3077, %v3301
        %v3303 = vpop.f32.mrf.mxu0
        %3304 = vmatprep.mubr.f32.mxu0 0.0
        %3305 = vmatmul.mubr.f32.gmra.mxu0 %v2872
        %v3306 = vpop.f32.mrf.mxu0
        %v3307 = vadd.f32 %v3082, %v3306
        %v3308 = vpop.f32.mrf.mxu0
        %3309 = vmatprep.mubr.f32.mxu0 0.0
        %3310 = vmatmul.mubr.f32.gmra.mxu0 %v2875
        %v3311 = vpop.f32.mrf.mxu0
        %v3312 = vadd.f32 %v3087, %v3311
        %v3313 = vpop.f32.mrf.mxu0
        %3314 = vmatprep.mubr.f32.mxu0 0.0
        %3315 = vmatmul.mubr.f32.gmra.mxu0 %v2878
        %v3316 = vpop.f32.mrf.mxu0
        %v3317 = vadd.f32 %v3092, %v3316
        %v3318 = vpop.f32.mrf.mxu0
        %3319 = vmatprep.mubr.f32.mxu0 0.0
        %3320 = vmatmul.mubr.f32.gmra.mxu0 %v2881
        %v3321 = vpop.f32.mrf.mxu0
        %v3322 = vadd.f32 %v3097, %v3321
        %v3323 = vpop.f32.mrf.mxu0
        %3324 = vmatprep.mubr.f32.mxu0 0.0
        %3325 = vmatmul.mubr.f32.gmra.mxu0 %v2884
        %v3326 = vpop.f32.mrf.mxu0
        %v3327 = vadd.f32 %v3102, %v3326
        %v3328 = vpop.f32.mrf.mxu0
        %3329 = vmatprep.mubr.f32.mxu0 0.0
        %3330 = vmatmul.mubr.f32.gmra.mxu0 %v2887
        %v3331 = vpop.f32.mrf.mxu0
        %v3332 = vadd.f32 %v3107, %v3331
        %v3333 = vpop.f32.mrf.mxu0
        %3334 = vmatprep.mubr.f32.mxu0 0.0
        %3335 = vmatmul.mubr.f32.gmra.mxu0 %v2890
        %v3336 = vpop.f32.mrf.mxu0
        %v3337 = vadd.f32 %v3112, %v3336
        %v3338 = vpop.f32.mrf.mxu0
        %3339 = vmatprep.mubr.f32.mxu0 0.0
        %3340 = vmatmul.mubr.f32.gmra.mxu0 %v2893
        %v3341 = vpop.f32.mrf.mxu0
        %v3342 = vadd.f32 %v3117, %v3341
        %v3343 = vpop.f32.mrf.mxu0
        %3344 = vdwg.mxu0
        %v3345 = vmax.f32 %v3187, 0.0
        %v3346 = vmax.f32 %v3192, 0.0
        %v3347 = vmax.f32 %v3197, 0.0
        %v3348 = vmax.f32 %v3202, 0.0
        %v3349 = vmax.f32 %v3207, 0.0
        %v3350 = vmax.f32 %v3212, 0.0
        %v3351 = vmax.f32 %v3217, 0.0
        %v3352 = vmax.f32 %v3222, 0.0
        %v3353 = vmax.f32 %v3227, 0.0
        %v3354 = vmax.f32 %v3232, 0.0
        %v3355 = vmax.f32 %v3237, 0.0
        %v3356 = vmax.f32 %v3242, 0.0
        %v3357 = vmax.f32 %v3247, 0.0
        %v3358 = vmax.f32 %v3252, 0.0
        %v3359 = vmax.f32 %v3257, 0.0
        %v3360 = vmax.f32 %v3262, 0.0
        %v3361 = vmax.f32 %v3267, 0.0
        %v3362 = vmax.f32 %v3272, 0.0
        %v3363 = vmax.f32 %v3277, 0.0
        %v3364 = vmax.f32 %v3282, 0.0
        %v3365 = vmax.f32 %v3287, 0.0
        %v3366 = vmax.f32 %v3292, 0.0
        %v3367 = vmax.f32 %v3297, 0.0
        %v3368 = vmax.f32 %v3302, 0.0
        %v3369 = vmax.f32 %v3307, 0.0
        %v3370 = vmax.f32 %v3312, 0.0
        %v3371 = vmax.f32 %v3317, 0.0
        %v3372 = vmax.f32 %v3322, 0.0
        %v3373 = vmax.f32 %v3327, 0.0
        %v3374 = vmax.f32 %v3332, 0.0
        %v3375 = vmax.f32 %v3337, 0.0
        %v3376 = vmax.f32 %v3342, 0.0
        %3377 = vst.msk [vmem:[%s219] sm:$0xff] %vm2594, %v3345
        %3378 = vst.msk [vmem:[%s219 + $0x8] sm:$0xff] %vm2594, %v3346
        %3379 = vst.msk [vmem:[%s219 + $0x10] sm:$0xff] %vm2594, %v3347
        %3380 = vst.msk [vmem:[%s219 + $0x18] sm:$0xff] %vm2594, %v3348
        %3381 = vst.msk [vmem:[%s219 + $0x20] sm:$0xff] %vm2594, %v3349
        %3382 = vst.msk [vmem:[%s219 + $0x28] sm:$0xff] %vm2594, %v3350
        %3383 = vst.msk [vmem:[%s219 + $0x30] sm:$0xff] %vm2594, %v3351
        %3384 = vst.msk [vmem:[%s219 + $0x38] sm:$0xff] %vm2594, %v3352
        %3385 = vst.msk [vmem:[%s219 + $0x40] sm:$0xff] %vm2594, %v3353
        %3386 = vst.msk [vmem:[%s219 + $0x48] sm:$0xff] %vm2594, %v3354
        %3387 = vst.msk [vmem:[%s219 + $0x50] sm:$0xff] %vm2594, %v3355
        %3388 = vst.msk [vmem:[%s219 + $0x58] sm:$0xff] %vm2594, %v3356
        %3389 = vst.msk [vmem:[%s219 + $0x60] sm:$0xff] %vm2594, %v3357
        %3390 = vst.msk [vmem:[%s219 + $0x68] sm:$0xff] %vm2594, %v3358
        %3391 = vst.msk [vmem:[%s219 + $0x70] sm:$0xff] %vm2594, %v3359
        %3392 = vst.msk [vmem:[%s219 + $0x78] sm:$0xff] %vm2594, %v3360
        %3393 = vst.msk [vmem:[%s219 + $0x80] sm:$0xff] %vm2594, %v3361
        %3394 = vst.msk [vmem:[%s219 + $0x88] sm:$0xff] %vm2594, %v3362
        %3395 = vst.msk [vmem:[%s219 + $0x90] sm:$0xff] %vm2594, %v3363
        %3396 = vst.msk [vmem:[%s219 + $0x98] sm:$0xff] %vm2594, %v3364
        %3397 = vst.msk [vmem:[%s219 + $0xa0] sm:$0xff] %vm2594, %v3365
        %3398 = vst.msk [vmem:[%s219 + $0xa8] sm:$0xff] %vm2594, %v3366
        %3399 = vst.msk [vmem:[%s219 + $0xb0] sm:$0xff] %vm2594, %v3367
        %3400 = vst.msk [vmem:[%s219 + $0xb8] sm:$0xff] %vm2594, %v3368
        %3401 = vst.msk [vmem:[%s219 + $0xc0] sm:$0xff] %vm2594, %v3369
        %3402 = vst.msk [vmem:[%s219 + $0xc8] sm:$0xff] %vm2594, %v3370
        %3403 = vst.msk [vmem:[%s219 + $0xd0] sm:$0xff] %vm2594, %v3371
        %3404 = vst.msk [vmem:[%s219 + $0xd8] sm:$0xff] %vm2594, %v3372
        %3405 = vst.msk [vmem:[%s219 + $0xe0] sm:$0xff] %vm2594, %v3373
        %3406 = vst.msk [vmem:[%s219 + $0xe8] sm:$0xff] %vm2594, %v3374
        %3407 = vst.msk [vmem:[%s219 + $0xf0] sm:$0xff] %vm2594, %v3375
        %3408 = vst.msk [vmem:[%s219 + $0xf8] sm:$0xff] %vm2594, %v3376
        %s3409 = sand.u32 %s137, 1
        %s3410 = scalar_lea.sflag [#allocation5], %s3409
        %s3411 = sand.u32 %s137, 1
        %s3412 = smul.addr %s3411, 256
        %s3413 = scalar_lea.vmem [#allocation4], %s3412
        // Predicated region
        $region41: #{white_feature_extractor.1} parent=39 // pred_check
          %p3414 = pneg %p147
        $region42: #{white_feature_extractor.1} parent=39 // pred_check_branch
          %3416 = sbr.rel (%p3414) target = $region44
        $region43: #{white_feature_extractor.1} parent=39 // pred_region
          %s3418 = ssub.s32 4096, 4096
          %3419 = vsyncadd %s3410, %s3418
          %s3420 = smul.addr %s19, 32
          %s3421 = smul.addr %s3420, 128
          %s3422 = scalar_lea.hbm %s5, %s3421
          %s3423 = sshll.u32 %s3413, 4
          %s3424 = int_to_ptr.vmem [resolvable:$true] %s3423
          %3429 = dma.vmem_to_hbm [thread:$0]  %s3424, 4096, %s3422, %s3410, 128, 128, 8
        $region44: #{white_feature_extractor.1} parent=39 // pred_fallthru
          _
      $region40: #{white_feature_extractor.1} parent=5 // pred_fallthru
        _
      %p3430 = scmp.le.s32.totalorder 2, %s14
      // Predicated region
      $region45: #{white_feature_extractor.1} parent=5 // pred_check
        %p3431 = pneg %p3430
      $region46: #{white_feature_extractor.1} parent=5 // pred_check_branch
        %3433 = sbr.rel (%p3431) target = $region48
      $region47: #{white_feature_extractor.1} parent=5 // pred_region
        %s3434 = ssub.s32 %s14, 2
        // Predicated region
        $region49: #{white_feature_extractor.1} parent=47 // pred_check
          %p3435 = pneg %p153
        $region50: #{white_feature_extractor.1} parent=47 // pred_check_branch
          %3437 = sbr.rel (%p3435) target = $region52
        $region51: #{white_feature_extractor.1} parent=47 // pred_region
          %s3438 = sand.u32 %s138, 1
          %s3439 = scalar_lea.sflag [#allocation5], %s3438
          %s3440 = sand.u32 %s138, 1
          %s3441 = smul.addr %s3440, 256
          %s3442 = scalar_lea.vmem [#allocation4], %s3441
          %3443 = dma.done %s3439, 4096
        $region52: #{white_feature_extractor.1} parent=47 // pred_fallthru
          _
      $region48: #{white_feature_extractor.1} parent=5 // pred_fallthru
        _
    $region6: #{white_feature_extractor.1} parent=1 // loop_footer
      %s18 = sadd.s32 1, %s14
    $region7: #{white_feature_extractor.1} parent=1 // loop_footer_branch
      %13 = sbr.rel target = $region3
    $region8: #{white_feature_extractor.1} parent=1 // loop_exit
      _
    %3444 = vsyncpa [#allocation5], 1
    %s3445 = scalar_lea.sflag [#allocation5], 1
    %3446 = vsyncpa %s3445, 1

</llo_original>
